<compile_context>
chip_gen: v5e
topology: v5e:2x2
jax: 0.10.0
libtpu: 0.0.40
codegen_flags: <defaults>
</compile_context>

<pallas_src>
import jax
import jax.numpy as jnp
from jax import lax
from jax.experimental import pallas as pl
from jax.experimental.pallas import tpu as pltpu
import numpy as np


def _make_kernel(NH):
    def kernel(patch_ref, cm_ref, wg_ref, bg_ref, wd_ref, bd_ref, out_ref):
        patches = patch_ref[0]                                  # (HW, R) bf16

        # ---- fused gates: one MXU matmul, bf16 x bf16 -> f32 accumulate ----
        gates = jnp.dot(patches, wg_ref[...],
                        preferred_element_type=jnp.float32) + bg_ref[...]

        # Column order: [i_c f_c o_c i_m f_m o_m | g_c g_m]
        sg = jax.nn.sigmoid(gates[:, :6 * NH])                  # one wide EUP pass
        th = jnp.tanh(gates[:, 6 * NH:])                        # one wide EUP pass

        cm = cm_ref[0]                                          # (HW, 2NH) f32
        cc = cm[:, :NH]
        mc = cm[:, NH:]

        # temporal (c) branch
        c = sg[:, NH:2 * NH] * cc + sg[:, :NH] * th[:, :NH]
        # spatiotemporal (m) branch
        m = sg[:, 4 * NH:5 * NH] * mc + sg[:, 3 * NH:4 * NH] * th[:, NH:]

        cm_new = jnp.concatenate([c, m], axis=-1)               # (HW, 2NH)
        th_cm = jnp.tanh(cm_new)
        h_new = (sg[:, 2 * NH:3 * NH] * th_cm[:, :NH]
                 + sg[:, 5 * NH:6 * NH] * th_cm[:, NH:])

        # fused 1x1 decouple convs: [c | m] @ blockdiag(w_cd, w_md) + [b_cd|b_md]
        dec = jnp.dot(cm_new.astype(jnp.bfloat16), wd_ref[...],
                      preferred_element_type=jnp.float32) + bd_ref[...]

        out_ref[0] = jnp.concatenate([h_new, dec], axis=-1)     # [h|c_dec|m_dec]

    return kernel


def _pack_params(params, Cin, NH):
    """Fuse / reorder weights in the wrapper (runs once per call, XLA-side)."""
    K = params["w_xc"].shape[0]
    C = Cin + NH

    def split4(w4, b4):
        # PyTorch split order along out-channels: [i, f, g, o], each NH wide.
        ws = tuple(w4[:, k * NH:(k + 1) * NH] for k in range(4))
        bs = tuple(b4[:, k * NH:(k + 1) * NH] for k in range(4))
        return ws, bs

    # KxK conv weights over concatenated [x | h] input channels.
    w_xhc = jnp.concatenate([params["w_xc"], params["w_hc"]], axis=2)  # (K,K,C,4NH)
    w_xhm = jnp.concatenate([params["w_xm"], params["w_hm"]], axis=2)

    # Contraction rows: K*K taps (Cin+NH channels each) followed by NH m_c rows.
    wc = jnp.concatenate([w_xhc.reshape(K * K * C, 4 * NH),
                          jnp.zeros((NH, 4 * NH), jnp.float32)], axis=0)
    wm = jnp.concatenate([w_xhm.reshape(K * K * C, 4 * NH),
                          params["w_mm"]], axis=0)

    bc = params["b_xc"] + params["b_hc"]                    # folded biases
    bm = params["b_xm"] + params["b_hm"] + params["b_mm"]

    (ic, fc, gc, oc), (bic, bfc, bgc, boc) = split4(wc, bc)
    (im, fm, gm, om), (bim, bfm, bgm, bom) = split4(wm, bm)

    # Reorder columns: sigmoid block (6*NH) first, tanh block (2*NH) last.
    w_gates = jnp.concatenate([ic, fc, oc, im, fm, om, gc, gm],
                              axis=1).astype(jnp.bfloat16)          # (R, 8NH)
    b_gates = jnp.concatenate([bic, bfc, boc, bim, bfm, bom, bgc, bgm],
                              axis=1)                               # (1, 8NH) f32

    # Block-diagonal fused decouple weights.
    w_dec = jnp.zeros((2 * NH, 2 * NH), jnp.float32)
    w_dec = w_dec.at[:NH, :NH].set(params["w_cd"])
    w_dec = w_dec.at[NH:, NH:].set(params["w_md"]).astype(jnp.bfloat16)
    b_dec = jnp.concatenate([params["b_cd"], params["b_md"]], axis=1)  # (1, 2NH)
    return w_gates, b_gates, w_dec, b_dec


def spatiotemporal_lstm_cell(x, h_c, c_c, m_c, params):
    B, Hs, Ws, Cin = x.shape
    NH = c_c.shape[-1]
    K = params["w_xc"].shape[0]
    p = K // 2
    C = Cin + NH
    HW = Hs * Ws
    R = K * K * C + NH

    # ---- wrapper-side layout plumbing (padding, im2col, packing) ----
    xh = jnp.concatenate([x, h_c], axis=-1)                     # (B,H,W,C)
    xh_pad = jnp.pad(xh, ((0, 0), (p, p), (p, p), (0, 0)))
    taps = [xh_pad[:, ky:ky + Hs, kx:kx + Ws, :]
            for ky in range(K) for kx in range(K)]
    patches = jnp.concatenate(taps, axis=-1).reshape(B, HW, K * K * C)
    patches = jnp.concatenate([patches, m_c.reshape(B, HW, NH)], axis=-1)
    patches = patches.astype(jnp.bfloat16)                      # (B, HW, R)

    cm_prev = jnp.concatenate([c_c.reshape(B, HW, NH),
                               m_c.reshape(B, HW, NH)], axis=-1)  # (B, HW, 2NH)

    w_gates, b_gates, w_dec, b_dec = _pack_params(params, Cin, NH)

    kernel = _make_kernel(NH)

    out = pl.pallas_call(
        kernel,
        grid=(B,),
        in_specs=[
            pl.BlockSpec((1, HW, R), lambda b: (b, 0, 0)),            # patches
            pl.BlockSpec((1, HW, 2 * NH), lambda b: (b, 0, 0)),       # [c_c|m_c]
            pl.BlockSpec((R, 8 * NH), lambda b: (0, 0)),              # fused gate W
            pl.BlockSpec((1, 8 * NH), lambda b: (0, 0)),              # fused gate b
            pl.BlockSpec((2 * NH, 2 * NH), lambda b: (0, 0)),         # decouple W
            pl.BlockSpec((1, 2 * NH), lambda b: (0, 0)),              # decouple b
        ],
        out_specs=pl.BlockSpec((1, HW, 3 * NH), lambda b: (b, 0, 0)),
        out_shape=jax.ShapeDtypeStruct((B, HW, 3 * NH), jnp.float32),
        compiler_params=pltpu.CompilerParams(
            dimension_semantics=("parallel",)),
    )(patches, cm_prev, w_gates, b_gates, w_dec, b_dec)

    h_new = out[:, :, :NH].reshape(B, Hs, Ws, NH)
    c_dec = out[:, :, NH:2 * NH].reshape(B, Hs, Ws, NH)
    m_dec = out[:, :, 2 * NH:].reshape(B, Hs, Ws, NH)
    return h_new, c_dec, m_dec


def reference(x, h_c, c_c, m_c, params):
    """Pure-JAX reference mirroring the PyTorch forward.

    Matmul operands are quantized to bf16 (f32 accumulation) exactly like the
    kernel, so the only numerical differences are accumulation order and the
    bf16 re-rounding of c/m before the decouple convs — well inside 1e-2.
    """
    K = params["w_xc"].shape[0]
    p = K // 2
    bf = jnp.bfloat16

    def conv(inp, w, b):
        out = lax.conv_general_dilated(
            inp.astype(bf), w.astype(bf), window_strides=(1, 1),
            padding=[(p, p), (p, p)],
            dimension_numbers=("NHWC", "HWIO", "NHWC"),
            preferred_element_type=jnp.float32)
        return out + b

    def conv1x1(inp, w, b):
        return jnp.einsum("bhwc,cf->bhwf", inp.astype(bf), w.astype(bf),
                          preferred_element_type=jnp.float32) + b

    gates_c = (conv(x, params["w_xc"], params["b_xc"])
               + conv(h_c, params["w_hc"], params["b_hc"]))
    i_c, f_c, g_c, o_c = jnp.split(gates_c, 4, axis=-1)
    c = jax.nn.sigmoid(f_c) * c_c + jax.nn.sigmoid(i_c) * jnp.tanh(g_c)
    h_c_new = jax.nn.sigmoid(o_c) * jnp.tanh(c)

    gates_m = (conv(x, params["w_xm"], params["b_xm"])
               + conv(h_c, params["w_hm"], params["b_hm"])
               + conv1x1(m_c, params["w_mm"], params["b_mm"]))
    i_m, f_m, g_m, o_m = jnp.split(gates_m, 4, axis=-1)
    m = jax.nn.sigmoid(f_m) * m_c + jax.nn.sigmoid(i_m) * jnp.tanh(g_m)
    h_m_new = jax.nn.sigmoid(o_m) * jnp.tanh(m)

    c_dec = conv1x1(c, params["w_cd"], params["b_cd"])
    m_dec = conv1x1(m, params["w_md"], params["b_md"])
    return h_c_new + h_m_new, c_dec, m_dec


if __name__ == "__main__":
    B, Cin, Hs, Ws, NH, K = 2, 4, 16, 16, 32, 3

    key = jax.random.PRNGKey(0)
    keys = iter(jax.random.split(key, 32))

    def w(shape, scale=0.1):
        return jax.random.normal(next(keys), shape, jnp.float32) * scale

    params = {
        "w_xc": w((K, K, Cin, 4 * NH)), "b_xc": w((1, 4 * NH), 0.01),
        "w_hc": w((K, K, NH, 4 * NH)),  "b_hc": w((1, 4 * NH), 0.01),
        "w_xm": w((K, K, Cin, 4 * NH)), "b_xm": w((1, 4 * NH), 0.01),
        "w_hm": w((K, K, NH, 4 * NH)),  "b_hm": w((1, 4 * NH), 0.01),
        "w_mm": w((NH, 4 * NH)),        "b_mm": w((1, 4 * NH), 0.01),
        "w_cd": w((NH, NH)),            "b_cd": w((1, NH), 0.01),
        "w_md": w((NH, NH)),            "b_md": w((1, NH), 0.01),
    }
    # TODO(synk): self.conv_cc is defined in __init__ but never used in forward(); omitted.

    x = jax.random.normal(next(keys), (B, Hs, Ws, Cin), jnp.float32)
    h_c = jax.random.normal(next(keys), (B, Hs, Ws, NH), jnp.float32)
    c_c = jax.random.normal(next(keys), (B, Hs, Ws, NH), jnp.float32)
    m_c = jax.random.normal(next(keys), (B, Hs, Ws, NH), jnp.float32)

    fwd = jax.jit(spatiotemporal_lstm_cell)
    h_new, c_dec, m_dec = jax.block_until_ready(fwd(x, h_c, c_c, m_c, params))

    h_ref, c_ref, m_ref = jax.block_until_ready(
        reference(x, h_c, c_c, m_c, params))

    np.testing.assert_allclose(np.asarray(h_new), np.asarray(h_ref),
                               rtol=1e-2, atol=1e-2)
    np.testing.assert_allclose(np.asarray(c_dec), np.asarray(c_ref),
                               rtol=1e-2, atol=1e-2)
    np.testing.assert_allclose(np.asarray(m_dec), np.asarray(m_ref),
                               rtol=1e-2, atol=1e-2)

    print("KERNEL_OK")
</pallas_src>

<mosaic_0001>
module attributes {stable_mosaic.version = 11 : i64} {
  func.func @kernel(%arg0: i32, %arg1: memref<1x256x356xbf16, #tpu.memory_space<vmem>>, %arg2: memref<1x256x64xf32, #tpu.memory_space<vmem>>, %arg3: memref<356x256xbf16, #tpu.memory_space<vmem>>, %arg4: memref<1x256xf32, #tpu.memory_space<vmem>>, %arg5: memref<64x64xbf16, #tpu.memory_space<vmem>>, %arg6: memref<1x64xf32, #tpu.memory_space<vmem>>, %arg7: memref<1x256x96xf32, #tpu.memory_space<vmem>>) attributes {dimension_semantics = [#tpu.dimension_semantics<parallel>], iteration_bounds = array<i64: 2>, scalar_prefetch = 0 : i64, scratch_operands = 0 : i64, tpu.core_type = #tpu.core_type<tc>, window_params = [{transform_indices = @transform_0, window_bounds = array<i64: 1, 256, 356>}, {transform_indices = @transform_1, window_bounds = array<i64: 1, 256, 64>}, {pipeline_mode = #tpu.pipeline_mode<synchronous>, transform_indices = @transform_2, window_bounds = array<i64: 356, 256>}, {pipeline_mode = #tpu.pipeline_mode<synchronous>, transform_indices = @transform_3, window_bounds = array<i64: 1, 256>}, {pipeline_mode = #tpu.pipeline_mode<synchronous>, transform_indices = @transform_4, window_bounds = array<i64: 64, 64>}, {pipeline_mode = #tpu.pipeline_mode<synchronous>, transform_indices = @transform_5, window_bounds = array<i64: 1, 64>}, {transform_indices = @transform_6, window_bounds = array<i64: 1, 256, 96>}]} {
    %c0 = arith.constant 0 : index
    %c0_0 = arith.constant 0 : index
    %c0_1 = arith.constant 0 : index
    %0 = vector.load %arg1[%c0, %c0_0, %c0_1] : memref<1x256x356xbf16, #tpu.memory_space<vmem>>, vector<1x256x356xbf16>
    %1 = vector.shape_cast %0 : vector<1x256x356xbf16> to vector<256x356xbf16>
    %c0_2 = arith.constant 0 : index
    %c0_3 = arith.constant 0 : index
    %2 = vector.load %arg3[%c0_2, %c0_3] : memref<356x256xbf16, #tpu.memory_space<vmem>>, vector<356x256xbf16>
    %cst = arith.constant dense<0.000000e+00> : vector<256x256xf32>
    %3 = tpu.matmul %1, %2, %cst {dimension_numbers = #tpu.dot_dimension_numbers<[1], [0], [0], [1], [0, 0, 1, 1], [], []>} : vector<256x356xbf16>, vector<356x256xbf16>, vector<256x256xf32> -> vector<256x256xf32>
    %c0_4 = arith.constant 0 : index
    %c0_5 = arith.constant 0 : index
    %4 = vector.load %arg4[%c0_4, %c0_5] : memref<1x256xf32, #tpu.memory_space<vmem>>, vector<1x256xf32>
    %5 = vector.broadcast %4 : vector<1x256xf32> to vector<256x256xf32>
    %6 = arith.addf %3, %5 : vector<256x256xf32>
    %7 = vector.extract_strided_slice %6 {offsets = [0, 0], sizes = [256, 192], strides = [1, 1]} : vector<256x256xf32> to vector<256x192xf32>
    %8 = arith.negf %7 : vector<256x192xf32>
    %9 = math.exp %8 : vector<256x192xf32>
    %cst_6 = arith.constant 1.000000e+00 : f32
    %10 = vector.broadcast %cst_6 : f32 to vector<256x192xf32>
    %11 = arith.addf %10, %9 : vector<256x192xf32>
    %12 = arith.divf %10, %11 : vector<256x192xf32>
    %13 = vector.extract_strided_slice %6 {offsets = [0, 192], sizes = [256, 64], strides = [1, 1]} : vector<256x256xf32> to vector<256x64xf32>
    %14 = math.tanh %13 : vector<256x64xf32>
    %c0_7 = arith.constant 0 : index
    %c0_8 = arith.constant 0 : index
    %c0_9 = arith.constant 0 : index
    %15 = vector.load %arg2[%c0_7, %c0_8, %c0_9] : memref<1x256x64xf32, #tpu.memory_space<vmem>>, vector<1x256x64xf32>
    %16 = vector.shape_cast %15 : vector<1x256x64xf32> to vector<256x64xf32>
    %17 = vector.extract_strided_slice %16 {offsets = [0, 0], sizes = [256, 32], strides = [1, 1]} : vector<256x64xf32> to vector<256x32xf32>
    %18 = vector.extract_strided_slice %16 {offsets = [0, 32], sizes = [256, 32], strides = [1, 1]} : vector<256x64xf32> to vector<256x32xf32>
    %19 = vector.extract_strided_slice %12 {offsets = [0, 32], sizes = [256, 32], strides = [1, 1]} : vector<256x192xf32> to vector<256x32xf32>
    %20 = arith.mulf %19, %17 : vector<256x32xf32>
    %21 = vector.extract_strided_slice %12 {offsets = [0, 0], sizes = [256, 32], strides = [1, 1]} : vector<256x192xf32> to vector<256x32xf32>
    %22 = vector.extract_strided_slice %14 {offsets = [0, 0], sizes = [256, 32], strides = [1, 1]} : vector<256x64xf32> to vector<256x32xf32>
    %23 = arith.mulf %21, %22 : vector<256x32xf32>
    %24 = arith.addf %20, %23 : vector<256x32xf32>
    %25 = vector.extract_strided_slice %12 {offsets = [0, 128], sizes = [256, 32], strides = [1, 1]} : vector<256x192xf32> to vector<256x32xf32>
    %26 = arith.mulf %25, %18 : vector<256x32xf32>
    %27 = vector.extract_strided_slice %12 {offsets = [0, 96], sizes = [256, 32], strides = [1, 1]} : vector<256x192xf32> to vector<256x32xf32>
    %28 = vector.extract_strided_slice %14 {offsets = [0, 32], sizes = [256, 32], strides = [1, 1]} : vector<256x64xf32> to vector<256x32xf32>
    %29 = arith.mulf %27, %28 : vector<256x32xf32>
    %30 = arith.addf %26, %29 : vector<256x32xf32>
    %31 = tpu.concatenate %24, %30 in 1 : vector<256x32xf32>, vector<256x32xf32> -> vector<256x64xf32>
    %32 = math.tanh %31 : vector<256x64xf32>
    %33 = vector.extract_strided_slice %12 {offsets = [0, 64], sizes = [256, 32], strides = [1, 1]} : vector<256x192xf32> to vector<256x32xf32>
    %34 = vector.extract_strided_slice %32 {offsets = [0, 0], sizes = [256, 32], strides = [1, 1]} : vector<256x64xf32> to vector<256x32xf32>
    %35 = arith.mulf %33, %34 : vector<256x32xf32>
    %36 = vector.extract_strided_slice %12 {offsets = [0, 160], sizes = [256, 32], strides = [1, 1]} : vector<256x192xf32> to vector<256x32xf32>
    %37 = vector.extract_strided_slice %32 {offsets = [0, 32], sizes = [256, 32], strides = [1, 1]} : vector<256x64xf32> to vector<256x32xf32>
    %38 = arith.mulf %36, %37 : vector<256x32xf32>
    %39 = arith.addf %35, %38 : vector<256x32xf32>
    %40 = arith.truncf %31 : vector<256x64xf32> to vector<256x64xbf16>
    %c0_10 = arith.constant 0 : index
    %c0_11 = arith.constant 0 : index
    %41 = vector.load %arg5[%c0_10, %c0_11] : memref<64x64xbf16, #tpu.memory_space<vmem>>, vector<64x64xbf16>
    %cst_12 = arith.constant dense<0.000000e+00> : vector<256x64xf32>
    %42 = tpu.matmul %40, %41, %cst_12 {dimension_numbers = #tpu.dot_dimension_numbers<[1], [0], [0], [1], [0, 0, 1, 1], [], []>} : vector<256x64xbf16>, vector<64x64xbf16>, vector<256x64xf32> -> vector<256x64xf32>
    %c0_13 = arith.constant 0 : index
    %c0_14 = arith.constant 0 : index
    %43 = vector.load %arg6[%c0_13, %c0_14] : memref<1x64xf32, #tpu.memory_space<vmem>>, vector<1x64xf32>
    %44 = vector.broadcast %43 : vector<1x64xf32> to vector<256x64xf32>
    %45 = arith.addf %42, %44 : vector<256x64xf32>
    %46 = tpu.concatenate %39, %45 in 1 : vector<256x32xf32>, vector<256x64xf32> -> vector<256x96xf32>
    %c0_15 = arith.constant 0 : index
    %c0_16 = arith.constant 0 : index
    %c0_17 = arith.constant 0 : index
    %47 = vector.load %arg7[%c0_15, %c0_16, %c0_17] : memref<1x256x96xf32, #tpu.memory_space<vmem>>, vector<1x256x96xf32>
    %48 = vector.shape_cast %47 : vector<1x256x96xf32> to vector<256x96xf32>
    %49 = vector.shape_cast %46 : vector<256x96xf32> to vector<1x256x96xf32>
    tpu.vector_store %arg7[%c0_15, %c0_16, %c0_17], %49 {strides = array<i32>} : memref<1x256x96xf32, #tpu.memory_space<vmem>>, vector<1x256x96xf32>,
    return
  }
  func.func @transform_0(%arg0: i32) -> (i32, i32, i32) {
    %c0_i32 = arith.constant 0 : i32
    %c0_i32_0 = arith.constant 0 : i32
    %c0_i32_1 = arith.constant 0 : i32
    return %arg0, %c0_i32, %c0_i32_0 : i32, i32, i32
  }
  func.func @transform_1(%arg0: i32) -> (i32, i32, i32) {
    %c0_i32 = arith.constant 0 : i32
    %c0_i32_0 = arith.constant 0 : i32
    %c0_i32_1 = arith.constant 0 : i32
    return %arg0, %c0_i32, %c0_i32_0 : i32, i32, i32
  }
  func.func @transform_2(%arg0: i32) -> (i32, i32) {
    %c0_i32 = arith.constant 0 : i32
    %c0_i32_0 = arith.constant 0 : i32
    %c0_i32_1 = arith.constant 0 : i32
    return %c0_i32, %c0_i32_0 : i32, i32
  }
  func.func @transform_3(%arg0: i32) -> (i32, i32) {
    %c0_i32 = arith.constant 0 : i32
    %c0_i32_0 = arith.constant 0 : i32
    %c0_i32_1 = arith.constant 0 : i32
    return %c0_i32, %c0_i32_0 : i32, i32
  }
  func.func @transform_4(%arg0: i32) -> (i32, i32) {
    %c0_i32 = arith.constant 0 : i32
    %c0_i32_0 = arith.constant 0 : i32
    %c0_i32_1 = arith.constant 0 : i32
    return %c0_i32, %c0_i32_0 : i32, i32
  }
  func.func @transform_5(%arg0: i32) -> (i32, i32) {
    %c0_i32 = arith.constant 0 : i32
    %c0_i32_0 = arith.constant 0 : i32
    %c0_i32_1 = arith.constant 0 : i32
    return %c0_i32, %c0_i32_0 : i32, i32
  }
  func.func @transform_6(%arg0: i32) -> (i32, i32, i32) {
    %c0_i32 = arith.constant 0 : i32
    %c0_i32_0 = arith.constant 0 : i32
    %c0_i32_1 = arith.constant 0 : i32
    return %arg0, %c0_i32, %c0_i32_0 : i32, i32, i32
  }
}

</mosaic_0001>

<llo_original>
// kernel: spatiotemporal_lstm_cell.1
$region0: #{spatiotemporal_lstm_cell.1}
  #allocation0 [shape = 'u32[]', space=smem, size = 0x4, offset = 0x4, fixed_abs, tag = 'smem constant byte address 0x4 - core index']
  #allocation1 [shape = 'u32[72,128]{1,0:T(1,128)}', space=vmem, size = 0x9000, scoped, tag = 'internal scratch']
  %s0 = inlined_call_operand.vmem [shape: bf16[2,256,356], index: 0, kind: input, shape index: {}]
  %s1 = inlined_call_operand.vmem [shape: f32[2,256,64], index: 1, kind: input, shape index: {}]
  %s2 = inlined_call_operand.vmem [shape: bf16[356,256], index: 2, kind: input, shape index: {}]
  %s3 = inlined_call_operand.vmem [shape: f32[1,256], index: 3, kind: input, shape index: {}]
  %s4 = inlined_call_operand.vmem [shape: bf16[64,64], index: 4, kind: input, shape index: {}]
  %s5 = inlined_call_operand.vmem [shape: f32[1,64], index: 5, kind: input, shape index: {}]
  %s6 = inlined_call_operand.vmem [shape: f32[2,256,96], index: 6, kind: output, shape index: {}]
  %s7 = sld [smem:[#allocation0]]
  $region57: #{spatiotemporal_lstm_cell.1} parent=0
    _
  %s9 = ssub.s32 1, %s7
  %s10 = scalar_select 0, %s9, %s7
  loop: start=0, step=1, limit=4
  $region2: #{spatiotemporal_lstm_cell.1} parent=0 // loop_pre_header
    _
  $region3: #{spatiotemporal_lstm_cell.1} parent=0 // loop_header
    %s12 = sphi 0, %s16
    %p13 = scmp.ge.s32.totalorder %s12, 4
    %s22 = sphi 0, %s24
    %s25 = sphi 0, %s22
    %s26 = sphi 0, %s25
    %s42 = sphi 0, %s26
    %s48 = sphi 0, %s50
    %s51 = sphi 0, %s48
    %s52 = sphi 0, %s51
    %s68 = sphi 0, %s52
    %s72 = sphi 0, %s72
    %s74 = sphi 0, %s72
    %s75 = sphi 0, %s74
    %s89 = sphi 0, %s75
    %s93 = sphi 0, %s93
    %s95 = sphi 0, %s93
    %s96 = sphi 0, %s95
    %s110 = sphi 0, %s96
    %s114 = sphi 0, %s114
    %s116 = sphi 0, %s114
    %s117 = sphi 0, %s116
    %s131 = sphi 0, %s117
    %s135 = sphi 0, %s135
    %s137 = sphi 0, %s135
    %s138 = sphi 0, %s137
    %s152 = sphi 0, %s138
    %s158 = sphi 0, %s160
    %s161 = sphi 0, %s158
    %s162 = sphi 0, %s161
    %s178 = sphi 0, %s162
  $region4: #{spatiotemporal_lstm_cell.1} parent=0 // loop_header_branch
    %15 = sbr.rel (%p13) target = $region8
  $region5: #{spatiotemporal_lstm_cell.1} parent=0 // loop_body
    %s17 = ssub.s32 %s12, 1
    %s18 = ssub.s32 %s12, 2
    %s19 = sadd.s32 %s12, 1
    %s20 = ssub.s32 %s12, %s19
    %p21 = scmp.eq.s32.totalorder %s20, 0
    %s23 = sadd.s32 %s22, 1
    %s24 = scalar_select %p21, %s22, %s23
    %p27 = pneg %p21
    %p28 = scmp.eq.s32.totalorder %s12, 1
    %p29 = por %p27, %p28
    %p30 = scmp.ne.s32.totalorder %s22, %s25
    %p31 = scmp.eq.s32.totalorder %s12, 0
    %p32 = por %p30, %p31
    %p33 = scmp.ne.s32.totalorder %s22, %s25
    %p34 = scmp.eq.s32.totalorder %s17, 1
    %p35 = por %p33, %p34
    %p36 = scmp.ne.s32.totalorder %s25, %s26
    %p37 = scmp.eq.s32.totalorder %s17, 0
    %p38 = por %p36, %p37
    %p39 = scmp.ne.s32.totalorder %s25, %s26
    %p40 = scmp.eq.s32.totalorder %s18, 1
    %p41 = por %p39, %p40
    %p43 = scmp.ne.s32.totalorder %s26, %s42
    %p44 = scmp.eq.s32.totalorder %s18, 0
    %p45 = por %p43, %p44
    %s46 = ssub.s32 %s12, %s19
    %p47 = scmp.eq.s32.totalorder %s46, 0
    %s49 = sadd.s32 %s48, 1
    %s50 = scalar_select %p47, %s48, %s49
    %p53 = pneg %p47
    %p54 = scmp.eq.s32.totalorder %s12, 1
    %p55 = por %p53, %p54
    %p56 = scmp.ne.s32.totalorder %s48, %s51
    %p57 = scmp.eq.s32.totalorder %s12, 0
    %p58 = por %p56, %p57
    %p59 = scmp.ne.s32.totalorder %s48, %s51
    %p60 = scmp.eq.s32.totalorder %s17, 1
    %p61 = por %p59, %p60
    %p62 = scmp.ne.s32.totalorder %s51, %s52
    %p63 = scmp.eq.s32.totalorder %s17, 0
    %p64 = por %p62, %p63
    %p65 = scmp.ne.s32.totalorder %s51, %s52
    %p66 = scmp.eq.s32.totalorder %s18, 1
    %p67 = por %p65, %p66
    %p69 = scmp.ne.s32.totalorder %s52, %s68
    %p70 = scmp.eq.s32.totalorder %s18, 0
    %p71 = por %p69, %p70
    %s73 = sadd.s32 %s72, 1
    %p76 = scmp.eq.s32.totalorder %s12, 1
    %p77 = scmp.ne.s32.totalorder %s72, %s74
    %p78 = scmp.eq.s32.totalorder %s12, 0
    %p79 = por %p77, %p78
    %p80 = scmp.ne.s32.totalorder %s72, %s74
    %p81 = scmp.eq.s32.totalorder %s17, 1
    %p82 = por %p80, %p81
    %p83 = scmp.ne.s32.totalorder %s74, %s75
    %p84 = scmp.eq.s32.totalorder %s17, 0
    %p85 = por %p83, %p84
    %p86 = scmp.ne.s32.totalorder %s74, %s75
    %p87 = scmp.eq.s32.totalorder %s18, 1
    %p88 = por %p86, %p87
    %p90 = scmp.ne.s32.totalorder %s75, %s89
    %p91 = scmp.eq.s32.totalorder %s18, 0
    %p92 = por %p90, %p91
    %s94 = sadd.s32 %s93, 1
    %p97 = scmp.eq.s32.totalorder %s12, 1
    %p98 = scmp.ne.s32.totalorder %s93, %s95
    %p99 = scmp.eq.s32.totalorder %s12, 0
    %p100 = por %p98, %p99
    %p101 = scmp.ne.s32.totalorder %s93, %s95
    %p102 = scmp.eq.s32.totalorder %s17, 1
    %p103 = por %p101, %p102
    %p104 = scmp.ne.s32.totalorder %s95, %s96
    %p105 = scmp.eq.s32.totalorder %s17, 0
    %p106 = por %p104, %p105
    %p107 = scmp.ne.s32.totalorder %s95, %s96
    %p108 = scmp.eq.s32.totalorder %s18, 1
    %p109 = por %p107, %p108
    %p111 = scmp.ne.s32.totalorder %s96, %s110
    %p112 = scmp.eq.s32.totalorder %s18, 0
    %p113 = por %p111, %p112
    %s115 = sadd.s32 %s114, 1
    %p118 = scmp.eq.s32.totalorder %s12, 1
    %p119 = scmp.ne.s32.totalorder %s114, %s116
    %p120 = scmp.eq.s32.totalorder %s12, 0
    %p121 = por %p119, %p120
    %p122 = scmp.ne.s32.totalorder %s114, %s116
    %p123 = scmp.eq.s32.totalorder %s17, 1
    %p124 = por %p122, %p123
    %p125 = scmp.ne.s32.totalorder %s116, %s117
    %p126 = scmp.eq.s32.totalorder %s17, 0
    %p127 = por %p125, %p126
    %p128 = scmp.ne.s32.totalorder %s116, %s117
    %p129 = scmp.eq.s32.totalorder %s18, 1
    %p130 = por %p128, %p129
    %p132 = scmp.ne.s32.totalorder %s117, %s131
    %p133 = scmp.eq.s32.totalorder %s18, 0
    %p134 = por %p132, %p133
    %s136 = sadd.s32 %s135, 1
    %p139 = scmp.eq.s32.totalorder %s12, 1
    %p140 = scmp.ne.s32.totalorder %s135, %s137
    %p141 = scmp.eq.s32.totalorder %s12, 0
    %p142 = por %p140, %p141
    %p143 = scmp.ne.s32.totalorder %s135, %s137
    %p144 = scmp.eq.s32.totalorder %s17, 1
    %p145 = por %p143, %p144
    %p146 = scmp.ne.s32.totalorder %s137, %s138
    %p147 = scmp.eq.s32.totalorder %s17, 0
    %p148 = por %p146, %p147
    %p149 = scmp.ne.s32.totalorder %s137, %s138
    %p150 = scmp.eq.s32.totalorder %s18, 1
    %p151 = por %p149, %p150
    %p153 = scmp.ne.s32.totalorder %s138, %s152
    %p154 = scmp.eq.s32.totalorder %s18, 0
    %p155 = por %p153, %p154
    %s156 = ssub.s32 %s12, %s19
    %p157 = scmp.eq.s32.totalorder %s156, 0
    %s159 = sadd.s32 %s158, 1
    %s160 = scalar_select %p157, %s158, %s159
    %p163 = pneg %p157
    %p164 = scmp.eq.s32.totalorder %s12, 1
    %p165 = por %p163, %p164
    %p166 = scmp.ne.s32.totalorder %s158, %s161
    %p167 = scmp.eq.s32.totalorder %s12, 0
    %p168 = por %p166, %p167
    %p169 = scmp.ne.s32.totalorder %s158, %s161
    %p170 = scmp.eq.s32.totalorder %s17, 1
    %p171 = por %p169, %p170
    %p172 = scmp.ne.s32.totalorder %s161, %s162
    %p173 = scmp.eq.s32.totalorder %s17, 0
    %p174 = por %p172, %p173
    %p175 = scmp.ne.s32.totalorder %s161, %s162
    %p176 = scmp.eq.s32.totalorder %s18, 1
    %p177 = por %p175, %p176
    %p179 = scmp.ne.s32.totalorder %s162, %s178
    %p180 = scmp.eq.s32.totalorder %s18, 0
    %p181 = por %p179, %p180
    %p182 = scmp.le.s32.totalorder 1, %s12
    %p183 = scmp.lt.s32.totalorder %s12, 3
    %p184 = pnand %p182, %p183
    %p185 = pneg %p184
    // Predicated region
    $region9: #{spatiotemporal_lstm_cell.1} parent=5 // pred_check
      _
    $region10: #{spatiotemporal_lstm_cell.1} parent=5 // pred_check_branch
      %187 = sbr.rel (%p184) target = $region12
    $region11: #{spatiotemporal_lstm_cell.1} parent=5 // pred_region
      %s188 = ssub.s32 %s12, 1
      // Predicated region
      $region13: #{spatiotemporal_lstm_cell.1} parent=11 // pred_check
        %p189 = pneg %p85
      $region14: #{spatiotemporal_lstm_cell.1} parent=11 // pred_check_branch
        %191 = sbr.rel (%p189) target = $region16
      $region15: #{spatiotemporal_lstm_cell.1} parent=11 // pred_region
        _
      $region16: #{spatiotemporal_lstm_cell.1} parent=11 // pred_fallthru
        _
      // Predicated region
      $region17: #{spatiotemporal_lstm_cell.1} parent=11 // pred_check
        %p192 = pneg %p106
      $region18: #{spatiotemporal_lstm_cell.1} parent=11 // pred_check_branch
        %194 = sbr.rel (%p192) target = $region20
      $region19: #{spatiotemporal_lstm_cell.1} parent=11 // pred_region
        _
      $region20: #{spatiotemporal_lstm_cell.1} parent=11 // pred_fallthru
        _
      // Predicated region
      $region21: #{spatiotemporal_lstm_cell.1} parent=11 // pred_check
        %p195 = pneg %p127
      $region22: #{spatiotemporal_lstm_cell.1} parent=11 // pred_check_branch
        %197 = sbr.rel (%p195) target = $region24
      $region23: #{spatiotemporal_lstm_cell.1} parent=11 // pred_region
        _
      $region24: #{spatiotemporal_lstm_cell.1} parent=11 // pred_fallthru
        _
      // Predicated region
      $region25: #{spatiotemporal_lstm_cell.1} parent=11 // pred_check
        %p198 = pneg %p148
      $region26: #{spatiotemporal_lstm_cell.1} parent=11 // pred_check_branch
        %200 = sbr.rel (%p198) target = $region28
      $region27: #{spatiotemporal_lstm_cell.1} parent=11 // pred_region
        _
      $region28: #{spatiotemporal_lstm_cell.1} parent=11 // pred_fallthru
        _
    $region12: #{spatiotemporal_lstm_cell.1} parent=5 // pred_fallthru
      _
    %p201 = scmp.lt.s32.totalorder %s12, 2
    // Predicated region
    $region29: #{spatiotemporal_lstm_cell.1} parent=5 // pred_check
      %p202 = pneg %p201
    $region30: #{spatiotemporal_lstm_cell.1} parent=5 // pred_check_branch
      %204 = sbr.rel (%p202) target = $region32
    $region31: #{spatiotemporal_lstm_cell.1} parent=5 // pred_region
      // Predicated region
      $region33: #{spatiotemporal_lstm_cell.1} parent=31 // pred_check
        %p205 = pneg %p32
      $region34: #{spatiotemporal_lstm_cell.1} parent=31 // pred_check_branch
        %207 = sbr.rel (%p205) target = $region36
      $region35: #{spatiotemporal_lstm_cell.1} parent=31 // pred_region
        %p208 = scmp.lt.s32.totalorder %s12, 1
        %s209 = scalar_select %p208, %s12, 1
        %s210 = smul.addr %s209, 96
        %s211 = smul.addr %s210, 4
        %s212 = scalar_lea.vmem %s0, %s211
      $region36: #{spatiotemporal_lstm_cell.1} parent=31 // pred_fallthru
        _
      // Predicated region
      $region37: #{spatiotemporal_lstm_cell.1} parent=31 // pred_check
        %p213 = pneg %p58
      $region38: #{spatiotemporal_lstm_cell.1} parent=31 // pred_check_branch
        %215 = sbr.rel (%p213) target = $region40
      $region39: #{spatiotemporal_lstm_cell.1} parent=31 // pred_region
        %p216 = scmp.lt.s32.totalorder %s12, 1
        %s217 = scalar_select %p216, %s12, 1
        %s218 = smul.addr %s217, 32
        %s219 = smul.addr %s218, 8
        %s220 = scalar_lea.vmem %s1, %s219
      $region40: #{spatiotemporal_lstm_cell.1} parent=31 // pred_fallthru
        _
    $region32: #{spatiotemporal_lstm_cell.1} parent=5 // pred_fallthru
      _
    %p221 = scmp.le.s32.totalorder 1, %s12
    %p222 = scmp.lt.s32.totalorder %s12, 3
    %p223 = pnand %p221, %p222
    %p224 = pneg %p223
    // Predicated region
    $region41: #{spatiotemporal_lstm_cell.1} parent=5 // pred_check
      _
    $region42: #{spatiotemporal_lstm_cell.1} parent=5 // pred_check_branch
      %226 = sbr.rel (%p223) target = $region44
    $region43: #{spatiotemporal_lstm_cell.1} parent=5 // pred_region
      %s227 = ssub.s32 %s12, 1
      %p228 = scmp.lt.s32.totalorder %s17, 1
      %s229 = scalar_select %p228, %s17, 1
      %s230 = smul.addr %s229, 96
      %s231 = smul.addr %s230, 4
      %s232 = scalar_lea.vmem %s0, %s231
      %p233 = pneg %p38
      %p234 = pneg %p35
      %p235 = scmp.lt.s32.totalorder %s17, 1
      %s236 = scalar_select %p235, %s17, 1
      %s237 = smul.addr %s236, 32
      %s238 = smul.addr %s237, 8
      %s239 = scalar_lea.vmem %s1, %s238
      %p240 = pneg %p64
      %p241 = pneg %p61
      %p242 = pneg %p85
      %p243 = pneg %p82
      %p244 = pneg %p106
      %p245 = pneg %p103
      %p246 = pneg %p127
      %p247 = pneg %p124
      %p248 = pneg %p148
      %p249 = pneg %p145
      %p250 = pneg %p174
      %p251 = pneg %p171
      %p252 = scmp.lt.s32.totalorder %s17, 1
      %s253 = scalar_select %p252, %s17, 1
      %s254 = smul.addr %s253, 32
      %s255 = smul.addr %s254, 8
      %s256 = scalar_lea.vmem %s6, %s255
      %p257 = scmp.lt.s32.totalorder %s17, 1
      %s258 = scalar_select %p257, %s17, 1
      %s259 = smul.addr %s258, 96
      %s260 = smul.addr %s259, 4
      %s261 = scalar_lea.vmem %s0, %s260
      %p262 = scmp.lt.s32.totalorder %s17, 1
      %s263 = scalar_select %p262, %s17, 1
      %s264 = smul.addr %s263, 32
      %s265 = smul.addr %s264, 8
      %s266 = scalar_lea.vmem %s1, %s265
      %p267 = scmp.lt.s32.totalorder %s17, 1
      %s268 = scalar_select %p267, %s17, 1
      %s269 = smul.addr %s268, 32
      %s270 = smul.addr %s269, 8
      %s271 = scalar_lea.vmem %s6, %s270
      %v273 = vld [vmem:[%s261] sm:$0xff]
      %v274 = vld [vmem:[%s261 + $0x8] sm:$0xf]
      %v275 = vld [vmem:[%s261 + $0xc] sm:$0xff]
      %v276 = vld [vmem:[%s261 + $0x14] sm:$0xf]
      %v277 = vld [vmem:[%s261 + $0x18] sm:$0xff]
      %v278 = vld [vmem:[%s261 + $0x20] sm:$0xf]
      %v279 = vld [vmem:[%s261 + $0x24] sm:$0xff]
      %v280 = vld [vmem:[%s261 + $0x2c] sm:$0xf]
      %v281 = vld [vmem:[%s261 + $0x30] sm:$0xff]
      %v282 = vld [vmem:[%s261 + $0x38] sm:$0xf]
      %v283 = vld [vmem:[%s261 + $0x3c] sm:$0xff]
      %v284 = vld [vmem:[%s261 + $0x44] sm:$0xf]
      %v285 = vld [vmem:[%s261 + $0x48] sm:$0xff]
      %v286 = vld [vmem:[%s261 + $0x50] sm:$0xf]
      %v287 = vld [vmem:[%s261 + $0x54] sm:$0xff]
      %v288 = vld [vmem:[%s261 + $0x5c] sm:$0xf]
      %v289 = vld [vmem:[%s261 + $0x60] sm:$0xff]
      %v290 = vld [vmem:[%s261 + $0x68] sm:$0xf]
      %v291 = vld [vmem:[%s261 + $0x6c] sm:$0xff]
      %v292 = vld [vmem:[%s261 + $0x74] sm:$0xf]
      %v293 = vld [vmem:[%s261 + $0x78] sm:$0xff]
      %v294 = vld [vmem:[%s261 + $0x80] sm:$0xf]
      %v295 = vld [vmem:[%s261 + $0x84] sm:$0xff]
      %v296 = vld [vmem:[%s261 + $0x8c] sm:$0xf]
      %v297 = vld [vmem:[%s261 + $0x90] sm:$0xff]
      %v298 = vld [vmem:[%s261 + $0x98] sm:$0xf]
      %v299 = vld [vmem:[%s261 + $0x9c] sm:$0xff]
      %v300 = vld [vmem:[%s261 + $0xa4] sm:$0xf]
      %v301 = vld [vmem:[%s261 + $0xa8] sm:$0xff]
      %v302 = vld [vmem:[%s261 + $0xb0] sm:$0xf]
      %v303 = vld [vmem:[%s261 + $0xb4] sm:$0xff]
      %v304 = vld [vmem:[%s261 + $0xbc] sm:$0xf]
      %v305 = vld [vmem:[%s261 + $0xc0] sm:$0xff]
      %v306 = vld [vmem:[%s261 + $0xc8] sm:$0xf]
      %v307 = vld [vmem:[%s261 + $0xcc] sm:$0xff]
      %v308 = vld [vmem:[%s261 + $0xd4] sm:$0xf]
      %v309 = vld [vmem:[%s261 + $0xd8] sm:$0xff]
      %v310 = vld [vmem:[%s261 + $0xe0] sm:$0xf]
      %v311 = vld [vmem:[%s261 + $0xe4] sm:$0xff]
      %v312 = vld [vmem:[%s261 + $0xec] sm:$0xf]
      %v313 = vld [vmem:[%s261 + $0xf0] sm:$0xff]
      %v314 = vld [vmem:[%s261 + $0xf8] sm:$0xf]
      %v315 = vld [vmem:[%s261 + $0xfc] sm:$0xff]
      %v316 = vld [vmem:[%s261 + $0x104] sm:$0xf]
      %v317 = vld [vmem:[%s261 + $0x108] sm:$0xff]
      %v318 = vld [vmem:[%s261 + $0x110] sm:$0xf]
      %v319 = vld [vmem:[%s261 + $0x114] sm:$0xff]
      %v320 = vld [vmem:[%s261 + $0x11c] sm:$0xf]
      %v321 = vld [vmem:[%s261 + $0x120] sm:$0xff]
      %v322 = vld [vmem:[%s261 + $0x128] sm:$0xf]
      %v323 = vld [vmem:[%s261 + $0x12c] sm:$0xff]
      %v324 = vld [vmem:[%s261 + $0x134] sm:$0xf]
      %v325 = vld [vmem:[%s261 + $0x138] sm:$0xff]
      %v326 = vld [vmem:[%s261 + $0x140] sm:$0xf]
      %v327 = vld [vmem:[%s261 + $0x144] sm:$0xff]
      %v328 = vld [vmem:[%s261 + $0x14c] sm:$0xf]
      %v329 = vld [vmem:[%s261 + $0x150] sm:$0xff]
      %v330 = vld [vmem:[%s261 + $0x158] sm:$0xf]
      %v331 = vld [vmem:[%s261 + $0x15c] sm:$0xff]
      %v332 = vld [vmem:[%s261 + $0x164] sm:$0xf]
      %v333 = vld [vmem:[%s261 + $0x168] sm:$0xff]
      %v334 = vld [vmem:[%s261 + $0x170] sm:$0xf]
      %v335 = vld [vmem:[%s261 + $0x174] sm:$0xff]
      %v336 = vld [vmem:[%s261 + $0x17c] sm:$0xf]
      %v337 = vld [vmem:[%s2] sm:$0xff]
      %v338 = vld [vmem:[%s2 + $0x8] sm:$0xff]
      %v339 = vld [vmem:[%s2 + $0x10] sm:$0xff]
      %v340 = vld [vmem:[%s2 + $0x18] sm:$0xff]
      %v341 = vld [vmem:[%s2 + $0x20] sm:$0xff]
      %v342 = vld [vmem:[%s2 + $0x28] sm:$0xff]
      %v343 = vld [vmem:[%s2 + $0x30] sm:$0xff]
      %v344 = vld [vmem:[%s2 + $0x38] sm:$0xff]
      %v345 = vld [vmem:[%s2 + $0x40] sm:$0xff]
      %v346 = vld [vmem:[%s2 + $0x48] sm:$0xff]
      %v347 = vld [vmem:[%s2 + $0x50] sm:$0xff]
      %v348 = vld [vmem:[%s2 + $0x58] sm:$0xff]
      %v349 = vld [vmem:[%s2 + $0x60] sm:$0xff]
      %v350 = vld [vmem:[%s2 + $0x68] sm:$0xff]
      %v351 = vld [vmem:[%s2 + $0x70] sm:$0xff]
      %v352 = vld [vmem:[%s2 + $0x78] sm:$0xff]
      %v353 = vld [vmem:[%s2 + $0x80] sm:$0xff]
      %v354 = vld [vmem:[%s2 + $0x88] sm:$0xff]
      %v355 = vld [vmem:[%s2 + $0x90] sm:$0xff]
      %v356 = vld [vmem:[%s2 + $0x98] sm:$0xff]
      %v357 = vld [vmem:[%s2 + $0xa0] sm:$0xff]
      %v358 = vld [vmem:[%s2 + $0xa8] sm:$0xff]
      %v359 = vld [vmem:[%s2 + $0xb0] sm:$0xff]
      %v360 = vld [vmem:[%s2 + $0xb8] sm:$0xff]
      %v361 = vld [vmem:[%s2 + $0xc0] sm:$0xff]
      %v362 = vld [vmem:[%s2 + $0xc8] sm:$0xff]
      %v363 = vld [vmem:[%s2 + $0xd0] sm:$0xff]
      %v364 = vld [vmem:[%s2 + $0xd8] sm:$0xff]
      %v365 = vld [vmem:[%s2 + $0xe0] sm:$0xff]
      %v366 = vld [vmem:[%s2 + $0xe8] sm:$0xff]
      %v367 = vld [vmem:[%s2 + $0xf0] sm:$0xff]
      %v368 = vld [vmem:[%s2 + $0xf8] sm:$0xff]
      %v369 = vld [vmem:[%s2 + $0x100] sm:$0xff]
      %v370 = vld [vmem:[%s2 + $0x108] sm:$0xff]
      %v371 = vld [vmem:[%s2 + $0x110] sm:$0xff]
      %v372 = vld [vmem:[%s2 + $0x118] sm:$0xff]
      %v373 = vld [vmem:[%s2 + $0x120] sm:$0xff]
      %v374 = vld [vmem:[%s2 + $0x128] sm:$0xff]
      %v375 = vld [vmem:[%s2 + $0x130] sm:$0xff]
      %v376 = vld [vmem:[%s2 + $0x138] sm:$0xff]
      %v377 = vld [vmem:[%s2 + $0x140] sm:$0xff]
      %v378 = vld [vmem:[%s2 + $0x148] sm:$0xff]
      %v379 = vld [vmem:[%s2 + $0x150] sm:$0xff]
      %v380 = vld [vmem:[%s2 + $0x158] sm:$0xff]
      %v381 = vld [vmem:[%s2 + $0x160] sm:$0x33]
      %v382 = vld [vmem:[%s3] sm:$0x3]
      %v384 = vperm.slane %v382, 0
      %v385 = vperm.slane %v382, 1
      %v452 = vunpack.c.l.b16 %v273
      %v453 = vunpack.c.h.b16 %v273
      %v454 = vunpack.c.l.b16 %v274
      %v455 = vunpack.c.l.b16 %v275
      %v456 = vunpack.c.h.b16 %v275
      %v457 = vunpack.c.l.b16 %v276
      %v458 = vunpack.c.l.b16 %v277
      %v459 = vunpack.c.h.b16 %v277
      %v460 = vunpack.c.l.b16 %v278
      %v461 = vunpack.c.l.b16 %v279
      %v462 = vunpack.c.h.b16 %v279
      %v463 = vunpack.c.l.b16 %v280
      %v464 = vunpack.c.l.b16 %v281
      %v465 = vunpack.c.h.b16 %v281
      %v466 = vunpack.c.l.b16 %v282
      %v467 = vunpack.c.l.b16 %v283
      %v468 = vunpack.c.h.b16 %v283
      %v469 = vunpack.c.l.b16 %v284
      %v470 = vunpack.c.l.b16 %v285
      %v471 = vunpack.c.h.b16 %v285
      %v472 = vunpack.c.l.b16 %v286
      %v473 = vunpack.c.l.b16 %v287
      %v474 = vunpack.c.h.b16 %v287
      %v475 = vunpack.c.l.b16 %v288
      %v476 = vunpack.c.l.b16 %v289
      %v477 = vunpack.c.h.b16 %v289
      %v478 = vunpack.c.l.b16 %v290
      %v479 = vunpack.c.l.b16 %v291
      %v480 = vunpack.c.h.b16 %v291
      %v481 = vunpack.c.l.b16 %v292
      %v482 = vunpack.c.l.b16 %v293
      %v483 = vunpack.c.h.b16 %v293
      %v484 = vunpack.c.l.b16 %v294
      %v485 = vunpack.c.l.b16 %v295
      %v486 = vunpack.c.h.b16 %v295
      %v487 = vunpack.c.l.b16 %v296
      %v488 = vunpack.c.l.b16 %v297
      %v489 = vunpack.c.h.b16 %v297
      %v490 = vunpack.c.l.b16 %v298
      %v491 = vunpack.c.l.b16 %v299
      %v492 = vunpack.c.h.b16 %v299
      %v493 = vunpack.c.l.b16 %v300
      %v494 = vunpack.c.l.b16 %v301
      %v495 = vunpack.c.h.b16 %v301
      %v496 = vunpack.c.l.b16 %v302
      %v497 = vunpack.c.l.b16 %v303
      %v498 = vunpack.c.h.b16 %v303
      %v499 = vunpack.c.l.b16 %v304
      %v500 = vunpack.c.l.b16 %v305
      %v501 = vunpack.c.h.b16 %v305
      %v502 = vunpack.c.l.b16 %v306
      %v503 = vunpack.c.l.b16 %v307
      %v504 = vunpack.c.h.b16 %v307
      %v505 = vunpack.c.l.b16 %v308
      %v506 = vunpack.c.l.b16 %v309
      %v507 = vunpack.c.h.b16 %v309
      %v508 = vunpack.c.l.b16 %v310
      %v509 = vunpack.c.l.b16 %v311
      %v510 = vunpack.c.h.b16 %v311
      %v511 = vunpack.c.l.b16 %v312
      %v512 = vunpack.c.l.b16 %v313
      %v513 = vunpack.c.h.b16 %v313
      %v514 = vunpack.c.l.b16 %v314
      %v515 = vunpack.c.l.b16 %v315
      %v516 = vunpack.c.h.b16 %v315
      %v517 = vunpack.c.l.b16 %v316
      %v518 = vunpack.c.l.b16 %v317
      %v519 = vunpack.c.h.b16 %v317
      %v520 = vunpack.c.l.b16 %v318
      %v521 = vunpack.c.l.b16 %v319
      %v522 = vunpack.c.h.b16 %v319
      %v523 = vunpack.c.l.b16 %v320
      %v524 = vunpack.c.l.b16 %v321
      %v525 = vunpack.c.h.b16 %v321
      %v526 = vunpack.c.l.b16 %v322
      %v527 = vunpack.c.l.b16 %v323
      %v528 = vunpack.c.h.b16 %v323
      %v529 = vunpack.c.l.b16 %v324
      %v530 = vunpack.c.l.b16 %v325
      %v531 = vunpack.c.h.b16 %v325
      %v532 = vunpack.c.l.b16 %v326
      %v533 = vunpack.c.l.b16 %v327
      %v534 = vunpack.c.h.b16 %v327
      %v535 = vunpack.c.l.b16 %v328
      %v536 = vunpack.c.l.b16 %v329
      %v537 = vunpack.c.h.b16 %v329
      %v538 = vunpack.c.l.b16 %v330
      %v539 = vunpack.c.l.b16 %v331
      %v540 = vunpack.c.h.b16 %v331
      %v541 = vunpack.c.l.b16 %v332
      %v542 = vunpack.c.l.b16 %v333
      %v543 = vunpack.c.h.b16 %v333
      %v544 = vunpack.c.l.b16 %v334
      %v545 = vunpack.c.l.b16 %v335
      %v546 = vunpack.c.h.b16 %v335
      %v547 = vunpack.c.l.b16 %v336
      %v548 = vpack.c.b16 %v455, %v452
      %v549 = vpack.c.b16 %v456, %v453
      %v550 = vpack.c.b16 %v457, %v454
      %v551 = vpack.c.b16 %v461, %v458
      %v552 = vpack.c.b16 %v462, %v459
      %v553 = vpack.c.b16 %v463, %v460
      %v554 = vpack.c.b16 %v467, %v464
      %v555 = vpack.c.b16 %v468, %v465
      %v556 = vpack.c.b16 %v469, %v466
      %v557 = vpack.c.b16 %v473, %v470
      %v558 = vpack.c.b16 %v474, %v471
      %v559 = vpack.c.b16 %v475, %v472
      %v560 = vpack.c.b16 %v479, %v476
      %v561 = vpack.c.b16 %v480, %v477
      %v562 = vpack.c.b16 %v481, %v478
      %v563 = vpack.c.b16 %v485, %v482
      %v564 = vpack.c.b16 %v486, %v483
      %v565 = vpack.c.b16 %v487, %v484
      %v566 = vpack.c.b16 %v491, %v488
      %v567 = vpack.c.b16 %v492, %v489
      %v568 = vpack.c.b16 %v493, %v490
      %v569 = vpack.c.b16 %v497, %v494
      %v570 = vpack.c.b16 %v498, %v495
      %v571 = vpack.c.b16 %v499, %v496
      %v572 = vpack.c.b16 %v503, %v500
      %v573 = vpack.c.b16 %v504, %v501
      %v574 = vpack.c.b16 %v505, %v502
      %v575 = vpack.c.b16 %v509, %v506
      %v576 = vpack.c.b16 %v510, %v507
      %v577 = vpack.c.b16 %v511, %v508
      %v578 = vpack.c.b16 %v515, %v512
      %v579 = vpack.c.b16 %v516, %v513
      %v580 = vpack.c.b16 %v517, %v514
      %v581 = vpack.c.b16 %v521, %v518
      %v582 = vpack.c.b16 %v522, %v519
      %v583 = vpack.c.b16 %v523, %v520
      %v584 = vpack.c.b16 %v527, %v524
      %v585 = vpack.c.b16 %v528, %v525
      %v586 = vpack.c.b16 %v529, %v526
      %v587 = vpack.c.b16 %v533, %v530
      %v588 = vpack.c.b16 %v534, %v531
      %v589 = vpack.c.b16 %v535, %v532
      %v590 = vpack.c.b16 %v539, %v536
      %v591 = vpack.c.b16 %v540, %v537
      %v592 = vpack.c.b16 %v541, %v538
      %v593 = vpack.c.b16 %v545, %v542
      %v594 = vpack.c.b16 %v546, %v543
      %v595 = vpack.c.b16 %v547, %v544
      %v673 = vunpack.c.l.b16 %v337
      %v674 = vunpack.c.h.b16 %v337
      %v675 = vunpack.c.l.b16 %v338
      %v676 = vunpack.c.h.b16 %v338
      %v677 = vunpack.c.l.b16 %v339
      %v678 = vunpack.c.h.b16 %v339
      %v679 = vunpack.c.l.b16 %v340
      %v680 = vunpack.c.h.b16 %v340
      %v681 = vunpack.c.l.b16 %v341
      %v682 = vunpack.c.h.b16 %v341
      %v683 = vunpack.c.l.b16 %v342
      %v684 = vunpack.c.h.b16 %v342
      %v685 = vunpack.c.l.b16 %v343
      %v686 = vunpack.c.h.b16 %v343
      %v687 = vunpack.c.l.b16 %v344
      %v688 = vunpack.c.h.b16 %v344
      %v689 = vunpack.c.l.b16 %v345
      %v690 = vunpack.c.h.b16 %v345
      %v691 = vunpack.c.l.b16 %v346
      %v692 = vunpack.c.h.b16 %v346
      %v693 = vunpack.c.l.b16 %v347
      %v694 = vunpack.c.h.b16 %v347
      %v695 = vunpack.c.l.b16 %v348
      %v696 = vunpack.c.h.b16 %v348
      %v697 = vunpack.c.l.b16 %v349
      %v698 = vunpack.c.h.b16 %v349
      %v699 = vunpack.c.l.b16 %v350
      %v700 = vunpack.c.h.b16 %v350
      %v701 = vunpack.c.l.b16 %v351
      %v702 = vunpack.c.h.b16 %v351
      %v703 = vunpack.c.l.b16 %v352
      %v704 = vunpack.c.h.b16 %v352
      %v705 = vunpack.c.l.b16 %v353
      %v706 = vunpack.c.h.b16 %v353
      %v707 = vunpack.c.l.b16 %v354
      %v708 = vunpack.c.h.b16 %v354
      %v709 = vunpack.c.l.b16 %v355
      %v710 = vunpack.c.h.b16 %v355
      %v711 = vunpack.c.l.b16 %v356
      %v712 = vunpack.c.h.b16 %v356
      %v713 = vunpack.c.l.b16 %v357
      %v714 = vunpack.c.h.b16 %v357
      %v715 = vunpack.c.l.b16 %v358
      %v716 = vunpack.c.h.b16 %v358
      %v717 = vunpack.c.l.b16 %v359
      %v718 = vunpack.c.h.b16 %v359
      %v719 = vunpack.c.l.b16 %v360
      %v720 = vunpack.c.h.b16 %v360
      %v721 = vunpack.c.l.b16 %v361
      %v722 = vunpack.c.h.b16 %v361
      %v723 = vunpack.c.l.b16 %v362
      %v724 = vunpack.c.h.b16 %v362
      %v725 = vunpack.c.l.b16 %v363
      %v726 = vunpack.c.h.b16 %v363
      %v727 = vunpack.c.l.b16 %v364
      %v728 = vunpack.c.h.b16 %v364
      %v729 = vunpack.c.l.b16 %v365
      %v730 = vunpack.c.h.b16 %v365
      %v731 = vunpack.c.l.b16 %v366
      %v732 = vunpack.c.h.b16 %v366
      %v733 = vunpack.c.l.b16 %v367
      %v734 = vunpack.c.h.b16 %v367
      %v735 = vunpack.c.l.b16 %v368
      %v736 = vunpack.c.h.b16 %v368
      %v737 = vunpack.c.l.b16 %v369
      %v738 = vunpack.c.h.b16 %v369
      %v739 = vunpack.c.l.b16 %v370
      %v740 = vunpack.c.h.b16 %v370
      %v741 = vunpack.c.l.b16 %v371
      %v742 = vunpack.c.h.b16 %v371
      %v743 = vunpack.c.l.b16 %v372
      %v744 = vunpack.c.h.b16 %v372
      %v745 = vunpack.c.l.b16 %v373
      %v746 = vunpack.c.h.b16 %v373
      %v747 = vunpack.c.l.b16 %v374
      %v748 = vunpack.c.h.b16 %v374
      %v749 = vunpack.c.l.b16 %v375
      %v750 = vunpack.c.h.b16 %v375
      %v751 = vunpack.c.l.b16 %v376
      %v752 = vunpack.c.h.b16 %v376
      %v753 = vunpack.c.l.b16 %v377
      %v754 = vunpack.c.h.b16 %v377
      %v755 = vunpack.c.l.b16 %v378
      %v756 = vunpack.c.h.b16 %v378
      %v757 = vunpack.c.l.b16 %v379
      %v758 = vunpack.c.h.b16 %v379
      %v759 = vunpack.c.l.b16 %v380
      %v760 = vunpack.c.h.b16 %v380
      %v761 = vunpack.c.l.b16 %v381
      %v762 = vunpack.c.h.b16 %v381
      %v763 = vpack.c.b16 %v675, %v673
      %v764 = vpack.c.b16 %v676, %v674
      %v765 = vpack.c.b16 %v679, %v677
      %v766 = vpack.c.b16 %v680, %v678
      %v767 = vpack.c.b16 %v683, %v681
      %v768 = vpack.c.b16 %v684, %v682
      %v769 = vpack.c.b16 %v687, %v685
      %v770 = vpack.c.b16 %v688, %v686
      %v771 = vpack.c.b16 %v691, %v689
      %v772 = vpack.c.b16 %v692, %v690
      %v773 = vpack.c.b16 %v695, %v693
      %v774 = vpack.c.b16 %v696, %v694
      %v775 = vpack.c.b16 %v699, %v697
      %v776 = vpack.c.b16 %v700, %v698
      %v777 = vpack.c.b16 %v703, %v701
      %v778 = vpack.c.b16 %v704, %v702
      %v779 = vpack.c.b16 %v707, %v705
      %v780 = vpack.c.b16 %v708, %v706
      %v781 = vpack.c.b16 %v711, %v709
      %v782 = vpack.c.b16 %v712, %v710
      %v783 = vpack.c.b16 %v715, %v713
      %v784 = vpack.c.b16 %v716, %v714
      %v785 = vpack.c.b16 %v719, %v717
      %v786 = vpack.c.b16 %v720, %v718
      %v787 = vpack.c.b16 %v723, %v721
      %v788 = vpack.c.b16 %v724, %v722
      %v789 = vpack.c.b16 %v727, %v725
      %v790 = vpack.c.b16 %v728, %v726
      %v791 = vpack.c.b16 %v731, %v729
      %v792 = vpack.c.b16 %v732, %v730
      %v793 = vpack.c.b16 %v735, %v733
      %v794 = vpack.c.b16 %v736, %v734
      %v795 = vpack.c.b16 %v739, %v737
      %v796 = vpack.c.b16 %v740, %v738
      %v797 = vpack.c.b16 %v743, %v741
      %v798 = vpack.c.b16 %v744, %v742
      %v799 = vpack.c.b16 %v747, %v745
      %v800 = vpack.c.b16 %v748, %v746
      %v801 = vpack.c.b16 %v751, %v749
      %v802 = vpack.c.b16 %v752, %v750
      %v803 = vpack.c.b16 %v755, %v753
      %v804 = vpack.c.b16 %v756, %v754
      %v805 = vpack.c.b16 %v759, %v757
      %v806 = vpack.c.b16 %v760, %v758
      %v807 = vpack.c.b16 %v761, %v761
      %v808 = vpack.c.b16 %v762, %v762
      %vm853 = vcmask 818176
      %v855 = vsel %vm853, %v550, 0
      %v858 = vsel %vm853, %v553, 0
      %v861 = vsel %vm853, %v556, 0
      %v864 = vsel %vm853, %v559, 0
      %v867 = vsel %vm853, %v562, 0
      %v870 = vsel %vm853, %v565, 0
      %v873 = vsel %vm853, %v568, 0
      %v876 = vsel %vm853, %v571, 0
      %v879 = vsel %vm853, %v574, 0
      %v882 = vsel %vm853, %v577, 0
      %v885 = vsel %vm853, %v580, 0
      %v888 = vsel %vm853, %v583, 0
      %v891 = vsel %vm853, %v586, 0
      %v894 = vsel %vm853, %v589, 0
      %v897 = vsel %vm853, %v592, 0
      %v900 = vsel %vm853, %v595, 0
      %vm902 = vcmask 1041408
      %v904 = vsel %vm902, %v807, 0
      %v907 = vsel %vm902, %v808, 0
      %909 = vmatpush.bf16.msra.mxu0 %v777
      %910 = vmatpush.bf16.msra.mxu0 %v775
      %911 = vmatpush.bf16.msra.mxu0 %v773
      %912 = vmatpush.bf16.msra.mxu0 %v771
      %913 = vmatpush.bf16.msra.mxu0 %v769
      %914 = vmatpush.bf16.msra.mxu0 %v767
      %915 = vmatpush.bf16.msra.mxu0 %v765
      %916 = vmatpush.bf16.msra.mxu0 %v763
      %917 = vmatmul.bf16.gmra.mxu0 %v548
      %v918 = vpop.f32.mrf.mxu0
      %v919 = vadd.f32 %v384, %v918
      %v920 = vpop.f32.mrf.mxu0
      %v921 = vadd.f32 %v384, %v920
      %922 = vmatmul.bf16.gmra.mxu0 %v551
      %v923 = vpop.f32.mrf.mxu0
      %v924 = vadd.f32 %v384, %v923
      %v925 = vpop.f32.mrf.mxu0
      %v926 = vadd.f32 %v384, %v925
      %927 = vmatmul.bf16.gmra.mxu0 %v554
      %v928 = vpop.f32.mrf.mxu0
      %v929 = vadd.f32 %v384, %v928
      %v930 = vpop.f32.mrf.mxu0
      %v931 = vadd.f32 %v384, %v930
      %932 = vmatmul.bf16.gmra.mxu0 %v557
      %v933 = vpop.f32.mrf.mxu0
      %v934 = vadd.f32 %v384, %v933
      %v935 = vpop.f32.mrf.mxu0
      %v936 = vadd.f32 %v384, %v935
      %937 = vmatmul.bf16.gmra.mxu0 %v560
      %v938 = vpop.f32.mrf.mxu0
      %v939 = vadd.f32 %v384, %v938
      %v940 = vpop.f32.mrf.mxu0
      %v941 = vadd.f32 %v384, %v940
      %942 = vmatmul.bf16.gmra.mxu0 %v563
      %v943 = vpop.f32.mrf.mxu0
      %v944 = vadd.f32 %v384, %v943
      %v945 = vpop.f32.mrf.mxu0
      %v946 = vadd.f32 %v384, %v945
      %947 = vmatmul.bf16.gmra.mxu0 %v566
      %v948 = vpop.f32.mrf.mxu0
      %v949 = vadd.f32 %v384, %v948
      %v950 = vpop.f32.mrf.mxu0
      %v951 = vadd.f32 %v384, %v950
      %952 = vmatmul.bf16.gmra.mxu0 %v569
      %v953 = vpop.f32.mrf.mxu0
      %v954 = vadd.f32 %v384, %v953
      %v955 = vpop.f32.mrf.mxu0
      %v956 = vadd.f32 %v384, %v955
      %957 = vmatmul.bf16.gmra.mxu0 %v572
      %v958 = vpop.f32.mrf.mxu0
      %v959 = vadd.f32 %v384, %v958
      %v960 = vpop.f32.mrf.mxu0
      %v961 = vadd.f32 %v384, %v960
      %962 = vmatmul.bf16.gmra.mxu0 %v575
      %v963 = vpop.f32.mrf.mxu0
      %v964 = vadd.f32 %v384, %v963
      %v965 = vpop.f32.mrf.mxu0
      %v966 = vadd.f32 %v384, %v965
      %967 = vmatmul.bf16.gmra.mxu0 %v578
      %v968 = vpop.f32.mrf.mxu0
      %v969 = vadd.f32 %v384, %v968
      %v970 = vpop.f32.mrf.mxu0
      %v971 = vadd.f32 %v384, %v970
      %972 = vmatmul.bf16.gmra.mxu0 %v581
      %v973 = vpop.f32.mrf.mxu0
      %v974 = vadd.f32 %v384, %v973
      %v975 = vpop.f32.mrf.mxu0
      %v976 = vadd.f32 %v384, %v975
      %977 = vmatmul.bf16.gmra.mxu0 %v584
      %v978 = vpop.f32.mrf.mxu0
      %v979 = vadd.f32 %v384, %v978
      %v980 = vpop.f32.mrf.mxu0
      %v981 = vadd.f32 %v384, %v980
      %982 = vmatmul.bf16.gmra.mxu0 %v587
      %v983 = vpop.f32.mrf.mxu0
      %v984 = vadd.f32 %v384, %v983
      %v985 = vpop.f32.mrf.mxu0
      %v986 = vadd.f32 %v384, %v985
      %987 = vmatmul.bf16.gmra.mxu0 %v590
      %v988 = vpop.f32.mrf.mxu0
      %v989 = vadd.f32 %v384, %v988
      %v990 = vpop.f32.mrf.mxu0
      %v991 = vadd.f32 %v384, %v990
      %992 = vmatmul.bf16.gmra.mxu0 %v593
      %v993 = vpop.f32.mrf.mxu0
      %v994 = vadd.f32 %v384, %v993
      %v995 = vpop.f32.mrf.mxu0
      %v996 = vadd.f32 %v384, %v995
      %997 = vdwg.mxu0
      %998 = vmatpush.bf16.msra.mxu0 %v793
      %999 = vmatpush.bf16.msra.mxu0 %v791
      %1000 = vmatpush.bf16.msra.mxu0 %v789
      %1001 = vmatpush.bf16.msra.mxu0 %v787
      %1002 = vmatpush.bf16.msra.mxu0 %v785
      %1003 = vmatpush.bf16.msra.mxu0 %v783
      %1004 = vmatpush.bf16.msra.mxu0 %v781
      %1005 = vmatpush.bf16.msra.mxu0 %v779
      %1006 = vmatmul.bf16.gmra.mxu0 %v549
      %v1007 = vpop.f32.mrf.mxu0
      %v1008 = vadd.f32 %v919, %v1007
      %v1009 = vpop.f32.mrf.mxu0
      %v1010 = vadd.f32 %v921, %v1009
      %1011 = vmatmul.bf16.gmra.mxu0 %v552
      %v1012 = vpop.f32.mrf.mxu0
      %v1013 = vadd.f32 %v924, %v1012
      %v1014 = vpop.f32.mrf.mxu0
      %v1015 = vadd.f32 %v926, %v1014
      %1016 = vmatmul.bf16.gmra.mxu0 %v555
      %v1017 = vpop.f32.mrf.mxu0
      %v1018 = vadd.f32 %v929, %v1017
      %v1019 = vpop.f32.mrf.mxu0
      %v1020 = vadd.f32 %v931, %v1019
      %1021 = vmatmul.bf16.gmra.mxu0 %v558
      %v1022 = vpop.f32.mrf.mxu0
      %v1023 = vadd.f32 %v934, %v1022
      %v1024 = vpop.f32.mrf.mxu0
      %v1025 = vadd.f32 %v936, %v1024
      %1026 = vmatmul.bf16.gmra.mxu0 %v561
      %v1027 = vpop.f32.mrf.mxu0
      %v1028 = vadd.f32 %v939, %v1027
      %v1029 = vpop.f32.mrf.mxu0
      %v1030 = vadd.f32 %v941, %v1029
      %1031 = vmatmul.bf16.gmra.mxu0 %v564
      %v1032 = vpop.f32.mrf.mxu0
      %v1033 = vadd.f32 %v944, %v1032
      %v1034 = vpop.f32.mrf.mxu0
      %v1035 = vadd.f32 %v946, %v1034
      %1036 = vmatmul.bf16.gmra.mxu0 %v567
      %v1037 = vpop.f32.mrf.mxu0
      %v1038 = vadd.f32 %v949, %v1037
      %v1039 = vpop.f32.mrf.mxu0
      %v1040 = vadd.f32 %v951, %v1039
      %1041 = vmatmul.bf16.gmra.mxu0 %v570
      %v1042 = vpop.f32.mrf.mxu0
      %v1043 = vadd.f32 %v954, %v1042
      %v1044 = vpop.f32.mrf.mxu0
      %v1045 = vadd.f32 %v956, %v1044
      %1046 = vmatmul.bf16.gmra.mxu0 %v573
      %v1047 = vpop.f32.mrf.mxu0
      %v1048 = vadd.f32 %v959, %v1047
      %v1049 = vpop.f32.mrf.mxu0
      %v1050 = vadd.f32 %v961, %v1049
      %1051 = vmatmul.bf16.gmra.mxu0 %v576
      %v1052 = vpop.f32.mrf.mxu0
      %v1053 = vadd.f32 %v964, %v1052
      %v1054 = vpop.f32.mrf.mxu0
      %v1055 = vadd.f32 %v966, %v1054
      %1056 = vmatmul.bf16.gmra.mxu0 %v579
      %v1057 = vpop.f32.mrf.mxu0
      %v1058 = vadd.f32 %v969, %v1057
      %v1059 = vpop.f32.mrf.mxu0
      %v1060 = vadd.f32 %v971, %v1059
      %1061 = vmatmul.bf16.gmra.mxu0 %v582
      %v1062 = vpop.f32.mrf.mxu0
      %v1063 = vadd.f32 %v974, %v1062
      %v1064 = vpop.f32.mrf.mxu0
      %v1065 = vadd.f32 %v976, %v1064
      %1066 = vmatmul.bf16.gmra.mxu0 %v585
      %v1067 = vpop.f32.mrf.mxu0
      %v1068 = vadd.f32 %v979, %v1067
      %v1069 = vpop.f32.mrf.mxu0
      %v1070 = vadd.f32 %v981, %v1069
      %1071 = vmatmul.bf16.gmra.mxu0 %v588
      %v1072 = vpop.f32.mrf.mxu0
      %v1073 = vadd.f32 %v984, %v1072
      %v1074 = vpop.f32.mrf.mxu0
      %v1075 = vadd.f32 %v986, %v1074
      %1076 = vmatmul.bf16.gmra.mxu0 %v591
      %v1077 = vpop.f32.mrf.mxu0
      %v1078 = vadd.f32 %v989, %v1077
      %v1079 = vpop.f32.mrf.mxu0
      %v1080 = vadd.f32 %v991, %v1079
      %1081 = vmatmul.bf16.gmra.mxu0 %v594
      %v1082 = vpop.f32.mrf.mxu0
      %v1083 = vadd.f32 %v994, %v1082
      %v1084 = vpop.f32.mrf.mxu0
      %v1085 = vadd.f32 %v996, %v1084
      %1086 = vdwg.mxu0
      %1087 = vmatpush.bf16.msra.mxu0 0
      %1088 = vmatpush.bf16.msra.mxu0 %v904
      %1089 = vmatpush.bf16.msra.mxu0 %v805
      %1090 = vmatpush.bf16.msra.mxu0 %v803
      %1091 = vmatpush.bf16.msra.mxu0 %v801
      %1092 = vmatpush.bf16.msra.mxu0 %v799
      %1093 = vmatpush.bf16.msra.mxu0 %v797
      %1094 = vmatpush.bf16.msra.mxu0 %v795
      %1095 = vmatmul.bf16.gmra.mxu0 %v855
      %v1096 = vpop.f32.mrf.mxu0
      %v1097 = vadd.f32 %v1008, %v1096
      %v1098 = vpop.f32.mrf.mxu0
      %v1099 = vadd.f32 %v1010, %v1098
      %1100 = vmatmul.bf16.gmra.mxu0 %v858
      %v1101 = vpop.f32.mrf.mxu0
      %v1102 = vadd.f32 %v1013, %v1101
      %v1103 = vpop.f32.mrf.mxu0
      %v1104 = vadd.f32 %v1015, %v1103
      %1105 = vmatmul.bf16.gmra.mxu0 %v861
      %v1106 = vpop.f32.mrf.mxu0
      %v1107 = vadd.f32 %v1018, %v1106
      %v1108 = vpop.f32.mrf.mxu0
      %v1109 = vadd.f32 %v1020, %v1108
      %1110 = vmatmul.bf16.gmra.mxu0 %v864
      %v1111 = vpop.f32.mrf.mxu0
      %v1112 = vadd.f32 %v1023, %v1111
      %v1113 = vpop.f32.mrf.mxu0
      %v1114 = vadd.f32 %v1025, %v1113
      %1115 = vmatmul.bf16.gmra.mxu0 %v867
      %v1116 = vpop.f32.mrf.mxu0
      %v1117 = vadd.f32 %v1028, %v1116
      %v1118 = vpop.f32.mrf.mxu0
      %v1119 = vadd.f32 %v1030, %v1118
      %1120 = vmatmul.bf16.gmra.mxu0 %v870
      %v1121 = vpop.f32.mrf.mxu0
      %v1122 = vadd.f32 %v1033, %v1121
      %v1123 = vpop.f32.mrf.mxu0
      %v1124 = vadd.f32 %v1035, %v1123
      %1125 = vmatmul.bf16.gmra.mxu0 %v873
      %v1126 = vpop.f32.mrf.mxu0
      %v1127 = vadd.f32 %v1038, %v1126
      %v1128 = vpop.f32.mrf.mxu0
      %v1129 = vadd.f32 %v1040, %v1128
      %1130 = vmatmul.bf16.gmra.mxu0 %v876
      %v1131 = vpop.f32.mrf.mxu0
      %v1132 = vadd.f32 %v1043, %v1131
      %v1133 = vpop.f32.mrf.mxu0
      %v1134 = vadd.f32 %v1045, %v1133
      %1135 = vmatmul.bf16.gmra.mxu0 %v879
      %v1136 = vpop.f32.mrf.mxu0
      %v1137 = vadd.f32 %v1048, %v1136
      %v1138 = vpop.f32.mrf.mxu0
      %v1139 = vadd.f32 %v1050, %v1138
      %1140 = vmatmul.bf16.gmra.mxu0 %v882
      %v1141 = vpop.f32.mrf.mxu0
      %v1142 = vadd.f32 %v1053, %v1141
      %v1143 = vpop.f32.mrf.mxu0
      %v1144 = vadd.f32 %v1055, %v1143
      %1145 = vmatmul.bf16.gmra.mxu0 %v885
      %v1146 = vpop.f32.mrf.mxu0
      %v1147 = vadd.f32 %v1058, %v1146
      %v1148 = vpop.f32.mrf.mxu0
      %v1149 = vadd.f32 %v1060, %v1148
      %1150 = vmatmul.bf16.gmra.mxu0 %v888
      %v1151 = vpop.f32.mrf.mxu0
      %v1152 = vadd.f32 %v1063, %v1151
      %v1153 = vpop.f32.mrf.mxu0
      %v1154 = vadd.f32 %v1065, %v1153
      %1155 = vmatmul.bf16.gmra.mxu0 %v891
      %v1156 = vpop.f32.mrf.mxu0
      %v1157 = vadd.f32 %v1068, %v1156
      %v1158 = vpop.f32.mrf.mxu0
      %v1159 = vadd.f32 %v1070, %v1158
      %1160 = vmatmul.bf16.gmra.mxu0 %v894
      %v1161 = vpop.f32.mrf.mxu0
      %v1162 = vadd.f32 %v1073, %v1161
      %v1163 = vpop.f32.mrf.mxu0
      %v1164 = vadd.f32 %v1075, %v1163
      %1165 = vmatmul.bf16.gmra.mxu0 %v897
      %v1166 = vpop.f32.mrf.mxu0
      %v1167 = vadd.f32 %v1078, %v1166
      %v1168 = vpop.f32.mrf.mxu0
      %v1169 = vadd.f32 %v1080, %v1168
      %1170 = vmatmul.bf16.gmra.mxu0 %v900
      %v1171 = vpop.f32.mrf.mxu0
      %v1172 = vadd.f32 %v1083, %v1171
      %v1173 = vpop.f32.mrf.mxu0
      %v1174 = vadd.f32 %v1085, %v1173
      %1175 = vdwg.mxu0
      %1176 = vmatpush.bf16.msra.mxu0 %v778
      %1177 = vmatpush.bf16.msra.mxu0 %v776
      %1178 = vmatpush.bf16.msra.mxu0 %v774
      %1179 = vmatpush.bf16.msra.mxu0 %v772
      %1180 = vmatpush.bf16.msra.mxu0 %v770
      %1181 = vmatpush.bf16.msra.mxu0 %v768
      %1182 = vmatpush.bf16.msra.mxu0 %v766
      %1183 = vmatpush.bf16.msra.mxu0 %v764
      %1184 = vmatmul.bf16.gmra.mxu0 %v548
      %v1185 = vpop.f32.mrf.mxu0
      %v1186 = vadd.f32 %v385, %v1185
      %v1187 = vpop.f32.mrf.mxu0
      %v1188 = vadd.f32 %v385, %v1187
      %1189 = vmatmul.bf16.gmra.mxu0 %v551
      %v1190 = vpop.f32.mrf.mxu0
      %v1191 = vadd.f32 %v385, %v1190
      %v1192 = vpop.f32.mrf.mxu0
      %v1193 = vadd.f32 %v385, %v1192
      %1194 = vmatmul.bf16.gmra.mxu0 %v554
      %v1195 = vpop.f32.mrf.mxu0
      %v1196 = vadd.f32 %v385, %v1195
      %v1197 = vpop.f32.mrf.mxu0
      %v1198 = vadd.f32 %v385, %v1197
      %1199 = vmatmul.bf16.gmra.mxu0 %v557
      %v1200 = vpop.f32.mrf.mxu0
      %v1201 = vadd.f32 %v385, %v1200
      %v1202 = vpop.f32.mrf.mxu0
      %v1203 = vadd.f32 %v385, %v1202
      %1204 = vmatmul.bf16.gmra.mxu0 %v560
      %v1205 = vpop.f32.mrf.mxu0
      %v1206 = vadd.f32 %v385, %v1205
      %v1207 = vpop.f32.mrf.mxu0
      %v1208 = vadd.f32 %v385, %v1207
      %1209 = vmatmul.bf16.gmra.mxu0 %v563
      %v1210 = vpop.f32.mrf.mxu0
      %v1211 = vadd.f32 %v385, %v1210
      %v1212 = vpop.f32.mrf.mxu0
      %v1213 = vadd.f32 %v385, %v1212
      %1214 = vmatmul.bf16.gmra.mxu0 %v566
      %v1215 = vpop.f32.mrf.mxu0
      %v1216 = vadd.f32 %v385, %v1215
      %v1217 = vpop.f32.mrf.mxu0
      %v1218 = vadd.f32 %v385, %v1217
      %1219 = vmatmul.bf16.gmra.mxu0 %v569
      %v1220 = vpop.f32.mrf.mxu0
      %v1221 = vadd.f32 %v385, %v1220
      %v1222 = vpop.f32.mrf.mxu0
      %v1223 = vadd.f32 %v385, %v1222
      %1224 = vmatmul.bf16.gmra.mxu0 %v572
      %v1225 = vpop.f32.mrf.mxu0
      %v1226 = vadd.f32 %v385, %v1225
      %v1227 = vpop.f32.mrf.mxu0
      %v1228 = vadd.f32 %v385, %v1227
      %1229 = vmatmul.bf16.gmra.mxu0 %v575
      %v1230 = vpop.f32.mrf.mxu0
      %v1231 = vadd.f32 %v385, %v1230
      %v1232 = vpop.f32.mrf.mxu0
      %v1233 = vadd.f32 %v385, %v1232
      %1234 = vmatmul.bf16.gmra.mxu0 %v578
      %v1235 = vpop.f32.mrf.mxu0
      %v1236 = vadd.f32 %v385, %v1235
      %v1237 = vpop.f32.mrf.mxu0
      %v1238 = vadd.f32 %v385, %v1237
      %1239 = vmatmul.bf16.gmra.mxu0 %v581
      %v1240 = vpop.f32.mrf.mxu0
      %v1241 = vadd.f32 %v385, %v1240
      %v1242 = vpop.f32.mrf.mxu0
      %v1243 = vadd.f32 %v385, %v1242
      %1244 = vmatmul.bf16.gmra.mxu0 %v584
      %v1245 = vpop.f32.mrf.mxu0
      %v1246 = vadd.f32 %v385, %v1245
      %v1247 = vpop.f32.mrf.mxu0
      %v1248 = vadd.f32 %v385, %v1247
      %1249 = vmatmul.bf16.gmra.mxu0 %v587
      %v1250 = vpop.f32.mrf.mxu0
      %v1251 = vadd.f32 %v385, %v1250
      %v1252 = vpop.f32.mrf.mxu0
      %v1253 = vadd.f32 %v385, %v1252
      %1254 = vmatmul.bf16.gmra.mxu0 %v590
      %v1255 = vpop.f32.mrf.mxu0
      %v1256 = vadd.f32 %v385, %v1255
      %v1257 = vpop.f32.mrf.mxu0
      %v1258 = vadd.f32 %v385, %v1257
      %1259 = vmatmul.bf16.gmra.mxu0 %v593
      %v1260 = vpop.f32.mrf.mxu0
      %v1261 = vadd.f32 %v385, %v1260
      %v1262 = vpop.f32.mrf.mxu0
      %v1263 = vadd.f32 %v385, %v1262
      %1264 = vdwg.mxu0
      %1265 = vmatpush.bf16.msra.mxu0 %v794
      %1266 = vmatpush.bf16.msra.mxu0 %v792
      %1267 = vmatpush.bf16.msra.mxu0 %v790
      %1268 = vmatpush.bf16.msra.mxu0 %v788
      %1269 = vmatpush.bf16.msra.mxu0 %v786
      %1270 = vmatpush.bf16.msra.mxu0 %v784
      %1271 = vmatpush.bf16.msra.mxu0 %v782
      %1272 = vmatpush.bf16.msra.mxu0 %v780
      %1273 = vmatmul.bf16.gmra.mxu0 %v549
      %v1274 = vpop.f32.mrf.mxu0
      %v1275 = vadd.f32 %v1186, %v1274
      %v1276 = vpop.f32.mrf.mxu0
      %v1277 = vadd.f32 %v1188, %v1276
      %1278 = vmatmul.bf16.gmra.mxu0 %v552
      %v1279 = vpop.f32.mrf.mxu0
      %v1280 = vadd.f32 %v1191, %v1279
      %v1281 = vpop.f32.mrf.mxu0
      %v1282 = vadd.f32 %v1193, %v1281
      %1283 = vmatmul.bf16.gmra.mxu0 %v555
      %v1284 = vpop.f32.mrf.mxu0
      %v1285 = vadd.f32 %v1196, %v1284
      %v1286 = vpop.f32.mrf.mxu0
      %v1287 = vadd.f32 %v1198, %v1286
      %1288 = vmatmul.bf16.gmra.mxu0 %v558
      %v1289 = vpop.f32.mrf.mxu0
      %v1290 = vadd.f32 %v1201, %v1289
      %v1291 = vpop.f32.mrf.mxu0
      %v1292 = vadd.f32 %v1203, %v1291
      %1293 = vmatmul.bf16.gmra.mxu0 %v561
      %v1294 = vpop.f32.mrf.mxu0
      %v1295 = vadd.f32 %v1206, %v1294
      %v1296 = vpop.f32.mrf.mxu0
      %v1297 = vadd.f32 %v1208, %v1296
      %1298 = vmatmul.bf16.gmra.mxu0 %v564
      %v1299 = vpop.f32.mrf.mxu0
      %v1300 = vadd.f32 %v1211, %v1299
      %v1301 = vpop.f32.mrf.mxu0
      %v1302 = vadd.f32 %v1213, %v1301
      %1303 = vmatmul.bf16.gmra.mxu0 %v567
      %v1304 = vpop.f32.mrf.mxu0
      %v1305 = vadd.f32 %v1216, %v1304
      %v1306 = vpop.f32.mrf.mxu0
      %v1307 = vadd.f32 %v1218, %v1306
      %1308 = vmatmul.bf16.gmra.mxu0 %v570
      %v1309 = vpop.f32.mrf.mxu0
      %v1310 = vadd.f32 %v1221, %v1309
      %v1311 = vpop.f32.mrf.mxu0
      %v1312 = vadd.f32 %v1223, %v1311
      %1313 = vmatmul.bf16.gmra.mxu0 %v573
      %v1314 = vpop.f32.mrf.mxu0
      %v1315 = vadd.f32 %v1226, %v1314
      %v1316 = vpop.f32.mrf.mxu0
      %v1317 = vadd.f32 %v1228, %v1316
      %1318 = vmatmul.bf16.gmra.mxu0 %v576
      %v1319 = vpop.f32.mrf.mxu0
      %v1320 = vadd.f32 %v1231, %v1319
      %v1321 = vpop.f32.mrf.mxu0
      %v1322 = vadd.f32 %v1233, %v1321
      %1323 = vmatmul.bf16.gmra.mxu0 %v579
      %v1324 = vpop.f32.mrf.mxu0
      %v1325 = vadd.f32 %v1236, %v1324
      %v1326 = vpop.f32.mrf.mxu0
      %v1327 = vadd.f32 %v1238, %v1326
      %1328 = vmatmul.bf16.gmra.mxu0 %v582
      %v1329 = vpop.f32.mrf.mxu0
      %v1330 = vadd.f32 %v1241, %v1329
      %v1331 = vpop.f32.mrf.mxu0
      %v1332 = vadd.f32 %v1243, %v1331
      %1333 = vmatmul.bf16.gmra.mxu0 %v585
      %v1334 = vpop.f32.mrf.mxu0
      %v1335 = vadd.f32 %v1246, %v1334
      %v1336 = vpop.f32.mrf.mxu0
      %v1337 = vadd.f32 %v1248, %v1336
      %1338 = vmatmul.bf16.gmra.mxu0 %v588
      %v1339 = vpop.f32.mrf.mxu0
      %v1340 = vadd.f32 %v1251, %v1339
      %v1341 = vpop.f32.mrf.mxu0
      %v1342 = vadd.f32 %v1253, %v1341
      %1343 = vmatmul.bf16.gmra.mxu0 %v591
      %v1344 = vpop.f32.mrf.mxu0
      %v1345 = vadd.f32 %v1256, %v1344
      %v1346 = vpop.f32.mrf.mxu0
      %v1347 = vadd.f32 %v1258, %v1346
      %1348 = vmatmul.bf16.gmra.mxu0 %v594
      %v1349 = vpop.f32.mrf.mxu0
      %v1350 = vadd.f32 %v1261, %v1349
      %v1351 = vpop.f32.mrf.mxu0
      %v1352 = vadd.f32 %v1263, %v1351
      %1353 = vdwg.mxu0
      %1354 = vmatpush.bf16.msra.mxu0 0
      %1355 = vmatpush.bf16.msra.mxu0 %v907
      %1356 = vmatpush.bf16.msra.mxu0 %v806
      %1357 = vmatpush.bf16.msra.mxu0 %v804
      %1358 = vmatpush.bf16.msra.mxu0 %v802
      %1359 = vmatpush.bf16.msra.mxu0 %v800
      %1360 = vmatpush.bf16.msra.mxu0 %v798
      %1361 = vmatpush.bf16.msra.mxu0 %v796
      %1362 = vmatmul.bf16.gmra.mxu0 %v855
      %v1363 = vpop.f32.mrf.mxu0
      %v1364 = vadd.f32 %v1275, %v1363
      %v1365 = vpop.f32.mrf.mxu0
      %v1366 = vadd.f32 %v1277, %v1365
      %1367 = vmatmul.bf16.gmra.mxu0 %v858
      %v1368 = vpop.f32.mrf.mxu0
      %v1369 = vadd.f32 %v1280, %v1368
      %v1370 = vpop.f32.mrf.mxu0
      %v1371 = vadd.f32 %v1282, %v1370
      %1372 = vmatmul.bf16.gmra.mxu0 %v861
      %v1373 = vpop.f32.mrf.mxu0
      %v1374 = vadd.f32 %v1285, %v1373
      %v1375 = vpop.f32.mrf.mxu0
      %v1376 = vadd.f32 %v1287, %v1375
      %1377 = vmatmul.bf16.gmra.mxu0 %v864
      %v1378 = vpop.f32.mrf.mxu0
      %v1379 = vadd.f32 %v1290, %v1378
      %v1380 = vpop.f32.mrf.mxu0
      %v1381 = vadd.f32 %v1292, %v1380
      %1382 = vmatmul.bf16.gmra.mxu0 %v867
      %v1383 = vpop.f32.mrf.mxu0
      %v1384 = vadd.f32 %v1295, %v1383
      %v1385 = vpop.f32.mrf.mxu0
      %v1386 = vadd.f32 %v1297, %v1385
      %1387 = vmatmul.bf16.gmra.mxu0 %v870
      %v1388 = vpop.f32.mrf.mxu0
      %v1389 = vadd.f32 %v1300, %v1388
      %v1390 = vpop.f32.mrf.mxu0
      %v1391 = vadd.f32 %v1302, %v1390
      %1392 = vmatmul.bf16.gmra.mxu0 %v873
      %v1393 = vpop.f32.mrf.mxu0
      %v1394 = vadd.f32 %v1305, %v1393
      %v1395 = vpop.f32.mrf.mxu0
      %v1396 = vadd.f32 %v1307, %v1395
      %1397 = vmatmul.bf16.gmra.mxu0 %v876
      %v1398 = vpop.f32.mrf.mxu0
      %v1399 = vadd.f32 %v1310, %v1398
      %v1400 = vpop.f32.mrf.mxu0
      %v1401 = vadd.f32 %v1312, %v1400
      %1402 = vmatmul.bf16.gmra.mxu0 %v879
      %v1403 = vpop.f32.mrf.mxu0
      %v1404 = vadd.f32 %v1315, %v1403
      %v1405 = vpop.f32.mrf.mxu0
      %v1406 = vadd.f32 %v1317, %v1405
      %1407 = vmatmul.bf16.gmra.mxu0 %v882
      %v1408 = vpop.f32.mrf.mxu0
      %v1409 = vadd.f32 %v1320, %v1408
      %v1410 = vpop.f32.mrf.mxu0
      %v1411 = vadd.f32 %v1322, %v1410
      %1412 = vmatmul.bf16.gmra.mxu0 %v885
      %v1413 = vpop.f32.mrf.mxu0
      %v1414 = vadd.f32 %v1325, %v1413
      %v1415 = vpop.f32.mrf.mxu0
      %v1416 = vadd.f32 %v1327, %v1415
      %1417 = vmatmul.bf16.gmra.mxu0 %v888
      %v1418 = vpop.f32.mrf.mxu0
      %v1419 = vadd.f32 %v1330, %v1418
      %v1420 = vpop.f32.mrf.mxu0
      %v1421 = vadd.f32 %v1332, %v1420
      %1422 = vmatmul.bf16.gmra.mxu0 %v891
      %v1423 = vpop.f32.mrf.mxu0
      %v1424 = vadd.f32 %v1335, %v1423
      %v1425 = vpop.f32.mrf.mxu0
      %v1426 = vadd.f32 %v1337, %v1425
      %1427 = vmatmul.bf16.gmra.mxu0 %v894
      %v1428 = vpop.f32.mrf.mxu0
      %v1429 = vadd.f32 %v1340, %v1428
      %v1430 = vpop.f32.mrf.mxu0
      %v1431 = vadd.f32 %v1342, %v1430
      %1432 = vmatmul.bf16.gmra.mxu0 %v897
      %v1433 = vpop.f32.mrf.mxu0
      %v1434 = vadd.f32 %v1345, %v1433
      %v1435 = vpop.f32.mrf.mxu0
      %v1436 = vadd.f32 %v1347, %v1435
      %1437 = vmatmul.bf16.gmra.mxu0 %v900
      %v1438 = vpop.f32.mrf.mxu0
      %v1439 = vadd.f32 %v1350, %v1438
      %v1440 = vpop.f32.mrf.mxu0
      %v1441 = vadd.f32 %v1352, %v1440
      %1442 = vdwg.mxu0
      %v1443 = vxor.u32 %v1097, 2147483648
      %v1444 = vxor.u32 %v1364, 2147483648
      %v1445 = vxor.u32 %v1099, 2147483648
      %v1446 = vxor.u32 %v1366, 2147483648
      %v1447 = vxor.u32 %v1102, 2147483648
      %v1448 = vxor.u32 %v1369, 2147483648
      %v1449 = vxor.u32 %v1104, 2147483648
      %v1450 = vxor.u32 %v1371, 2147483648
      %v1451 = vxor.u32 %v1107, 2147483648
      %v1452 = vxor.u32 %v1374, 2147483648
      %v1453 = vxor.u32 %v1109, 2147483648
      %v1454 = vxor.u32 %v1376, 2147483648
      %v1455 = vxor.u32 %v1112, 2147483648
      %v1456 = vxor.u32 %v1379, 2147483648
      %v1457 = vxor.u32 %v1114, 2147483648
      %v1458 = vxor.u32 %v1381, 2147483648
      %v1459 = vxor.u32 %v1117, 2147483648
      %v1460 = vxor.u32 %v1384, 2147483648
      %v1461 = vxor.u32 %v1119, 2147483648
      %v1462 = vxor.u32 %v1386, 2147483648
      %v1463 = vxor.u32 %v1122, 2147483648
      %v1464 = vxor.u32 %v1389, 2147483648
      %v1465 = vxor.u32 %v1124, 2147483648
      %v1466 = vxor.u32 %v1391, 2147483648
      %v1467 = vxor.u32 %v1127, 2147483648
      %v1468 = vxor.u32 %v1394, 2147483648
      %v1469 = vxor.u32 %v1129, 2147483648
      %v1470 = vxor.u32 %v1396, 2147483648
      %v1471 = vxor.u32 %v1132, 2147483648
      %v1472 = vxor.u32 %v1399, 2147483648
      %v1473 = vxor.u32 %v1134, 2147483648
      %v1474 = vxor.u32 %v1401, 2147483648
      %v1475 = vxor.u32 %v1137, 2147483648
      %v1476 = vxor.u32 %v1404, 2147483648
      %v1477 = vxor.u32 %v1139, 2147483648
      %v1478 = vxor.u32 %v1406, 2147483648
      %v1479 = vxor.u32 %v1142, 2147483648
      %v1480 = vxor.u32 %v1409, 2147483648
      %v1481 = vxor.u32 %v1144, 2147483648
      %v1482 = vxor.u32 %v1411, 2147483648
      %v1483 = vxor.u32 %v1147, 2147483648
      %v1484 = vxor.u32 %v1414, 2147483648
      %v1485 = vxor.u32 %v1149, 2147483648
      %v1486 = vxor.u32 %v1416, 2147483648
      %v1487 = vxor.u32 %v1152, 2147483648
      %v1488 = vxor.u32 %v1419, 2147483648
      %v1489 = vxor.u32 %v1154, 2147483648
      %v1490 = vxor.u32 %v1421, 2147483648
      %v1491 = vxor.u32 %v1157, 2147483648
      %v1492 = vxor.u32 %v1424, 2147483648
      %v1493 = vxor.u32 %v1159, 2147483648
      %v1494 = vxor.u32 %v1426, 2147483648
      %v1495 = vxor.u32 %v1162, 2147483648
      %v1496 = vxor.u32 %v1429, 2147483648
      %v1497 = vxor.u32 %v1164, 2147483648
      %v1498 = vxor.u32 %v1431, 2147483648
      %v1499 = vxor.u32 %v1167, 2147483648
      %v1500 = vxor.u32 %v1434, 2147483648
      %v1501 = vxor.u32 %v1169, 2147483648
      %v1502 = vxor.u32 %v1436, 2147483648
      %v1503 = vxor.u32 %v1172, 2147483648
      %v1504 = vxor.u32 %v1439, 2147483648
      %v1505 = vxor.u32 %v1174, 2147483648
      %v1506 = vxor.u32 %v1441, 2147483648
      %v1507 = vmul.f32 %v1443, 1.442695
      %v1508 = vpow.pop %v1507
      %v1509 = vmul.f32 %v1444, 1.442695
      %v1510 = vpow.pop %v1509
      %v1511 = vmul.f32 %v1445, 1.442695
      %v1512 = vpow.pop %v1511
      %v1513 = vmul.f32 %v1446, 1.442695
      %v1514 = vpow.pop %v1513
      %v1515 = vmul.f32 %v1447, 1.442695
      %v1516 = vpow.pop %v1515
      %v1517 = vmul.f32 %v1448, 1.442695
      %v1518 = vpow.pop %v1517
      %v1519 = vmul.f32 %v1449, 1.442695
      %v1520 = vpow.pop %v1519
      %v1521 = vmul.f32 %v1450, 1.442695
      %v1522 = vpow.pop %v1521
      %v1523 = vmul.f32 %v1451, 1.442695
      %v1524 = vpow.pop %v1523
      %v1525 = vmul.f32 %v1452, 1.442695
      %v1526 = vpow.pop %v1525
      %v1527 = vmul.f32 %v1453, 1.442695
      %v1528 = vpow.pop %v1527
      %v1529 = vmul.f32 %v1454, 1.442695
      %v1530 = vpow.pop %v1529
      %v1531 = vmul.f32 %v1455, 1.442695
      %v1532 = vpow.pop %v1531
      %v1533 = vmul.f32 %v1456, 1.442695
      %v1534 = vpow.pop %v1533
      %v1535 = vmul.f32 %v1457, 1.442695
      %v1536 = vpow.pop %v1535
      %v1537 = vmul.f32 %v1458, 1.442695
      %v1538 = vpow.pop %v1537
      %v1539 = vmul.f32 %v1459, 1.442695
      %v1540 = vpow.pop %v1539
      %v1541 = vmul.f32 %v1460, 1.442695
      %v1542 = vpow.pop %v1541
      %v1543 = vmul.f32 %v1461, 1.442695
      %v1544 = vpow.pop %v1543
      %v1545 = vmul.f32 %v1462, 1.442695
      %v1546 = vpow.pop %v1545
      %v1547 = vmul.f32 %v1463, 1.442695
      %v1548 = vpow.pop %v1547
      %v1549 = vmul.f32 %v1464, 1.442695
      %v1550 = vpow.pop %v1549
      %v1551 = vmul.f32 %v1465, 1.442695
      %v1552 = vpow.pop %v1551
      %v1553 = vmul.f32 %v1466, 1.442695
      %v1554 = vpow.pop %v1553
      %v1555 = vmul.f32 %v1467, 1.442695
      %v1556 = vpow.pop %v1555
      %v1557 = vmul.f32 %v1468, 1.442695
      %v1558 = vpow.pop %v1557
      %v1559 = vmul.f32 %v1469, 1.442695
      %v1560 = vpow.pop %v1559
      %v1561 = vmul.f32 %v1470, 1.442695
      %v1562 = vpow.pop %v1561
      %v1563 = vmul.f32 %v1471, 1.442695
      %v1564 = vpow.pop %v1563
      %v1565 = vmul.f32 %v1472, 1.442695
      %v1566 = vpow.pop %v1565
      %v1567 = vmul.f32 %v1473, 1.442695
      %v1568 = vpow.pop %v1567
      %v1569 = vmul.f32 %v1474, 1.442695
      %v1570 = vpow.pop %v1569
      %v1571 = vmul.f32 %v1475, 1.442695
      %v1572 = vpow.pop %v1571
      %v1573 = vmul.f32 %v1476, 1.442695
      %v1574 = vpow.pop %v1573
      %v1575 = vmul.f32 %v1477, 1.442695
      %v1576 = vpow.pop %v1575
      %v1577 = vmul.f32 %v1478, 1.442695
      %v1578 = vpow.pop %v1577
      %v1579 = vmul.f32 %v1479, 1.442695
      %v1580 = vpow.pop %v1579
      %v1581 = vmul.f32 %v1480, 1.442695
      %v1582 = vpow.pop %v1581
      %v1583 = vmul.f32 %v1481, 1.442695
      %v1584 = vpow.pop %v1583
      %v1585 = vmul.f32 %v1482, 1.442695
      %v1586 = vpow.pop %v1585
      %v1587 = vmul.f32 %v1483, 1.442695
      %v1588 = vpow.pop %v1587
      %v1589 = vmul.f32 %v1484, 1.442695
      %v1590 = vpow.pop %v1589
      %v1591 = vmul.f32 %v1485, 1.442695
      %v1592 = vpow.pop %v1591
      %v1593 = vmul.f32 %v1486, 1.442695
      %v1594 = vpow.pop %v1593
      %v1595 = vmul.f32 %v1487, 1.442695
      %v1596 = vpow.pop %v1595
      %v1597 = vmul.f32 %v1488, 1.442695
      %v1598 = vpow.pop %v1597
      %v1599 = vmul.f32 %v1489, 1.442695
      %v1600 = vpow.pop %v1599
      %v1601 = vmul.f32 %v1490, 1.442695
      %v1602 = vpow.pop %v1601
      %v1603 = vmul.f32 %v1491, 1.442695
      %v1604 = vpow.pop %v1603
      %v1605 = vmul.f32 %v1492, 1.442695
      %v1606 = vpow.pop %v1605
      %v1607 = vmul.f32 %v1493, 1.442695
      %v1608 = vpow.pop %v1607
      %v1609 = vmul.f32 %v1494, 1.442695
      %v1610 = vpow.pop %v1609
      %v1611 = vmul.f32 %v1495, 1.442695
      %v1612 = vpow.pop %v1611
      %v1613 = vmul.f32 %v1496, 1.442695
      %v1614 = vpow.pop %v1613
      %v1615 = vmul.f32 %v1497, 1.442695
      %v1616 = vpow.pop %v1615
      %v1617 = vmul.f32 %v1498, 1.442695
      %v1618 = vpow.pop %v1617
      %v1619 = vmul.f32 %v1499, 1.442695
      %v1620 = vpow.pop %v1619
      %v1621 = vmul.f32 %v1500, 1.442695
      %v1622 = vpow.pop %v1621
      %v1623 = vmul.f32 %v1501, 1.442695
      %v1624 = vpow.pop %v1623
      %v1625 = vmul.f32 %v1502, 1.442695
      %v1626 = vpow.pop %v1625
      %v1627 = vmul.f32 %v1503, 1.442695
      %v1628 = vpow.pop %v1627
      %v1629 = vmul.f32 %v1504, 1.442695
      %v1630 = vpow.pop %v1629
      %v1631 = vmul.f32 %v1505, 1.442695
      %v1632 = vpow.pop %v1631
      %v1633 = vmul.f32 %v1506, 1.442695
      %v1634 = vpow.pop %v1633
      %v1635 = vadd.f32 %v1508, 1.0
      %v1636 = vadd.f32 %v1510, 1.0
      %v1637 = vadd.f32 %v1512, 1.0
      %v1638 = vadd.f32 %v1514, 1.0
      %v1639 = vadd.f32 %v1516, 1.0
      %v1640 = vadd.f32 %v1518, 1.0
      %v1641 = vadd.f32 %v1520, 1.0
      %v1642 = vadd.f32 %v1522, 1.0
      %v1643 = vadd.f32 %v1524, 1.0
      %v1644 = vadd.f32 %v1526, 1.0
      %v1645 = vadd.f32 %v1528, 1.0
      %v1646 = vadd.f32 %v1530, 1.0
      %v1647 = vadd.f32 %v1532, 1.0
      %v1648 = vadd.f32 %v1534, 1.0
      %v1649 = vadd.f32 %v1536, 1.0
      %v1650 = vadd.f32 %v1538, 1.0
      %v1651 = vadd.f32 %v1540, 1.0
      %v1652 = vadd.f32 %v1542, 1.0
      %v1653 = vadd.f32 %v1544, 1.0
      %v1654 = vadd.f32 %v1546, 1.0
      %v1655 = vadd.f32 %v1548, 1.0
      %v1656 = vadd.f32 %v1550, 1.0
      %v1657 = vadd.f32 %v1552, 1.0
      %v1658 = vadd.f32 %v1554, 1.0
      %v1659 = vadd.f32 %v1556, 1.0
      %v1660 = vadd.f32 %v1558, 1.0
      %v1661 = vadd.f32 %v1560, 1.0
      %v1662 = vadd.f32 %v1562, 1.0
      %v1663 = vadd.f32 %v1564, 1.0
      %v1664 = vadd.f32 %v1566, 1.0
      %v1665 = vadd.f32 %v1568, 1.0
      %v1666 = vadd.f32 %v1570, 1.0
      %v1667 = vadd.f32 %v1572, 1.0
      %v1668 = vadd.f32 %v1574, 1.0
      %v1669 = vadd.f32 %v1576, 1.0
      %v1670 = vadd.f32 %v1578, 1.0
      %v1671 = vadd.f32 %v1580, 1.0
      %v1672 = vadd.f32 %v1582, 1.0
      %v1673 = vadd.f32 %v1584, 1.0
      %v1674 = vadd.f32 %v1586, 1.0
      %v1675 = vadd.f32 %v1588, 1.0
      %v1676 = vadd.f32 %v1590, 1.0
      %v1677 = vadd.f32 %v1592, 1.0
      %v1678 = vadd.f32 %v1594, 1.0
      %v1679 = vadd.f32 %v1596, 1.0
      %v1680 = vadd.f32 %v1598, 1.0
      %v1681 = vadd.f32 %v1600, 1.0
      %v1682 = vadd.f32 %v1602, 1.0
      %v1683 = vadd.f32 %v1604, 1.0
      %v1684 = vadd.f32 %v1606, 1.0
      %v1685 = vadd.f32 %v1608, 1.0
      %v1686 = vadd.f32 %v1610, 1.0
      %v1687 = vadd.f32 %v1612, 1.0
      %v1688 = vadd.f32 %v1614, 1.0
      %v1689 = vadd.f32 %v1616, 1.0
      %v1690 = vadd.f32 %v1618, 1.0
      %v1691 = vadd.f32 %v1620, 1.0
      %v1692 = vadd.f32 %v1622, 1.0
      %v1693 = vadd.f32 %v1624, 1.0
      %v1694 = vadd.f32 %v1626, 1.0
      %v1695 = vadd.f32 %v1628, 1.0
      %v1696 = vadd.f32 %v1630, 1.0
      %v1697 = vadd.f32 %v1632, 1.0
      %v1698 = vadd.f32 %v1634, 1.0
      %v1699 = vrcp.pop %v1635
      %v1700 = vmul.f32 %v1635, %v1699
      %v1701 = vsub.f32 1.0, %v1700
      %v1702 = vmul.f32 %v1699, %v1701
      %v1703 = vadd.f32 %v1699, %v1702
      %vm1704 = vweird.f32 %v1635
      %vm1705 = vweird.f32 %v1699
      %vm1706 = vmor %vm1704, %vm1705
      %v1707 = vsel %vm1706, %v1699, %v1703
      %v1708 = vand.u32 2147483647, %v1635
      %vm1709 = vcmp.eq.f32.partialorder %v1708, 8.507059e+37
      %v1710 = vand.u32 %v1635, 2147483648
      %v1711 = vor.u32 1.1754944e-38, %v1710
      %v1712 = vsel %vm1709, %v1711, %v1707
      %v1713 = vmul.f32 1.0, %v1712
      %v1714 = vrcp.pop %v1636
      %v1715 = vmul.f32 %v1636, %v1714
      %v1716 = vsub.f32 1.0, %v1715
      %v1717 = vmul.f32 %v1714, %v1716
      %v1718 = vadd.f32 %v1714, %v1717
      %vm1719 = vweird.f32 %v1636
      %vm1720 = vweird.f32 %v1714
      %vm1721 = vmor %vm1719, %vm1720
      %v1722 = vsel %vm1721, %v1714, %v1718
      %v1723 = vand.u32 2147483647, %v1636
      %vm1724 = vcmp.eq.f32.partialorder %v1723, 8.507059e+37
      %v1725 = vand.u32 %v1636, 2147483648
      %v1726 = vor.u32 1.1754944e-38, %v1725
      %v1727 = vsel %vm1724, %v1726, %v1722
      %v1728 = vmul.f32 1.0, %v1727
      %v1729 = vrcp.pop %v1637
      %v1730 = vmul.f32 %v1637, %v1729
      %v1731 = vsub.f32 1.0, %v1730
      %v1732 = vmul.f32 %v1729, %v1731
      %v1733 = vadd.f32 %v1729, %v1732
      %vm1734 = vweird.f32 %v1637
      %vm1735 = vweird.f32 %v1729
      %vm1736 = vmor %vm1734, %vm1735
      %v1737 = vsel %vm1736, %v1729, %v1733
      %v1738 = vand.u32 2147483647, %v1637
      %vm1739 = vcmp.eq.f32.partialorder %v1738, 8.507059e+37
      %v1740 = vand.u32 %v1637, 2147483648
      %v1741 = vor.u32 1.1754944e-38, %v1740
      %v1742 = vsel %vm1739, %v1741, %v1737
      %v1743 = vmul.f32 1.0, %v1742
      %v1744 = vrcp.pop %v1638
      %v1745 = vmul.f32 %v1638, %v1744
      %v1746 = vsub.f32 1.0, %v1745
      %v1747 = vmul.f32 %v1744, %v1746
      %v1748 = vadd.f32 %v1744, %v1747
      %vm1749 = vweird.f32 %v1638
      %vm1750 = vweird.f32 %v1744
      %vm1751 = vmor %vm1749, %vm1750
      %v1752 = vsel %vm1751, %v1744, %v1748
      %v1753 = vand.u32 2147483647, %v1638
      %vm1754 = vcmp.eq.f32.partialorder %v1753, 8.507059e+37
      %v1755 = vand.u32 %v1638, 2147483648
      %v1756 = vor.u32 1.1754944e-38, %v1755
      %v1757 = vsel %vm1754, %v1756, %v1752
      %v1758 = vmul.f32 1.0, %v1757
      %v1759 = vrcp.pop %v1639
      %v1760 = vmul.f32 %v1639, %v1759
      %v1761 = vsub.f32 1.0, %v1760
      %v1762 = vmul.f32 %v1759, %v1761
      %v1763 = vadd.f32 %v1759, %v1762
      %vm1764 = vweird.f32 %v1639
      %vm1765 = vweird.f32 %v1759
      %vm1766 = vmor %vm1764, %vm1765
      %v1767 = vsel %vm1766, %v1759, %v1763
      %v1768 = vand.u32 2147483647, %v1639
      %vm1769 = vcmp.eq.f32.partialorder %v1768, 8.507059e+37
      %v1770 = vand.u32 %v1639, 2147483648
      %v1771 = vor.u32 1.1754944e-38, %v1770
      %v1772 = vsel %vm1769, %v1771, %v1767
      %v1773 = vmul.f32 1.0, %v1772
      %v1774 = vrcp.pop %v1640
      %v1775 = vmul.f32 %v1640, %v1774
      %v1776 = vsub.f32 1.0, %v1775
      %v1777 = vmul.f32 %v1774, %v1776
      %v1778 = vadd.f32 %v1774, %v1777
      %vm1779 = vweird.f32 %v1640
      %vm1780 = vweird.f32 %v1774
      %vm1781 = vmor %vm1779, %vm1780
      %v1782 = vsel %vm1781, %v1774, %v1778
      %v1783 = vand.u32 2147483647, %v1640
      %vm1784 = vcmp.eq.f32.partialorder %v1783, 8.507059e+37
      %v1785 = vand.u32 %v1640, 2147483648
      %v1786 = vor.u32 1.1754944e-38, %v1785
      %v1787 = vsel %vm1784, %v1786, %v1782
      %v1788 = vmul.f32 1.0, %v1787
      %v1789 = vrcp.pop %v1641
      %v1790 = vmul.f32 %v1641, %v1789
      %v1791 = vsub.f32 1.0, %v1790
      %v1792 = vmul.f32 %v1789, %v1791
      %v1793 = vadd.f32 %v1789, %v1792
      %vm1794 = vweird.f32 %v1641
      %vm1795 = vweird.f32 %v1789
      %vm1796 = vmor %vm1794, %vm1795
      %v1797 = vsel %vm1796, %v1789, %v1793
      %v1798 = vand.u32 2147483647, %v1641
      %vm1799 = vcmp.eq.f32.partialorder %v1798, 8.507059e+37
      %v1800 = vand.u32 %v1641, 2147483648
      %v1801 = vor.u32 1.1754944e-38, %v1800
      %v1802 = vsel %vm1799, %v1801, %v1797
      %v1803 = vmul.f32 1.0, %v1802
      %v1804 = vrcp.pop %v1642
      %v1805 = vmul.f32 %v1642, %v1804
      %v1806 = vsub.f32 1.0, %v1805
      %v1807 = vmul.f32 %v1804, %v1806
      %v1808 = vadd.f32 %v1804, %v1807
      %vm1809 = vweird.f32 %v1642
      %vm1810 = vweird.f32 %v1804
      %vm1811 = vmor %vm1809, %vm1810
      %v1812 = vsel %vm1811, %v1804, %v1808
      %v1813 = vand.u32 2147483647, %v1642
      %vm1814 = vcmp.eq.f32.partialorder %v1813, 8.507059e+37
      %v1815 = vand.u32 %v1642, 2147483648
      %v1816 = vor.u32 1.1754944e-38, %v1815
      %v1817 = vsel %vm1814, %v1816, %v1812
      %v1818 = vmul.f32 1.0, %v1817
      %v1819 = vrcp.pop %v1643
      %v1820 = vmul.f32 %v1643, %v1819
      %v1821 = vsub.f32 1.0, %v1820
      %v1822 = vmul.f32 %v1819, %v1821
      %v1823 = vadd.f32 %v1819, %v1822
      %vm1824 = vweird.f32 %v1643
      %vm1825 = vweird.f32 %v1819
      %vm1826 = vmor %vm1824, %vm1825
      %v1827 = vsel %vm1826, %v1819, %v1823
      %v1828 = vand.u32 2147483647, %v1643
      %vm1829 = vcmp.eq.f32.partialorder %v1828, 8.507059e+37
      %v1830 = vand.u32 %v1643, 2147483648
      %v1831 = vor.u32 1.1754944e-38, %v1830
      %v1832 = vsel %vm1829, %v1831, %v1827
      %v1833 = vmul.f32 1.0, %v1832
      %v1834 = vrcp.pop %v1644
      %v1835 = vmul.f32 %v1644, %v1834
      %v1836 = vsub.f32 1.0, %v1835
      %v1837 = vmul.f32 %v1834, %v1836
      %v1838 = vadd.f32 %v1834, %v1837
      %vm1839 = vweird.f32 %v1644
      %vm1840 = vweird.f32 %v1834
      %vm1841 = vmor %vm1839, %vm1840
      %v1842 = vsel %vm1841, %v1834, %v1838
      %v1843 = vand.u32 2147483647, %v1644
      %vm1844 = vcmp.eq.f32.partialorder %v1843, 8.507059e+37
      %v1845 = vand.u32 %v1644, 2147483648
      %v1846 = vor.u32 1.1754944e-38, %v1845
      %v1847 = vsel %vm1844, %v1846, %v1842
      %v1848 = vmul.f32 1.0, %v1847
      %v1849 = vrcp.pop %v1645
      %v1850 = vmul.f32 %v1645, %v1849
      %v1851 = vsub.f32 1.0, %v1850
      %v1852 = vmul.f32 %v1849, %v1851
      %v1853 = vadd.f32 %v1849, %v1852
      %vm1854 = vweird.f32 %v1645
      %vm1855 = vweird.f32 %v1849
      %vm1856 = vmor %vm1854, %vm1855
      %v1857 = vsel %vm1856, %v1849, %v1853
      %v1858 = vand.u32 2147483647, %v1645
      %vm1859 = vcmp.eq.f32.partialorder %v1858, 8.507059e+37
      %v1860 = vand.u32 %v1645, 2147483648
      %v1861 = vor.u32 1.1754944e-38, %v1860
      %v1862 = vsel %vm1859, %v1861, %v1857
      %v1863 = vmul.f32 1.0, %v1862
      %v1864 = vrcp.pop %v1646
      %v1865 = vmul.f32 %v1646, %v1864
      %v1866 = vsub.f32 1.0, %v1865
      %v1867 = vmul.f32 %v1864, %v1866
      %v1868 = vadd.f32 %v1864, %v1867
      %vm1869 = vweird.f32 %v1646
      %vm1870 = vweird.f32 %v1864
      %vm1871 = vmor %vm1869, %vm1870
      %v1872 = vsel %vm1871, %v1864, %v1868
      %v1873 = vand.u32 2147483647, %v1646
      %vm1874 = vcmp.eq.f32.partialorder %v1873, 8.507059e+37
      %v1875 = vand.u32 %v1646, 2147483648
      %v1876 = vor.u32 1.1754944e-38, %v1875
      %v1877 = vsel %vm1874, %v1876, %v1872
      %v1878 = vmul.f32 1.0, %v1877
      %v1879 = vrcp.pop %v1647
      %v1880 = vmul.f32 %v1647, %v1879
      %v1881 = vsub.f32 1.0, %v1880
      %v1882 = vmul.f32 %v1879, %v1881
      %v1883 = vadd.f32 %v1879, %v1882
      %vm1884 = vweird.f32 %v1647
      %vm1885 = vweird.f32 %v1879
      %vm1886 = vmor %vm1884, %vm1885
      %v1887 = vsel %vm1886, %v1879, %v1883
      %v1888 = vand.u32 2147483647, %v1647
      %vm1889 = vcmp.eq.f32.partialorder %v1888, 8.507059e+37
      %v1890 = vand.u32 %v1647, 2147483648
      %v1891 = vor.u32 1.1754944e-38, %v1890
      %v1892 = vsel %vm1889, %v1891, %v1887
      %v1893 = vmul.f32 1.0, %v1892
      %v1894 = vrcp.pop %v1648
      %v1895 = vmul.f32 %v1648, %v1894
      %v1896 = vsub.f32 1.0, %v1895
      %v1897 = vmul.f32 %v1894, %v1896
      %v1898 = vadd.f32 %v1894, %v1897
      %vm1899 = vweird.f32 %v1648
      %vm1900 = vweird.f32 %v1894
      %vm1901 = vmor %vm1899, %vm1900
      %v1902 = vsel %vm1901, %v1894, %v1898
      %v1903 = vand.u32 2147483647, %v1648
      %vm1904 = vcmp.eq.f32.partialorder %v1903, 8.507059e+37
      %v1905 = vand.u32 %v1648, 2147483648
      %v1906 = vor.u32 1.1754944e-38, %v1905
      %v1907 = vsel %vm1904, %v1906, %v1902
      %v1908 = vmul.f32 1.0, %v1907
      %v1909 = vrcp.pop %v1649
      %v1910 = vmul.f32 %v1649, %v1909
      %v1911 = vsub.f32 1.0, %v1910
      %v1912 = vmul.f32 %v1909, %v1911
      %v1913 = vadd.f32 %v1909, %v1912
      %vm1914 = vweird.f32 %v1649
      %vm1915 = vweird.f32 %v1909
      %vm1916 = vmor %vm1914, %vm1915
      %v1917 = vsel %vm1916, %v1909, %v1913
      %v1918 = vand.u32 2147483647, %v1649
      %vm1919 = vcmp.eq.f32.partialorder %v1918, 8.507059e+37
      %v1920 = vand.u32 %v1649, 2147483648
      %v1921 = vor.u32 1.1754944e-38, %v1920
      %v1922 = vsel %vm1919, %v1921, %v1917
      %v1923 = vmul.f32 1.0, %v1922
      %v1924 = vrcp.pop %v1650
      %v1925 = vmul.f32 %v1650, %v1924
      %v1926 = vsub.f32 1.0, %v1925
      %v1927 = vmul.f32 %v1924, %v1926
      %v1928 = vadd.f32 %v1924, %v1927
      %vm1929 = vweird.f32 %v1650
      %vm1930 = vweird.f32 %v1924
      %vm1931 = vmor %vm1929, %vm1930
      %v1932 = vsel %vm1931, %v1924, %v1928
      %v1933 = vand.u32 2147483647, %v1650
      %vm1934 = vcmp.eq.f32.partialorder %v1933, 8.507059e+37
      %v1935 = vand.u32 %v1650, 2147483648
      %v1936 = vor.u32 1.1754944e-38, %v1935
      %v1937 = vsel %vm1934, %v1936, %v1932
      %v1938 = vmul.f32 1.0, %v1937
      %v1939 = vrcp.pop %v1651
      %v1940 = vmul.f32 %v1651, %v1939
      %v1941 = vsub.f32 1.0, %v1940
      %v1942 = vmul.f32 %v1939, %v1941
      %v1943 = vadd.f32 %v1939, %v1942
      %vm1944 = vweird.f32 %v1651
      %vm1945 = vweird.f32 %v1939
      %vm1946 = vmor %vm1944, %vm1945
      %v1947 = vsel %vm1946, %v1939, %v1943
      %v1948 = vand.u32 2147483647, %v1651
      %vm1949 = vcmp.eq.f32.partialorder %v1948, 8.507059e+37
      %v1950 = vand.u32 %v1651, 2147483648
      %v1951 = vor.u32 1.1754944e-38, %v1950
      %v1952 = vsel %vm1949, %v1951, %v1947
      %v1953 = vmul.f32 1.0, %v1952
      %v1954 = vrcp.pop %v1652
      %v1955 = vmul.f32 %v1652, %v1954
      %v1956 = vsub.f32 1.0, %v1955
      %v1957 = vmul.f32 %v1954, %v1956
      %v1958 = vadd.f32 %v1954, %v1957
      %vm1959 = vweird.f32 %v1652
      %vm1960 = vweird.f32 %v1954
      %vm1961 = vmor %vm1959, %vm1960
      %v1962 = vsel %vm1961, %v1954, %v1958
      %v1963 = vand.u32 2147483647, %v1652
      %vm1964 = vcmp.eq.f32.partialorder %v1963, 8.507059e+37
      %v1965 = vand.u32 %v1652, 2147483648
      %v1966 = vor.u32 1.1754944e-38, %v1965
      %v1967 = vsel %vm1964, %v1966, %v1962
      %v1968 = vmul.f32 1.0, %v1967
      %v1969 = vrcp.pop %v1653
      %v1970 = vmul.f32 %v1653, %v1969
      %v1971 = vsub.f32 1.0, %v1970
      %v1972 = vmul.f32 %v1969, %v1971
      %v1973 = vadd.f32 %v1969, %v1972
      %vm1974 = vweird.f32 %v1653
      %vm1975 = vweird.f32 %v1969
      %vm1976 = vmor %vm1974, %vm1975
      %v1977 = vsel %vm1976, %v1969, %v1973
      %v1978 = vand.u32 2147483647, %v1653
      %vm1979 = vcmp.eq.f32.partialorder %v1978, 8.507059e+37
      %v1980 = vand.u32 %v1653, 2147483648
      %v1981 = vor.u32 1.1754944e-38, %v1980
      %v1982 = vsel %vm1979, %v1981, %v1977
      %v1983 = vmul.f32 1.0, %v1982
      %v1984 = vrcp.pop %v1654
      %v1985 = vmul.f32 %v1654, %v1984
      %v1986 = vsub.f32 1.0, %v1985
      %v1987 = vmul.f32 %v1984, %v1986
      %v1988 = vadd.f32 %v1984, %v1987
      %vm1989 = vweird.f32 %v1654
      %vm1990 = vweird.f32 %v1984
      %vm1991 = vmor %vm1989, %vm1990
      %v1992 = vsel %vm1991, %v1984, %v1988
      %v1993 = vand.u32 2147483647, %v1654
      %vm1994 = vcmp.eq.f32.partialorder %v1993, 8.507059e+37
      %v1995 = vand.u32 %v1654, 2147483648
      %v1996 = vor.u32 1.1754944e-38, %v1995
      %v1997 = vsel %vm1994, %v1996, %v1992
      %v1998 = vmul.f32 1.0, %v1997
      %v1999 = vrcp.pop %v1655
      %v2000 = vmul.f32 %v1655, %v1999
      %v2001 = vsub.f32 1.0, %v2000
      %v2002 = vmul.f32 %v1999, %v2001
      %v2003 = vadd.f32 %v1999, %v2002
      %vm2004 = vweird.f32 %v1655
      %vm2005 = vweird.f32 %v1999
      %vm2006 = vmor %vm2004, %vm2005
      %v2007 = vsel %vm2006, %v1999, %v2003
      %v2008 = vand.u32 2147483647, %v1655
      %vm2009 = vcmp.eq.f32.partialorder %v2008, 8.507059e+37
      %v2010 = vand.u32 %v1655, 2147483648
      %v2011 = vor.u32 1.1754944e-38, %v2010
      %v2012 = vsel %vm2009, %v2011, %v2007
      %v2013 = vmul.f32 1.0, %v2012
      %v2014 = vrcp.pop %v1656
      %v2015 = vmul.f32 %v1656, %v2014
      %v2016 = vsub.f32 1.0, %v2015
      %v2017 = vmul.f32 %v2014, %v2016
      %v2018 = vadd.f32 %v2014, %v2017
      %vm2019 = vweird.f32 %v1656
      %vm2020 = vweird.f32 %v2014
      %vm2021 = vmor %vm2019, %vm2020
      %v2022 = vsel %vm2021, %v2014, %v2018
      %v2023 = vand.u32 2147483647, %v1656
      %vm2024 = vcmp.eq.f32.partialorder %v2023, 8.507059e+37
      %v2025 = vand.u32 %v1656, 2147483648
      %v2026 = vor.u32 1.1754944e-38, %v2025
      %v2027 = vsel %vm2024, %v2026, %v2022
      %v2028 = vmul.f32 1.0, %v2027
      %v2029 = vrcp.pop %v1657
      %v2030 = vmul.f32 %v1657, %v2029
      %v2031 = vsub.f32 1.0, %v2030
      %v2032 = vmul.f32 %v2029, %v2031
      %v2033 = vadd.f32 %v2029, %v2032
      %vm2034 = vweird.f32 %v1657
      %vm2035 = vweird.f32 %v2029
      %vm2036 = vmor %vm2034, %vm2035
      %v2037 = vsel %vm2036, %v2029, %v2033
      %v2038 = vand.u32 2147483647, %v1657
      %vm2039 = vcmp.eq.f32.partialorder %v2038, 8.507059e+37
      %v2040 = vand.u32 %v1657, 2147483648
      %v2041 = vor.u32 1.1754944e-38, %v2040
      %v2042 = vsel %vm2039, %v2041, %v2037
      %v2043 = vmul.f32 1.0, %v2042
      %v2044 = vrcp.pop %v1658
      %v2045 = vmul.f32 %v1658, %v2044
      %v2046 = vsub.f32 1.0, %v2045
      %v2047 = vmul.f32 %v2044, %v2046
      %v2048 = vadd.f32 %v2044, %v2047
      %vm2049 = vweird.f32 %v1658
      %vm2050 = vweird.f32 %v2044
      %vm2051 = vmor %vm2049, %vm2050
      %v2052 = vsel %vm2051, %v2044, %v2048
      %v2053 = vand.u32 2147483647, %v1658
      %vm2054 = vcmp.eq.f32.partialorder %v2053, 8.507059e+37
      %v2055 = vand.u32 %v1658, 2147483648
      %v2056 = vor.u32 1.1754944e-38, %v2055
      %v2057 = vsel %vm2054, %v2056, %v2052
      %v2058 = vmul.f32 1.0, %v2057
      %v2059 = vrcp.pop %v1659
      %v2060 = vmul.f32 %v1659, %v2059
      %v2061 = vsub.f32 1.0, %v2060
      %v2062 = vmul.f32 %v2059, %v2061
      %v2063 = vadd.f32 %v2059, %v2062
      %vm2064 = vweird.f32 %v1659
      %vm2065 = vweird.f32 %v2059
      %vm2066 = vmor %vm2064, %vm2065
      %v2067 = vsel %vm2066, %v2059, %v2063
      %v2068 = vand.u32 2147483647, %v1659
      %vm2069 = vcmp.eq.f32.partialorder %v2068, 8.507059e+37
      %v2070 = vand.u32 %v1659, 2147483648
      %v2071 = vor.u32 1.1754944e-38, %v2070
      %v2072 = vsel %vm2069, %v2071, %v2067
      %v2073 = vmul.f32 1.0, %v2072
      %v2074 = vrcp.pop %v1660
      %v2075 = vmul.f32 %v1660, %v2074
      %v2076 = vsub.f32 1.0, %v2075
      %v2077 = vmul.f32 %v2074, %v2076
      %v2078 = vadd.f32 %v2074, %v2077
      %vm2079 = vweird.f32 %v1660
      %vm2080 = vweird.f32 %v2074
      %vm2081 = vmor %vm2079, %vm2080
      %v2082 = vsel %vm2081, %v2074, %v2078
      %v2083 = vand.u32 2147483647, %v1660
      %vm2084 = vcmp.eq.f32.partialorder %v2083, 8.507059e+37
      %v2085 = vand.u32 %v1660, 2147483648
      %v2086 = vor.u32 1.1754944e-38, %v2085
      %v2087 = vsel %vm2084, %v2086, %v2082
      %v2088 = vmul.f32 1.0, %v2087
      %v2089 = vrcp.pop %v1661
      %v2090 = vmul.f32 %v1661, %v2089
      %v2091 = vsub.f32 1.0, %v2090
      %v2092 = vmul.f32 %v2089, %v2091
      %v2093 = vadd.f32 %v2089, %v2092
      %vm2094 = vweird.f32 %v1661
      %vm2095 = vweird.f32 %v2089
      %vm2096 = vmor %vm2094, %vm2095
      %v2097 = vsel %vm2096, %v2089, %v2093
      %v2098 = vand.u32 2147483647, %v1661
      %vm2099 = vcmp.eq.f32.partialorder %v2098, 8.507059e+37
      %v2100 = vand.u32 %v1661, 2147483648
      %v2101 = vor.u32 1.1754944e-38, %v2100
      %v2102 = vsel %vm2099, %v2101, %v2097
      %v2103 = vmul.f32 1.0, %v2102
      %v2104 = vrcp.pop %v1662
      %v2105 = vmul.f32 %v1662, %v2104
      %v2106 = vsub.f32 1.0, %v2105
      %v2107 = vmul.f32 %v2104, %v2106
      %v2108 = vadd.f32 %v2104, %v2107
      %vm2109 = vweird.f32 %v1662
      %vm2110 = vweird.f32 %v2104
      %vm2111 = vmor %vm2109, %vm2110
      %v2112 = vsel %vm2111, %v2104, %v2108
      %v2113 = vand.u32 2147483647, %v1662
      %vm2114 = vcmp.eq.f32.partialorder %v2113, 8.507059e+37
      %v2115 = vand.u32 %v1662, 2147483648
      %v2116 = vor.u32 1.1754944e-38, %v2115
      %v2117 = vsel %vm2114, %v2116, %v2112
      %v2118 = vmul.f32 1.0, %v2117
      %v2119 = vrcp.pop %v1663
      %v2120 = vmul.f32 %v1663, %v2119
      %v2121 = vsub.f32 1.0, %v2120
      %v2122 = vmul.f32 %v2119, %v2121
      %v2123 = vadd.f32 %v2119, %v2122
      %vm2124 = vweird.f32 %v1663
      %vm2125 = vweird.f32 %v2119
      %vm2126 = vmor %vm2124, %vm2125
      %v2127 = vsel %vm2126, %v2119, %v2123
      %v2128 = vand.u32 2147483647, %v1663
      %vm2129 = vcmp.eq.f32.partialorder %v2128, 8.507059e+37
      %v2130 = vand.u32 %v1663, 2147483648
      %v2131 = vor.u32 1.1754944e-38, %v2130
      %v2132 = vsel %vm2129, %v2131, %v2127
      %v2133 = vmul.f32 1.0, %v2132
      %v2134 = vrcp.pop %v1664
      %v2135 = vmul.f32 %v1664, %v2134
      %v2136 = vsub.f32 1.0, %v2135
      %v2137 = vmul.f32 %v2134, %v2136
      %v2138 = vadd.f32 %v2134, %v2137
      %vm2139 = vweird.f32 %v1664
      %vm2140 = vweird.f32 %v2134
      %vm2141 = vmor %vm2139, %vm2140
      %v2142 = vsel %vm2141, %v2134, %v2138
      %v2143 = vand.u32 2147483647, %v1664
      %vm2144 = vcmp.eq.f32.partialorder %v2143, 8.507059e+37
      %v2145 = vand.u32 %v1664, 2147483648
      %v2146 = vor.u32 1.1754944e-38, %v2145
      %v2147 = vsel %vm2144, %v2146, %v2142
      %v2148 = vmul.f32 1.0, %v2147
      %v2149 = vrcp.pop %v1665
      %v2150 = vmul.f32 %v1665, %v2149
      %v2151 = vsub.f32 1.0, %v2150
      %v2152 = vmul.f32 %v2149, %v2151
      %v2153 = vadd.f32 %v2149, %v2152
      %vm2154 = vweird.f32 %v1665
      %vm2155 = vweird.f32 %v2149
      %vm2156 = vmor %vm2154, %vm2155
      %v2157 = vsel %vm2156, %v2149, %v2153
      %v2158 = vand.u32 2147483647, %v1665
      %vm2159 = vcmp.eq.f32.partialorder %v2158, 8.507059e+37
      %v2160 = vand.u32 %v1665, 2147483648
      %v2161 = vor.u32 1.1754944e-38, %v2160
      %v2162 = vsel %vm2159, %v2161, %v2157
      %v2163 = vmul.f32 1.0, %v2162
      %v2164 = vrcp.pop %v1666
      %v2165 = vmul.f32 %v1666, %v2164
      %v2166 = vsub.f32 1.0, %v2165
      %v2167 = vmul.f32 %v2164, %v2166
      %v2168 = vadd.f32 %v2164, %v2167
      %vm2169 = vweird.f32 %v1666
      %vm2170 = vweird.f32 %v2164
      %vm2171 = vmor %vm2169, %vm2170
      %v2172 = vsel %vm2171, %v2164, %v2168
      %v2173 = vand.u32 2147483647, %v1666
      %vm2174 = vcmp.eq.f32.partialorder %v2173, 8.507059e+37
      %v2175 = vand.u32 %v1666, 2147483648
      %v2176 = vor.u32 1.1754944e-38, %v2175
      %v2177 = vsel %vm2174, %v2176, %v2172
      %v2178 = vmul.f32 1.0, %v2177
      %v2179 = vrcp.pop %v1667
      %v2180 = vmul.f32 %v1667, %v2179
      %v2181 = vsub.f32 1.0, %v2180
      %v2182 = vmul.f32 %v2179, %v2181
      %v2183 = vadd.f32 %v2179, %v2182
      %vm2184 = vweird.f32 %v1667
      %vm2185 = vweird.f32 %v2179
      %vm2186 = vmor %vm2184, %vm2185
      %v2187 = vsel %vm2186, %v2179, %v2183
      %v2188 = vand.u32 2147483647, %v1667
      %vm2189 = vcmp.eq.f32.partialorder %v2188, 8.507059e+37
      %v2190 = vand.u32 %v1667, 2147483648
      %v2191 = vor.u32 1.1754944e-38, %v2190
      %v2192 = vsel %vm2189, %v2191, %v2187
      %v2193 = vmul.f32 1.0, %v2192
      %v2194 = vrcp.pop %v1668
      %v2195 = vmul.f32 %v1668, %v2194
      %v2196 = vsub.f32 1.0, %v2195
      %v2197 = vmul.f32 %v2194, %v2196
      %v2198 = vadd.f32 %v2194, %v2197
      %vm2199 = vweird.f32 %v1668
      %vm2200 = vweird.f32 %v2194
      %vm2201 = vmor %vm2199, %vm2200
      %v2202 = vsel %vm2201, %v2194, %v2198
      %v2203 = vand.u32 2147483647, %v1668
      %vm2204 = vcmp.eq.f32.partialorder %v2203, 8.507059e+37
      %v2205 = vand.u32 %v1668, 2147483648
      %v2206 = vor.u32 1.1754944e-38, %v2205
      %v2207 = vsel %vm2204, %v2206, %v2202
      %v2208 = vmul.f32 1.0, %v2207
      %v2209 = vrcp.pop %v1669
      %v2210 = vmul.f32 %v1669, %v2209
      %v2211 = vsub.f32 1.0, %v2210
      %v2212 = vmul.f32 %v2209, %v2211
      %v2213 = vadd.f32 %v2209, %v2212
      %vm2214 = vweird.f32 %v1669
      %vm2215 = vweird.f32 %v2209
      %vm2216 = vmor %vm2214, %vm2215
      %v2217 = vsel %vm2216, %v2209, %v2213
      %v2218 = vand.u32 2147483647, %v1669
      %vm2219 = vcmp.eq.f32.partialorder %v2218, 8.507059e+37
      %v2220 = vand.u32 %v1669, 2147483648
      %v2221 = vor.u32 1.1754944e-38, %v2220
      %v2222 = vsel %vm2219, %v2221, %v2217
      %v2223 = vmul.f32 1.0, %v2222
      %v2224 = vrcp.pop %v1670
      %v2225 = vmul.f32 %v1670, %v2224
      %v2226 = vsub.f32 1.0, %v2225
      %v2227 = vmul.f32 %v2224, %v2226
      %v2228 = vadd.f32 %v2224, %v2227
      %vm2229 = vweird.f32 %v1670
      %vm2230 = vweird.f32 %v2224
      %vm2231 = vmor %vm2229, %vm2230
      %v2232 = vsel %vm2231, %v2224, %v2228
      %v2233 = vand.u32 2147483647, %v1670
      %vm2234 = vcmp.eq.f32.partialorder %v2233, 8.507059e+37
      %v2235 = vand.u32 %v1670, 2147483648
      %v2236 = vor.u32 1.1754944e-38, %v2235
      %v2237 = vsel %vm2234, %v2236, %v2232
      %v2238 = vmul.f32 1.0, %v2237
      %v2239 = vrcp.pop %v1671
      %v2240 = vmul.f32 %v1671, %v2239
      %v2241 = vsub.f32 1.0, %v2240
      %v2242 = vmul.f32 %v2239, %v2241
      %v2243 = vadd.f32 %v2239, %v2242
      %vm2244 = vweird.f32 %v1671
      %vm2245 = vweird.f32 %v2239
      %vm2246 = vmor %vm2244, %vm2245
      %v2247 = vsel %vm2246, %v2239, %v2243
      %v2248 = vand.u32 2147483647, %v1671
      %vm2249 = vcmp.eq.f32.partialorder %v2248, 8.507059e+37
      %v2250 = vand.u32 %v1671, 2147483648
      %v2251 = vor.u32 1.1754944e-38, %v2250
      %v2252 = vsel %vm2249, %v2251, %v2247
      %v2253 = vmul.f32 1.0, %v2252
      %v2254 = vrcp.pop %v1672
      %v2255 = vmul.f32 %v1672, %v2254
      %v2256 = vsub.f32 1.0, %v2255
      %v2257 = vmul.f32 %v2254, %v2256
      %v2258 = vadd.f32 %v2254, %v2257
      %vm2259 = vweird.f32 %v1672
      %vm2260 = vweird.f32 %v2254
      %vm2261 = vmor %vm2259, %vm2260
      %v2262 = vsel %vm2261, %v2254, %v2258
      %v2263 = vand.u32 2147483647, %v1672
      %vm2264 = vcmp.eq.f32.partialorder %v2263, 8.507059e+37
      %v2265 = vand.u32 %v1672, 2147483648
      %v2266 = vor.u32 1.1754944e-38, %v2265
      %v2267 = vsel %vm2264, %v2266, %v2262
      %v2268 = vmul.f32 1.0, %v2267
      %v2269 = vrcp.pop %v1673
      %v2270 = vmul.f32 %v1673, %v2269
      %v2271 = vsub.f32 1.0, %v2270
      %v2272 = vmul.f32 %v2269, %v2271
      %v2273 = vadd.f32 %v2269, %v2272
      %vm2274 = vweird.f32 %v1673
      %vm2275 = vweird.f32 %v2269
      %vm2276 = vmor %vm2274, %vm2275
      %v2277 = vsel %vm2276, %v2269, %v2273
      %v2278 = vand.u32 2147483647, %v1673
      %vm2279 = vcmp.eq.f32.partialorder %v2278, 8.507059e+37
      %v2280 = vand.u32 %v1673, 2147483648
      %v2281 = vor.u32 1.1754944e-38, %v2280
      %v2282 = vsel %vm2279, %v2281, %v2277
      %v2283 = vmul.f32 1.0, %v2282
      %v2284 = vrcp.pop %v1674
      %v2285 = vmul.f32 %v1674, %v2284
      %v2286 = vsub.f32 1.0, %v2285
      %v2287 = vmul.f32 %v2284, %v2286
      %v2288 = vadd.f32 %v2284, %v2287
      %vm2289 = vweird.f32 %v1674
      %vm2290 = vweird.f32 %v2284
      %vm2291 = vmor %vm2289, %vm2290
      %v2292 = vsel %vm2291, %v2284, %v2288
      %v2293 = vand.u32 2147483647, %v1674
      %vm2294 = vcmp.eq.f32.partialorder %v2293, 8.507059e+37
      %v2295 = vand.u32 %v1674, 2147483648
      %v2296 = vor.u32 1.1754944e-38, %v2295
      %v2297 = vsel %vm2294, %v2296, %v2292
      %v2298 = vmul.f32 1.0, %v2297
      %v2299 = vrcp.pop %v1675
      %v2300 = vmul.f32 %v1675, %v2299
      %v2301 = vsub.f32 1.0, %v2300
      %v2302 = vmul.f32 %v2299, %v2301
      %v2303 = vadd.f32 %v2299, %v2302
      %vm2304 = vweird.f32 %v1675
      %vm2305 = vweird.f32 %v2299
      %vm2306 = vmor %vm2304, %vm2305
      %v2307 = vsel %vm2306, %v2299, %v2303
      %v2308 = vand.u32 2147483647, %v1675
      %vm2309 = vcmp.eq.f32.partialorder %v2308, 8.507059e+37
      %v2310 = vand.u32 %v1675, 2147483648
      %v2311 = vor.u32 1.1754944e-38, %v2310
      %v2312 = vsel %vm2309, %v2311, %v2307
      %v2313 = vmul.f32 1.0, %v2312
      %v2314 = vrcp.pop %v1676
      %v2315 = vmul.f32 %v1676, %v2314
      %v2316 = vsub.f32 1.0, %v2315
      %v2317 = vmul.f32 %v2314, %v2316
      %v2318 = vadd.f32 %v2314, %v2317
      %vm2319 = vweird.f32 %v1676
      %vm2320 = vweird.f32 %v2314
      %vm2321 = vmor %vm2319, %vm2320
      %v2322 = vsel %vm2321, %v2314, %v2318
      %v2323 = vand.u32 2147483647, %v1676
      %vm2324 = vcmp.eq.f32.partialorder %v2323, 8.507059e+37
      %v2325 = vand.u32 %v1676, 2147483648
      %v2326 = vor.u32 1.1754944e-38, %v2325
      %v2327 = vsel %vm2324, %v2326, %v2322
      %v2328 = vmul.f32 1.0, %v2327
      %v2329 = vrcp.pop %v1677
      %v2330 = vmul.f32 %v1677, %v2329
      %v2331 = vsub.f32 1.0, %v2330
      %v2332 = vmul.f32 %v2329, %v2331
      %v2333 = vadd.f32 %v2329, %v2332
      %vm2334 = vweird.f32 %v1677
      %vm2335 = vweird.f32 %v2329
      %vm2336 = vmor %vm2334, %vm2335
      %v2337 = vsel %vm2336, %v2329, %v2333
      %v2338 = vand.u32 2147483647, %v1677
      %vm2339 = vcmp.eq.f32.partialorder %v2338, 8.507059e+37
      %v2340 = vand.u32 %v1677, 2147483648
      %v2341 = vor.u32 1.1754944e-38, %v2340
      %v2342 = vsel %vm2339, %v2341, %v2337
      %v2343 = vmul.f32 1.0, %v2342
      %v2344 = vrcp.pop %v1678
      %v2345 = vmul.f32 %v1678, %v2344
      %v2346 = vsub.f32 1.0, %v2345
      %v2347 = vmul.f32 %v2344, %v2346
      %v2348 = vadd.f32 %v2344, %v2347
      %vm2349 = vweird.f32 %v1678
      %vm2350 = vweird.f32 %v2344
      %vm2351 = vmor %vm2349, %vm2350
      %v2352 = vsel %vm2351, %v2344, %v2348
      %v2353 = vand.u32 2147483647, %v1678
      %vm2354 = vcmp.eq.f32.partialorder %v2353, 8.507059e+37
      %v2355 = vand.u32 %v1678, 2147483648
      %v2356 = vor.u32 1.1754944e-38, %v2355
      %v2357 = vsel %vm2354, %v2356, %v2352
      %v2358 = vmul.f32 1.0, %v2357
      %v2359 = vrcp.pop %v1679
      %v2360 = vmul.f32 %v1679, %v2359
      %v2361 = vsub.f32 1.0, %v2360
      %v2362 = vmul.f32 %v2359, %v2361
      %v2363 = vadd.f32 %v2359, %v2362
      %vm2364 = vweird.f32 %v1679
      %vm2365 = vweird.f32 %v2359
      %vm2366 = vmor %vm2364, %vm2365
      %v2367 = vsel %vm2366, %v2359, %v2363
      %v2368 = vand.u32 2147483647, %v1679
      %vm2369 = vcmp.eq.f32.partialorder %v2368, 8.507059e+37
      %v2370 = vand.u32 %v1679, 2147483648
      %v2371 = vor.u32 1.1754944e-38, %v2370
      %v2372 = vsel %vm2369, %v2371, %v2367
      %v2373 = vmul.f32 1.0, %v2372
      %v2374 = vrcp.pop %v1680
      %v2375 = vmul.f32 %v1680, %v2374
      %v2376 = vsub.f32 1.0, %v2375
      %v2377 = vmul.f32 %v2374, %v2376
      %v2378 = vadd.f32 %v2374, %v2377
      %vm2379 = vweird.f32 %v1680
      %vm2380 = vweird.f32 %v2374
      %vm2381 = vmor %vm2379, %vm2380
      %v2382 = vsel %vm2381, %v2374, %v2378
      %v2383 = vand.u32 2147483647, %v1680
      %vm2384 = vcmp.eq.f32.partialorder %v2383, 8.507059e+37
      %v2385 = vand.u32 %v1680, 2147483648
      %v2386 = vor.u32 1.1754944e-38, %v2385
      %v2387 = vsel %vm2384, %v2386, %v2382
      %v2388 = vmul.f32 1.0, %v2387
      %v2389 = vrcp.pop %v1681
      %v2390 = vmul.f32 %v1681, %v2389
      %v2391 = vsub.f32 1.0, %v2390
      %v2392 = vmul.f32 %v2389, %v2391
      %v2393 = vadd.f32 %v2389, %v2392
      %vm2394 = vweird.f32 %v1681
      %vm2395 = vweird.f32 %v2389
      %vm2396 = vmor %vm2394, %vm2395
      %v2397 = vsel %vm2396, %v2389, %v2393
      %v2398 = vand.u32 2147483647, %v1681
      %vm2399 = vcmp.eq.f32.partialorder %v2398, 8.507059e+37
      %v2400 = vand.u32 %v1681, 2147483648
      %v2401 = vor.u32 1.1754944e-38, %v2400
      %v2402 = vsel %vm2399, %v2401, %v2397
      %v2403 = vmul.f32 1.0, %v2402
      %v2404 = vrcp.pop %v1682
      %v2405 = vmul.f32 %v1682, %v2404
      %v2406 = vsub.f32 1.0, %v2405
      %v2407 = vmul.f32 %v2404, %v2406
      %v2408 = vadd.f32 %v2404, %v2407
      %vm2409 = vweird.f32 %v1682
      %vm2410 = vweird.f32 %v2404
      %vm2411 = vmor %vm2409, %vm2410
      %v2412 = vsel %vm2411, %v2404, %v2408
      %v2413 = vand.u32 2147483647, %v1682
      %vm2414 = vcmp.eq.f32.partialorder %v2413, 8.507059e+37
      %v2415 = vand.u32 %v1682, 2147483648
      %v2416 = vor.u32 1.1754944e-38, %v2415
      %v2417 = vsel %vm2414, %v2416, %v2412
      %v2418 = vmul.f32 1.0, %v2417
      %v2419 = vrcp.pop %v1683
      %v2420 = vmul.f32 %v1683, %v2419
      %v2421 = vsub.f32 1.0, %v2420
      %v2422 = vmul.f32 %v2419, %v2421
      %v2423 = vadd.f32 %v2419, %v2422
      %vm2424 = vweird.f32 %v1683
      %vm2425 = vweird.f32 %v2419
      %vm2426 = vmor %vm2424, %vm2425
      %v2427 = vsel %vm2426, %v2419, %v2423
      %v2428 = vand.u32 2147483647, %v1683
      %vm2429 = vcmp.eq.f32.partialorder %v2428, 8.507059e+37
      %v2430 = vand.u32 %v1683, 2147483648
      %v2431 = vor.u32 1.1754944e-38, %v2430
      %v2432 = vsel %vm2429, %v2431, %v2427
      %v2433 = vmul.f32 1.0, %v2432
      %v2434 = vrcp.pop %v1684
      %v2435 = vmul.f32 %v1684, %v2434
      %v2436 = vsub.f32 1.0, %v2435
      %v2437 = vmul.f32 %v2434, %v2436
      %v2438 = vadd.f32 %v2434, %v2437
      %vm2439 = vweird.f32 %v1684
      %vm2440 = vweird.f32 %v2434
      %vm2441 = vmor %vm2439, %vm2440
      %v2442 = vsel %vm2441, %v2434, %v2438
      %v2443 = vand.u32 2147483647, %v1684
      %vm2444 = vcmp.eq.f32.partialorder %v2443, 8.507059e+37
      %v2445 = vand.u32 %v1684, 2147483648
      %v2446 = vor.u32 1.1754944e-38, %v2445
      %v2447 = vsel %vm2444, %v2446, %v2442
      %v2448 = vmul.f32 1.0, %v2447
      %v2449 = vrcp.pop %v1685
      %v2450 = vmul.f32 %v1685, %v2449
      %v2451 = vsub.f32 1.0, %v2450
      %v2452 = vmul.f32 %v2449, %v2451
      %v2453 = vadd.f32 %v2449, %v2452
      %vm2454 = vweird.f32 %v1685
      %vm2455 = vweird.f32 %v2449
      %vm2456 = vmor %vm2454, %vm2455
      %v2457 = vsel %vm2456, %v2449, %v2453
      %v2458 = vand.u32 2147483647, %v1685
      %vm2459 = vcmp.eq.f32.partialorder %v2458, 8.507059e+37
      %v2460 = vand.u32 %v1685, 2147483648
      %v2461 = vor.u32 1.1754944e-38, %v2460
      %v2462 = vsel %vm2459, %v2461, %v2457
      %v2463 = vmul.f32 1.0, %v2462
      %v2464 = vrcp.pop %v1686
      %v2465 = vmul.f32 %v1686, %v2464
      %v2466 = vsub.f32 1.0, %v2465
      %v2467 = vmul.f32 %v2464, %v2466
      %v2468 = vadd.f32 %v2464, %v2467
      %vm2469 = vweird.f32 %v1686
      %vm2470 = vweird.f32 %v2464
      %vm2471 = vmor %vm2469, %vm2470
      %v2472 = vsel %vm2471, %v2464, %v2468
      %v2473 = vand.u32 2147483647, %v1686
      %vm2474 = vcmp.eq.f32.partialorder %v2473, 8.507059e+37
      %v2475 = vand.u32 %v1686, 2147483648
      %v2476 = vor.u32 1.1754944e-38, %v2475
      %v2477 = vsel %vm2474, %v2476, %v2472
      %v2478 = vmul.f32 1.0, %v2477
      %v2479 = vrcp.pop %v1687
      %v2480 = vmul.f32 %v1687, %v2479
      %v2481 = vsub.f32 1.0, %v2480
      %v2482 = vmul.f32 %v2479, %v2481
      %v2483 = vadd.f32 %v2479, %v2482
      %vm2484 = vweird.f32 %v1687
      %vm2485 = vweird.f32 %v2479
      %vm2486 = vmor %vm2484, %vm2485
      %v2487 = vsel %vm2486, %v2479, %v2483
      %v2488 = vand.u32 2147483647, %v1687
      %vm2489 = vcmp.eq.f32.partialorder %v2488, 8.507059e+37
      %v2490 = vand.u32 %v1687, 2147483648
      %v2491 = vor.u32 1.1754944e-38, %v2490
      %v2492 = vsel %vm2489, %v2491, %v2487
      %v2493 = vmul.f32 1.0, %v2492
      %v2494 = vrcp.pop %v1688
      %v2495 = vmul.f32 %v1688, %v2494
      %v2496 = vsub.f32 1.0, %v2495
      %v2497 = vmul.f32 %v2494, %v2496
      %v2498 = vadd.f32 %v2494, %v2497
      %vm2499 = vweird.f32 %v1688
      %vm2500 = vweird.f32 %v2494
      %vm2501 = vmor %vm2499, %vm2500
      %v2502 = vsel %vm2501, %v2494, %v2498
      %v2503 = vand.u32 2147483647, %v1688
      %vm2504 = vcmp.eq.f32.partialorder %v2503, 8.507059e+37
      %v2505 = vand.u32 %v1688, 2147483648
      %v2506 = vor.u32 1.1754944e-38, %v2505
      %v2507 = vsel %vm2504, %v2506, %v2502
      %v2508 = vmul.f32 1.0, %v2507
      %v2509 = vrcp.pop %v1689
      %v2510 = vmul.f32 %v1689, %v2509
      %v2511 = vsub.f32 1.0, %v2510
      %v2512 = vmul.f32 %v2509, %v2511
      %v2513 = vadd.f32 %v2509, %v2512
      %vm2514 = vweird.f32 %v1689
      %vm2515 = vweird.f32 %v2509
      %vm2516 = vmor %vm2514, %vm2515
      %v2517 = vsel %vm2516, %v2509, %v2513
      %v2518 = vand.u32 2147483647, %v1689
      %vm2519 = vcmp.eq.f32.partialorder %v2518, 8.507059e+37
      %v2520 = vand.u32 %v1689, 2147483648
      %v2521 = vor.u32 1.1754944e-38, %v2520
      %v2522 = vsel %vm2519, %v2521, %v2517
      %v2523 = vmul.f32 1.0, %v2522
      %v2524 = vrcp.pop %v1690
      %v2525 = vmul.f32 %v1690, %v2524
      %v2526 = vsub.f32 1.0, %v2525
      %v2527 = vmul.f32 %v2524, %v2526
      %v2528 = vadd.f32 %v2524, %v2527
      %vm2529 = vweird.f32 %v1690
      %vm2530 = vweird.f32 %v2524
      %vm2531 = vmor %vm2529, %vm2530
      %v2532 = vsel %vm2531, %v2524, %v2528
      %v2533 = vand.u32 2147483647, %v1690
      %vm2534 = vcmp.eq.f32.partialorder %v2533, 8.507059e+37
      %v2535 = vand.u32 %v1690, 2147483648
      %v2536 = vor.u32 1.1754944e-38, %v2535
      %v2537 = vsel %vm2534, %v2536, %v2532
      %v2538 = vmul.f32 1.0, %v2537
      %v2539 = vrcp.pop %v1691
      %v2540 = vmul.f32 %v1691, %v2539
      %v2541 = vsub.f32 1.0, %v2540
      %v2542 = vmul.f32 %v2539, %v2541
      %v2543 = vadd.f32 %v2539, %v2542
      %vm2544 = vweird.f32 %v1691
      %vm2545 = vweird.f32 %v2539
      %vm2546 = vmor %vm2544, %vm2545
      %v2547 = vsel %vm2546, %v2539, %v2543
      %v2548 = vand.u32 2147483647, %v1691
      %vm2549 = vcmp.eq.f32.partialorder %v2548, 8.507059e+37
      %v2550 = vand.u32 %v1691, 2147483648
      %v2551 = vor.u32 1.1754944e-38, %v2550
      %v2552 = vsel %vm2549, %v2551, %v2547
      %v2553 = vmul.f32 1.0, %v2552
      %v2554 = vrcp.pop %v1692
      %v2555 = vmul.f32 %v1692, %v2554
      %v2556 = vsub.f32 1.0, %v2555
      %v2557 = vmul.f32 %v2554, %v2556
      %v2558 = vadd.f32 %v2554, %v2557
      %vm2559 = vweird.f32 %v1692
      %vm2560 = vweird.f32 %v2554
      %vm2561 = vmor %vm2559, %vm2560
      %v2562 = vsel %vm2561, %v2554, %v2558
      %v2563 = vand.u32 2147483647, %v1692
      %vm2564 = vcmp.eq.f32.partialorder %v2563, 8.507059e+37
      %v2565 = vand.u32 %v1692, 2147483648
      %v2566 = vor.u32 1.1754944e-38, %v2565
      %v2567 = vsel %vm2564, %v2566, %v2562
      %v2568 = vmul.f32 1.0, %v2567
      %v2569 = vrcp.pop %v1693
      %v2570 = vmul.f32 %v1693, %v2569
      %v2571 = vsub.f32 1.0, %v2570
      %v2572 = vmul.f32 %v2569, %v2571
      %v2573 = vadd.f32 %v2569, %v2572
      %vm2574 = vweird.f32 %v1693
      %vm2575 = vweird.f32 %v2569
      %vm2576 = vmor %vm2574, %vm2575
      %v2577 = vsel %vm2576, %v2569, %v2573
      %v2578 = vand.u32 2147483647, %v1693
      %vm2579 = vcmp.eq.f32.partialorder %v2578, 8.507059e+37
      %v2580 = vand.u32 %v1693, 2147483648
      %v2581 = vor.u32 1.1754944e-38, %v2580
      %v2582 = vsel %vm2579, %v2581, %v2577
      %v2583 = vmul.f32 1.0, %v2582
      %v2584 = vrcp.pop %v1694
      %v2585 = vmul.f32 %v1694, %v2584
      %v2586 = vsub.f32 1.0, %v2585
      %v2587 = vmul.f32 %v2584, %v2586
      %v2588 = vadd.f32 %v2584, %v2587
      %vm2589 = vweird.f32 %v1694
      %vm2590 = vweird.f32 %v2584
      %vm2591 = vmor %vm2589, %vm2590
      %v2592 = vsel %vm2591, %v2584, %v2588
      %v2593 = vand.u32 2147483647, %v1694
      %vm2594 = vcmp.eq.f32.partialorder %v2593, 8.507059e+37
      %v2595 = vand.u32 %v1694, 2147483648
      %v2596 = vor.u32 1.1754944e-38, %v2595
      %v2597 = vsel %vm2594, %v2596, %v2592
      %v2598 = vmul.f32 1.0, %v2597
      %v2599 = vrcp.pop %v1695
      %v2600 = vmul.f32 %v1695, %v2599
      %v2601 = vsub.f32 1.0, %v2600
      %v2602 = vmul.f32 %v2599, %v2601
      %v2603 = vadd.f32 %v2599, %v2602
      %vm2604 = vweird.f32 %v1695
      %vm2605 = vweird.f32 %v2599
      %vm2606 = vmor %vm2604, %vm2605
      %v2607 = vsel %vm2606, %v2599, %v2603
      %v2608 = vand.u32 2147483647, %v1695
      %vm2609 = vcmp.eq.f32.partialorder %v2608, 8.507059e+37
      %v2610 = vand.u32 %v1695, 2147483648
      %v2611 = vor.u32 1.1754944e-38, %v2610
      %v2612 = vsel %vm2609, %v2611, %v2607
      %v2613 = vmul.f32 1.0, %v2612
      %v2614 = vrcp.pop %v1696
      %v2615 = vmul.f32 %v1696, %v2614
      %v2616 = vsub.f32 1.0, %v2615
      %v2617 = vmul.f32 %v2614, %v2616
      %v2618 = vadd.f32 %v2614, %v2617
      %vm2619 = vweird.f32 %v1696
      %vm2620 = vweird.f32 %v2614
      %vm2621 = vmor %vm2619, %vm2620
      %v2622 = vsel %vm2621, %v2614, %v2618
      %v2623 = vand.u32 2147483647, %v1696
      %vm2624 = vcmp.eq.f32.partialorder %v2623, 8.507059e+37
      %v2625 = vand.u32 %v1696, 2147483648
      %v2626 = vor.u32 1.1754944e-38, %v2625
      %v2627 = vsel %vm2624, %v2626, %v2622
      %v2628 = vmul.f32 1.0, %v2627
      %v2629 = vrcp.pop %v1697
      %v2630 = vmul.f32 %v1697, %v2629
      %v2631 = vsub.f32 1.0, %v2630
      %v2632 = vmul.f32 %v2629, %v2631
      %v2633 = vadd.f32 %v2629, %v2632
      %vm2634 = vweird.f32 %v1697
      %vm2635 = vweird.f32 %v2629
      %vm2636 = vmor %vm2634, %vm2635
      %v2637 = vsel %vm2636, %v2629, %v2633
      %v2638 = vand.u32 2147483647, %v1697
      %vm2639 = vcmp.eq.f32.partialorder %v2638, 8.507059e+37
      %v2640 = vand.u32 %v1697, 2147483648
      %v2641 = vor.u32 1.1754944e-38, %v2640
      %v2642 = vsel %vm2639, %v2641, %v2637
      %v2643 = vmul.f32 1.0, %v2642
      %v2644 = vrcp.pop %v1698
      %v2645 = vmul.f32 %v1698, %v2644
      %v2646 = vsub.f32 1.0, %v2645
      %v2647 = vmul.f32 %v2644, %v2646
      %v2648 = vadd.f32 %v2644, %v2647
      %vm2649 = vweird.f32 %v1698
      %vm2650 = vweird.f32 %v2644
      %vm2651 = vmor %vm2649, %vm2650
      %v2652 = vsel %vm2651, %v2644, %v2648
      %v2653 = vand.u32 2147483647, %v1698
      %vm2654 = vcmp.eq.f32.partialorder %v2653, 8.507059e+37
      %v2655 = vand.u32 %v1698, 2147483648
      %v2656 = vor.u32 1.1754944e-38, %v2655
      %v2657 = vsel %vm2654, %v2656, %v2652
      %v2658 = vmul.f32 1.0, %v2657
      %v2659 = vtanh.pop %v1364
      %v2660 = vtanh.pop %v1366
      %v2661 = vtanh.pop %v1369
      %v2662 = vtanh.pop %v1371
      %v2663 = vtanh.pop %v1374
      %v2664 = vtanh.pop %v1376
      %v2665 = vtanh.pop %v1379
      %v2666 = vtanh.pop %v1381
      %v2667 = vtanh.pop %v1384
      %v2668 = vtanh.pop %v1386
      %v2669 = vtanh.pop %v1389
      %v2670 = vtanh.pop %v1391
      %v2671 = vtanh.pop %v1394
      %v2672 = vtanh.pop %v1396
      %v2673 = vtanh.pop %v1399
      %v2674 = vtanh.pop %v1401
      %v2675 = vtanh.pop %v1404
      %v2676 = vtanh.pop %v1406
      %v2677 = vtanh.pop %v1409
      %v2678 = vtanh.pop %v1411
      %v2679 = vtanh.pop %v1414
      %v2680 = vtanh.pop %v1416
      %v2681 = vtanh.pop %v1419
      %v2682 = vtanh.pop %v1421
      %v2683 = vtanh.pop %v1424
      %v2684 = vtanh.pop %v1426
      %v2685 = vtanh.pop %v1429
      %v2686 = vtanh.pop %v1431
      %v2687 = vtanh.pop %v1434
      %v2688 = vtanh.pop %v1436
      %v2689 = vtanh.pop %v1439
      %v2690 = vtanh.pop %v1441
      %v2691 = vld [vmem:[%s266] sm:$0xff]
      %v2692 = vld [vmem:[%s266 + $0x8] sm:$0xff]
      %v2693 = vld [vmem:[%s266 + $0x10] sm:$0xff]
      %v2694 = vld [vmem:[%s266 + $0x18] sm:$0xff]
      %v2695 = vld [vmem:[%s266 + $0x20] sm:$0xff]
      %v2696 = vld [vmem:[%s266 + $0x28] sm:$0xff]
      %v2697 = vld [vmem:[%s266 + $0x30] sm:$0xff]
      %v2698 = vld [vmem:[%s266 + $0x38] sm:$0xff]
      %v2699 = vld [vmem:[%s266 + $0x40] sm:$0xff]
      %v2700 = vld [vmem:[%s266 + $0x48] sm:$0xff]
      %v2701 = vld [vmem:[%s266 + $0x50] sm:$0xff]
      %v2702 = vld [vmem:[%s266 + $0x58] sm:$0xff]
      %v2703 = vld [vmem:[%s266 + $0x60] sm:$0xff]
      %v2704 = vld [vmem:[%s266 + $0x68] sm:$0xff]
      %v2705 = vld [vmem:[%s266 + $0x70] sm:$0xff]
      %v2706 = vld [vmem:[%s266 + $0x78] sm:$0xff]
      %v2707 = vld [vmem:[%s266 + $0x80] sm:$0xff]
      %v2708 = vld [vmem:[%s266 + $0x88] sm:$0xff]
      %v2709 = vld [vmem:[%s266 + $0x90] sm:$0xff]
      %v2710 = vld [vmem:[%s266 + $0x98] sm:$0xff]
      %v2711 = vld [vmem:[%s266 + $0xa0] sm:$0xff]
      %v2712 = vld [vmem:[%s266 + $0xa8] sm:$0xff]
      %v2713 = vld [vmem:[%s266 + $0xb0] sm:$0xff]
      %v2714 = vld [vmem:[%s266 + $0xb8] sm:$0xff]
      %v2715 = vld [vmem:[%s266 + $0xc0] sm:$0xff]
      %v2716 = vld [vmem:[%s266 + $0xc8] sm:$0xff]
      %v2717 = vld [vmem:[%s266 + $0xd0] sm:$0xff]
      %v2718 = vld [vmem:[%s266 + $0xd8] sm:$0xff]
      %v2719 = vld [vmem:[%s266 + $0xe0] sm:$0xff]
      %v2720 = vld [vmem:[%s266 + $0xe8] sm:$0xff]
      %v2721 = vld [vmem:[%s266 + $0xf0] sm:$0xff]
      %v2722 = vld [vmem:[%s266 + $0xf8] sm:$0xff]
      %2755 = vrot.lane.b32.xlu0 %v2691, 32
      %v2756 = vpop.permute.xlu0 %2755
      %2757 = vrot.lane.b32.xlu0 %v2692, 32
      %v2758 = vpop.permute.xlu0 %2757
      %2759 = vrot.lane.b32.xlu0 %v2693, 32
      %v2760 = vpop.permute.xlu0 %2759
      %2761 = vrot.lane.b32.xlu0 %v2694, 32
      %v2762 = vpop.permute.xlu0 %2761
      %2763 = vrot.lane.b32.xlu0 %v2695, 32
      %v2764 = vpop.permute.xlu0 %2763
      %2765 = vrot.lane.b32.xlu0 %v2696, 32
      %v2766 = vpop.permute.xlu0 %2765
      %2767 = vrot.lane.b32.xlu0 %v2697, 32
      %v2768 = vpop.permute.xlu0 %2767
      %2769 = vrot.lane.b32.xlu0 %v2698, 32
      %v2770 = vpop.permute.xlu0 %2769
      %2771 = vrot.lane.b32.xlu0 %v2699, 32
      %v2772 = vpop.permute.xlu0 %2771
      %2773 = vrot.lane.b32.xlu0 %v2700, 32
      %v2774 = vpop.permute.xlu0 %2773
      %2775 = vrot.lane.b32.xlu0 %v2701, 32
      %v2776 = vpop.permute.xlu0 %2775
      %2777 = vrot.lane.b32.xlu0 %v2702, 32
      %v2778 = vpop.permute.xlu0 %2777
      %2779 = vrot.lane.b32.xlu0 %v2703, 32
      %v2780 = vpop.permute.xlu0 %2779
      %2781 = vrot.lane.b32.xlu0 %v2704, 32
      %v2782 = vpop.permute.xlu0 %2781
      %2783 = vrot.lane.b32.xlu0 %v2705, 32
      %v2784 = vpop.permute.xlu0 %2783
      %2785 = vrot.lane.b32.xlu0 %v2706, 32
      %v2786 = vpop.permute.xlu0 %2785
      %2787 = vrot.lane.b32.xlu0 %v2707, 32
      %v2788 = vpop.permute.xlu0 %2787
      %2789 = vrot.lane.b32.xlu0 %v2708, 32
      %v2790 = vpop.permute.xlu0 %2789
      %2791 = vrot.lane.b32.xlu0 %v2709, 32
      %v2792 = vpop.permute.xlu0 %2791
      %2793 = vrot.lane.b32.xlu0 %v2710, 32
      %v2794 = vpop.permute.xlu0 %2793
      %2795 = vrot.lane.b32.xlu0 %v2711, 32
      %v2796 = vpop.permute.xlu0 %2795
      %2797 = vrot.lane.b32.xlu0 %v2712, 32
      %v2798 = vpop.permute.xlu0 %2797
      %2799 = vrot.lane.b32.xlu0 %v2713, 32
      %v2800 = vpop.permute.xlu0 %2799
      %2801 = vrot.lane.b32.xlu0 %v2714, 32
      %v2802 = vpop.permute.xlu0 %2801
      %2803 = vrot.lane.b32.xlu0 %v2715, 32
      %v2804 = vpop.permute.xlu0 %2803
      %2805 = vrot.lane.b32.xlu0 %v2716, 32
      %v2806 = vpop.permute.xlu0 %2805
      %2807 = vrot.lane.b32.xlu0 %v2717, 32
      %v2808 = vpop.permute.xlu0 %2807
      %2809 = vrot.lane.b32.xlu0 %v2718, 32
      %v2810 = vpop.permute.xlu0 %2809
      %2811 = vrot.lane.b32.xlu0 %v2719, 32
      %v2812 = vpop.permute.xlu0 %2811
      %2813 = vrot.lane.b32.xlu0 %v2720, 32
      %v2814 = vpop.permute.xlu0 %2813
      %2815 = vrot.lane.b32.xlu0 %v2721, 32
      %v2816 = vpop.permute.xlu0 %2815
      %2817 = vrot.lane.b32.xlu0 %v2722, 32
      %v2818 = vpop.permute.xlu0 %2817
      %v2851 = vmul.f32 %v1713, %v2756
      %v2852 = vmul.f32 %v1743, %v2758
      %v2853 = vmul.f32 %v1773, %v2760
      %v2854 = vmul.f32 %v1803, %v2762
      %v2855 = vmul.f32 %v1833, %v2764
      %v2856 = vmul.f32 %v1863, %v2766
      %v2857 = vmul.f32 %v1893, %v2768
      %v2858 = vmul.f32 %v1923, %v2770
      %v2859 = vmul.f32 %v1953, %v2772
      %v2860 = vmul.f32 %v1983, %v2774
      %v2861 = vmul.f32 %v2013, %v2776
      %v2862 = vmul.f32 %v2043, %v2778
      %v2863 = vmul.f32 %v2073, %v2780
      %v2864 = vmul.f32 %v2103, %v2782
      %v2865 = vmul.f32 %v2133, %v2784
      %v2866 = vmul.f32 %v2163, %v2786
      %v2867 = vmul.f32 %v2193, %v2788
      %v2868 = vmul.f32 %v2223, %v2790
      %v2869 = vmul.f32 %v2253, %v2792
      %v2870 = vmul.f32 %v2283, %v2794
      %v2871 = vmul.f32 %v2313, %v2796
      %v2872 = vmul.f32 %v2343, %v2798
      %v2873 = vmul.f32 %v2373, %v2800
      %v2874 = vmul.f32 %v2403, %v2802
      %v2875 = vmul.f32 %v2433, %v2804
      %v2876 = vmul.f32 %v2463, %v2806
      %v2877 = vmul.f32 %v2493, %v2808
      %v2878 = vmul.f32 %v2523, %v2810
      %v2879 = vmul.f32 %v2553, %v2812
      %v2880 = vmul.f32 %v2583, %v2814
      %v2881 = vmul.f32 %v2613, %v2816
      %v2882 = vmul.f32 %v2643, %v2818
      %2915 = vrot.lane.b32.xlu0 %v2659, 64
      %v2916 = vpop.permute.xlu0 %2915
      %2917 = vrot.lane.b32.xlu0 %v2660, 64
      %v2918 = vpop.permute.xlu0 %2917
      %2919 = vrot.lane.b32.xlu0 %v2661, 64
      %v2920 = vpop.permute.xlu0 %2919
      %2921 = vrot.lane.b32.xlu0 %v2662, 64
      %v2922 = vpop.permute.xlu0 %2921
      %2923 = vrot.lane.b32.xlu0 %v2663, 64
      %v2924 = vpop.permute.xlu0 %2923
      %2925 = vrot.lane.b32.xlu0 %v2664, 64
      %v2926 = vpop.permute.xlu0 %2925
      %2927 = vrot.lane.b32.xlu0 %v2665, 64
      %v2928 = vpop.permute.xlu0 %2927
      %2929 = vrot.lane.b32.xlu0 %v2666, 64
      %v2930 = vpop.permute.xlu0 %2929
      %2931 = vrot.lane.b32.xlu0 %v2667, 64
      %v2932 = vpop.permute.xlu0 %2931
      %2933 = vrot.lane.b32.xlu0 %v2668, 64
      %v2934 = vpop.permute.xlu0 %2933
      %2935 = vrot.lane.b32.xlu0 %v2669, 64
      %v2936 = vpop.permute.xlu0 %2935
      %2937 = vrot.lane.b32.xlu0 %v2670, 64
      %v2938 = vpop.permute.xlu0 %2937
      %2939 = vrot.lane.b32.xlu0 %v2671, 64
      %v2940 = vpop.permute.xlu0 %2939
      %2941 = vrot.lane.b32.xlu0 %v2672, 64
      %v2942 = vpop.permute.xlu0 %2941
      %2943 = vrot.lane.b32.xlu0 %v2673, 64
      %v2944 = vpop.permute.xlu0 %2943
      %2945 = vrot.lane.b32.xlu0 %v2674, 64
      %v2946 = vpop.permute.xlu0 %2945
      %2947 = vrot.lane.b32.xlu0 %v2675, 64
      %v2948 = vpop.permute.xlu0 %2947
      %2949 = vrot.lane.b32.xlu0 %v2676, 64
      %v2950 = vpop.permute.xlu0 %2949
      %2951 = vrot.lane.b32.xlu0 %v2677, 64
      %v2952 = vpop.permute.xlu0 %2951
      %2953 = vrot.lane.b32.xlu0 %v2678, 64
      %v2954 = vpop.permute.xlu0 %2953
      %2955 = vrot.lane.b32.xlu0 %v2679, 64
      %v2956 = vpop.permute.xlu0 %2955
      %2957 = vrot.lane.b32.xlu0 %v2680, 64
      %v2958 = vpop.permute.xlu0 %2957
      %2959 = vrot.lane.b32.xlu0 %v2681, 64
      %v2960 = vpop.permute.xlu0 %2959
      %2961 = vrot.lane.b32.xlu0 %v2682, 64
      %v2962 = vpop.permute.xlu0 %2961
      %2963 = vrot.lane.b32.xlu0 %v2683, 64
      %v2964 = vpop.permute.xlu0 %2963
      %2965 = vrot.lane.b32.xlu0 %v2684, 64
      %v2966 = vpop.permute.xlu0 %2965
      %2967 = vrot.lane.b32.xlu0 %v2685, 64
      %v2968 = vpop.permute.xlu0 %2967
      %2969 = vrot.lane.b32.xlu0 %v2686, 64
      %v2970 = vpop.permute.xlu0 %2969
      %2971 = vrot.lane.b32.xlu0 %v2687, 64
      %v2972 = vpop.permute.xlu0 %2971
      %2973 = vrot.lane.b32.xlu0 %v2688, 64
      %v2974 = vpop.permute.xlu0 %2973
      %2975 = vrot.lane.b32.xlu0 %v2689, 64
      %v2976 = vpop.permute.xlu0 %2975
      %2977 = vrot.lane.b32.xlu0 %v2690, 64
      %v2978 = vpop.permute.xlu0 %2977
      %v3011 = vmul.f32 %v1713, %v2916
      %v3012 = vmul.f32 %v1743, %v2918
      %v3013 = vmul.f32 %v1773, %v2920
      %v3014 = vmul.f32 %v1803, %v2922
      %v3015 = vmul.f32 %v1833, %v2924
      %v3016 = vmul.f32 %v1863, %v2926
      %v3017 = vmul.f32 %v1893, %v2928
      %v3018 = vmul.f32 %v1923, %v2930
      %v3019 = vmul.f32 %v1953, %v2932
      %v3020 = vmul.f32 %v1983, %v2934
      %v3021 = vmul.f32 %v2013, %v2936
      %v3022 = vmul.f32 %v2043, %v2938
      %v3023 = vmul.f32 %v2073, %v2940
      %v3024 = vmul.f32 %v2103, %v2942
      %v3025 = vmul.f32 %v2133, %v2944
      %v3026 = vmul.f32 %v2163, %v2946
      %v3027 = vmul.f32 %v2193, %v2948
      %v3028 = vmul.f32 %v2223, %v2950
      %v3029 = vmul.f32 %v2253, %v2952
      %v3030 = vmul.f32 %v2283, %v2954
      %v3031 = vmul.f32 %v2313, %v2956
      %v3032 = vmul.f32 %v2343, %v2958
      %v3033 = vmul.f32 %v2373, %v2960
      %v3034 = vmul.f32 %v2403, %v2962
      %v3035 = vmul.f32 %v2433, %v2964
      %v3036 = vmul.f32 %v2463, %v2966
      %v3037 = vmul.f32 %v2493, %v2968
      %v3038 = vmul.f32 %v2523, %v2970
      %v3039 = vmul.f32 %v2553, %v2972
      %v3040 = vmul.f32 %v2583, %v2974
      %v3041 = vmul.f32 %v2613, %v2976
      %v3042 = vmul.f32 %v2643, %v2978
      %3075 = vrot.lane.b32.xlu0 %v3011, 32
      %v3076 = vpop.permute.xlu0 %3075
      %3077 = vrot.lane.b32.xlu0 %v3012, 32
      %v3078 = vpop.permute.xlu0 %3077
      %3079 = vrot.lane.b32.xlu0 %v3013, 32
      %v3080 = vpop.permute.xlu0 %3079
      %3081 = vrot.lane.b32.xlu0 %v3014, 32
      %v3082 = vpop.permute.xlu0 %3081
      %3083 = vrot.lane.b32.xlu0 %v3015, 32
      %v3084 = vpop.permute.xlu0 %3083
      %3085 = vrot.lane.b32.xlu0 %v3016, 32
      %v3086 = vpop.permute.xlu0 %3085
      %3087 = vrot.lane.b32.xlu0 %v3017, 32
      %v3088 = vpop.permute.xlu0 %3087
      %3089 = vrot.lane.b32.xlu0 %v3018, 32
      %v3090 = vpop.permute.xlu0 %3089
      %3091 = vrot.lane.b32.xlu0 %v3019, 32
      %v3092 = vpop.permute.xlu0 %3091
      %3093 = vrot.lane.b32.xlu0 %v3020, 32
      %v3094 = vpop.permute.xlu0 %3093
      %3095 = vrot.lane.b32.xlu0 %v3021, 32
      %v3096 = vpop.permute.xlu0 %3095
      %3097 = vrot.lane.b32.xlu0 %v3022, 32
      %v3098 = vpop.permute.xlu0 %3097
      %3099 = vrot.lane.b32.xlu0 %v3023, 32
      %v3100 = vpop.permute.xlu0 %3099
      %3101 = vrot.lane.b32.xlu0 %v3024, 32
      %v3102 = vpop.permute.xlu0 %3101
      %3103 = vrot.lane.b32.xlu0 %v3025, 32
      %v3104 = vpop.permute.xlu0 %3103
      %3105 = vrot.lane.b32.xlu0 %v3026, 32
      %v3106 = vpop.permute.xlu0 %3105
      %3107 = vrot.lane.b32.xlu0 %v3027, 32
      %v3108 = vpop.permute.xlu0 %3107
      %3109 = vrot.lane.b32.xlu0 %v3028, 32
      %v3110 = vpop.permute.xlu0 %3109
      %3111 = vrot.lane.b32.xlu0 %v3029, 32
      %v3112 = vpop.permute.xlu0 %3111
      %3113 = vrot.lane.b32.xlu0 %v3030, 32
      %v3114 = vpop.permute.xlu0 %3113
      %3115 = vrot.lane.b32.xlu0 %v3031, 32
      %v3116 = vpop.permute.xlu0 %3115
      %3117 = vrot.lane.b32.xlu0 %v3032, 32
      %v3118 = vpop.permute.xlu0 %3117
      %3119 = vrot.lane.b32.xlu0 %v3033, 32
      %v3120 = vpop.permute.xlu0 %3119
      %3121 = vrot.lane.b32.xlu0 %v3034, 32
      %v3122 = vpop.permute.xlu0 %3121
      %3123 = vrot.lane.b32.xlu0 %v3035, 32
      %v3124 = vpop.permute.xlu0 %3123
      %3125 = vrot.lane.b32.xlu0 %v3036, 32
      %v3126 = vpop.permute.xlu0 %3125
      %3127 = vrot.lane.b32.xlu0 %v3037, 32
      %v3128 = vpop.permute.xlu0 %3127
      %3129 = vrot.lane.b32.xlu0 %v3038, 32
      %v3130 = vpop.permute.xlu0 %3129
      %3131 = vrot.lane.b32.xlu0 %v3039, 32
      %v3132 = vpop.permute.xlu0 %3131
      %3133 = vrot.lane.b32.xlu0 %v3040, 32
      %v3134 = vpop.permute.xlu0 %3133
      %3135 = vrot.lane.b32.xlu0 %v3041, 32
      %v3136 = vpop.permute.xlu0 %3135
      %3137 = vrot.lane.b32.xlu0 %v3042, 32
      %v3138 = vpop.permute.xlu0 %3137
      %v3171 = vadd.f32 %v2851, %v3076
      %v3172 = vadd.f32 %v2852, %v3078
      %v3173 = vadd.f32 %v2853, %v3080
      %v3174 = vadd.f32 %v2854, %v3082
      %v3175 = vadd.f32 %v2855, %v3084
      %v3176 = vadd.f32 %v2856, %v3086
      %v3177 = vadd.f32 %v2857, %v3088
      %v3178 = vadd.f32 %v2858, %v3090
      %v3179 = vadd.f32 %v2859, %v3092
      %v3180 = vadd.f32 %v2860, %v3094
      %v3181 = vadd.f32 %v2861, %v3096
      %v3182 = vadd.f32 %v2862, %v3098
      %v3183 = vadd.f32 %v2863, %v3100
      %v3184 = vadd.f32 %v2864, %v3102
      %v3185 = vadd.f32 %v2865, %v3104
      %v3186 = vadd.f32 %v2866, %v3106
      %v3187 = vadd.f32 %v2867, %v3108
      %v3188 = vadd.f32 %v2868, %v3110
      %v3189 = vadd.f32 %v2869, %v3112
      %v3190 = vadd.f32 %v2870, %v3114
      %v3191 = vadd.f32 %v2871, %v3116
      %v3192 = vadd.f32 %v2872, %v3118
      %v3193 = vadd.f32 %v2873, %v3120
      %v3194 = vadd.f32 %v2874, %v3122
      %v3195 = vadd.f32 %v2875, %v3124
      %v3196 = vadd.f32 %v2876, %v3126
      %v3197 = vadd.f32 %v2877, %v3128
      %v3198 = vadd.f32 %v2878, %v3130
      %v3199 = vadd.f32 %v2879, %v3132
      %v3200 = vadd.f32 %v2880, %v3134
      %v3201 = vadd.f32 %v2881, %v3136
      %v3202 = vadd.f32 %v2882, %v3138
      %3203 = vrot.lane.b32.xlu0 %v2691, 96
      %v3204 = vpop.permute.xlu0 %3203
      %3205 = vrot.lane.b32.xlu0 %v2692, 96
      %v3206 = vpop.permute.xlu0 %3205
      %3207 = vrot.lane.b32.xlu0 %v2693, 96
      %v3208 = vpop.permute.xlu0 %3207
      %3209 = vrot.lane.b32.xlu0 %v2694, 96
      %v3210 = vpop.permute.xlu0 %3209
      %3211 = vrot.lane.b32.xlu0 %v2695, 96
      %v3212 = vpop.permute.xlu0 %3211
      %3213 = vrot.lane.b32.xlu0 %v2696, 96
      %v3214 = vpop.permute.xlu0 %3213
      %3215 = vrot.lane.b32.xlu0 %v2697, 96
      %v3216 = vpop.permute.xlu0 %3215
      %3217 = vrot.lane.b32.xlu0 %v2698, 96
      %v3218 = vpop.permute.xlu0 %3217
      %3219 = vrot.lane.b32.xlu0 %v2699, 96
      %v3220 = vpop.permute.xlu0 %3219
      %3221 = vrot.lane.b32.xlu0 %v2700, 96
      %v3222 = vpop.permute.xlu0 %3221
      %3223 = vrot.lane.b32.xlu0 %v2701, 96
      %v3224 = vpop.permute.xlu0 %3223
      %3225 = vrot.lane.b32.xlu0 %v2702, 96
      %v3226 = vpop.permute.xlu0 %3225
      %3227 = vrot.lane.b32.xlu0 %v2703, 96
      %v3228 = vpop.permute.xlu0 %3227
      %3229 = vrot.lane.b32.xlu0 %v2704, 96
      %v3230 = vpop.permute.xlu0 %3229
      %3231 = vrot.lane.b32.xlu0 %v2705, 96
      %v3232 = vpop.permute.xlu0 %3231
      %3233 = vrot.lane.b32.xlu0 %v2706, 96
      %v3234 = vpop.permute.xlu0 %3233
      %3235 = vrot.lane.b32.xlu0 %v2707, 96
      %v3236 = vpop.permute.xlu0 %3235
      %3237 = vrot.lane.b32.xlu0 %v2708, 96
      %v3238 = vpop.permute.xlu0 %3237
      %3239 = vrot.lane.b32.xlu0 %v2709, 96
      %v3240 = vpop.permute.xlu0 %3239
      %3241 = vrot.lane.b32.xlu0 %v2710, 96
      %v3242 = vpop.permute.xlu0 %3241
      %3243 = vrot.lane.b32.xlu0 %v2711, 96
      %v3244 = vpop.permute.xlu0 %3243
      %3245 = vrot.lane.b32.xlu0 %v2712, 96
      %v3246 = vpop.permute.xlu0 %3245
      %3247 = vrot.lane.b32.xlu0 %v2713, 96
      %v3248 = vpop.permute.xlu0 %3247
      %3249 = vrot.lane.b32.xlu0 %v2714, 96
      %v3250 = vpop.permute.xlu0 %3249
      %3251 = vrot.lane.b32.xlu0 %v2715, 96
      %v3252 = vpop.permute.xlu0 %3251
      %3253 = vrot.lane.b32.xlu0 %v2716, 96
      %v3254 = vpop.permute.xlu0 %3253
      %3255 = vrot.lane.b32.xlu0 %v2717, 96
      %v3256 = vpop.permute.xlu0 %3255
      %3257 = vrot.lane.b32.xlu0 %v2718, 96
      %v3258 = vpop.permute.xlu0 %3257
      %3259 = vrot.lane.b32.xlu0 %v2719, 96
      %v3260 = vpop.permute.xlu0 %3259
      %3261 = vrot.lane.b32.xlu0 %v2720, 96
      %v3262 = vpop.permute.xlu0 %3261
      %3263 = vrot.lane.b32.xlu0 %v2721, 96
      %v3264 = vpop.permute.xlu0 %3263
      %3265 = vrot.lane.b32.xlu0 %v2722, 96
      %v3266 = vpop.permute.xlu0 %3265
      %v3299 = vmul.f32 %v1728, %v3204
      %v3300 = vmul.f32 %v1758, %v3206
      %v3301 = vmul.f32 %v1788, %v3208
      %v3302 = vmul.f32 %v1818, %v3210
      %v3303 = vmul.f32 %v1848, %v3212
      %v3304 = vmul.f32 %v1878, %v3214
      %v3305 = vmul.f32 %v1908, %v3216
      %v3306 = vmul.f32 %v1938, %v3218
      %v3307 = vmul.f32 %v1968, %v3220
      %v3308 = vmul.f32 %v1998, %v3222
      %v3309 = vmul.f32 %v2028, %v3224
      %v3310 = vmul.f32 %v2058, %v3226
      %v3311 = vmul.f32 %v2088, %v3228
      %v3312 = vmul.f32 %v2118, %v3230
      %v3313 = vmul.f32 %v2148, %v3232
      %v3314 = vmul.f32 %v2178, %v3234
      %v3315 = vmul.f32 %v2208, %v3236
      %v3316 = vmul.f32 %v2238, %v3238
      %v3317 = vmul.f32 %v2268, %v3240
      %v3318 = vmul.f32 %v2298, %v3242
      %v3319 = vmul.f32 %v2328, %v3244
      %v3320 = vmul.f32 %v2358, %v3246
      %v3321 = vmul.f32 %v2388, %v3248
      %v3322 = vmul.f32 %v2418, %v3250
      %v3323 = vmul.f32 %v2448, %v3252
      %v3324 = vmul.f32 %v2478, %v3254
      %v3325 = vmul.f32 %v2508, %v3256
      %v3326 = vmul.f32 %v2538, %v3258
      %v3327 = vmul.f32 %v2568, %v3260
      %v3328 = vmul.f32 %v2598, %v3262
      %v3329 = vmul.f32 %v2628, %v3264
      %v3330 = vmul.f32 %v2658, %v3266
      %v3331 = vmul.f32 %v1713, %v2659
      %v3332 = vmul.f32 %v1743, %v2660
      %v3333 = vmul.f32 %v1773, %v2661
      %v3334 = vmul.f32 %v1803, %v2662
      %v3335 = vmul.f32 %v1833, %v2663
      %v3336 = vmul.f32 %v1863, %v2664
      %v3337 = vmul.f32 %v1893, %v2665
      %v3338 = vmul.f32 %v1923, %v2666
      %v3339 = vmul.f32 %v1953, %v2667
      %v3340 = vmul.f32 %v1983, %v2668
      %v3341 = vmul.f32 %v2013, %v2669
      %v3342 = vmul.f32 %v2043, %v2670
      %v3343 = vmul.f32 %v2073, %v2671
      %v3344 = vmul.f32 %v2103, %v2672
      %v3345 = vmul.f32 %v2133, %v2673
      %v3346 = vmul.f32 %v2163, %v2674
      %v3347 = vmul.f32 %v2193, %v2675
      %v3348 = vmul.f32 %v2223, %v2676
      %v3349 = vmul.f32 %v2253, %v2677
      %v3350 = vmul.f32 %v2283, %v2678
      %v3351 = vmul.f32 %v2313, %v2679
      %v3352 = vmul.f32 %v2343, %v2680
      %v3353 = vmul.f32 %v2373, %v2681
      %v3354 = vmul.f32 %v2403, %v2682
      %v3355 = vmul.f32 %v2433, %v2683
      %v3356 = vmul.f32 %v2463, %v2684
      %v3357 = vmul.f32 %v2493, %v2685
      %v3358 = vmul.f32 %v2523, %v2686
      %v3359 = vmul.f32 %v2553, %v2687
      %v3360 = vmul.f32 %v2583, %v2688
      %v3361 = vmul.f32 %v2613, %v2689
      %v3362 = vmul.f32 %v2643, %v2690
      %3395 = vrot.lane.b32.xlu0 %v3331, 32
      %v3396 = vpop.permute.xlu0 %3395
      %3397 = vrot.lane.b32.xlu0 %v3332, 32
      %v3398 = vpop.permute.xlu0 %3397
      %3399 = vrot.lane.b32.xlu0 %v3333, 32
      %v3400 = vpop.permute.xlu0 %3399
      %3401 = vrot.lane.b32.xlu0 %v3334, 32
      %v3402 = vpop.permute.xlu0 %3401
      %3403 = vrot.lane.b32.xlu0 %v3335, 32
      %v3404 = vpop.permute.xlu0 %3403
      %3405 = vrot.lane.b32.xlu0 %v3336, 32
      %v3406 = vpop.permute.xlu0 %3405
      %3407 = vrot.lane.b32.xlu0 %v3337, 32
      %v3408 = vpop.permute.xlu0 %3407
      %3409 = vrot.lane.b32.xlu0 %v3338, 32
      %v3410 = vpop.permute.xlu0 %3409
      %3411 = vrot.lane.b32.xlu0 %v3339, 32
      %v3412 = vpop.permute.xlu0 %3411
      %3413 = vrot.lane.b32.xlu0 %v3340, 32
      %v3414 = vpop.permute.xlu0 %3413
      %3415 = vrot.lane.b32.xlu0 %v3341, 32
      %v3416 = vpop.permute.xlu0 %3415
      %3417 = vrot.lane.b32.xlu0 %v3342, 32
      %v3418 = vpop.permute.xlu0 %3417
      %3419 = vrot.lane.b32.xlu0 %v3343, 32
      %v3420 = vpop.permute.xlu0 %3419
      %3421 = vrot.lane.b32.xlu0 %v3344, 32
      %v3422 = vpop.permute.xlu0 %3421
      %3423 = vrot.lane.b32.xlu0 %v3345, 32
      %v3424 = vpop.permute.xlu0 %3423
      %3425 = vrot.lane.b32.xlu0 %v3346, 32
      %v3426 = vpop.permute.xlu0 %3425
      %3427 = vrot.lane.b32.xlu0 %v3347, 32
      %v3428 = vpop.permute.xlu0 %3427
      %3429 = vrot.lane.b32.xlu0 %v3348, 32
      %v3430 = vpop.permute.xlu0 %3429
      %3431 = vrot.lane.b32.xlu0 %v3349, 32
      %v3432 = vpop.permute.xlu0 %3431
      %3433 = vrot.lane.b32.xlu0 %v3350, 32
      %v3434 = vpop.permute.xlu0 %3433
      %3435 = vrot.lane.b32.xlu0 %v3351, 32
      %v3436 = vpop.permute.xlu0 %3435
      %3437 = vrot.lane.b32.xlu0 %v3352, 32
      %v3438 = vpop.permute.xlu0 %3437
      %3439 = vrot.lane.b32.xlu0 %v3353, 32
      %v3440 = vpop.permute.xlu0 %3439
      %3441 = vrot.lane.b32.xlu0 %v3354, 32
      %v3442 = vpop.permute.xlu0 %3441
      %3443 = vrot.lane.b32.xlu0 %v3355, 32
      %v3444 = vpop.permute.xlu0 %3443
      %3445 = vrot.lane.b32.xlu0 %v3356, 32
      %v3446 = vpop.permute.xlu0 %3445
      %3447 = vrot.lane.b32.xlu0 %v3357, 32
      %v3448 = vpop.permute.xlu0 %3447
      %3449 = vrot.lane.b32.xlu0 %v3358, 32
      %v3450 = vpop.permute.xlu0 %3449
      %3451 = vrot.lane.b32.xlu0 %v3359, 32
      %v3452 = vpop.permute.xlu0 %3451
      %3453 = vrot.lane.b32.xlu0 %v3360, 32
      %v3454 = vpop.permute.xlu0 %3453
      %3455 = vrot.lane.b32.xlu0 %v3361, 32
      %v3456 = vpop.permute.xlu0 %3455
      %3457 = vrot.lane.b32.xlu0 %v3362, 32
      %v3458 = vpop.permute.xlu0 %3457
      %v3491 = vadd.f32 %v3299, %v3396
      %v3492 = vadd.f32 %v3300, %v3398
      %v3493 = vadd.f32 %v3301, %v3400
      %v3494 = vadd.f32 %v3302, %v3402
      %v3495 = vadd.f32 %v3303, %v3404
      %v3496 = vadd.f32 %v3304, %v3406
      %v3497 = vadd.f32 %v3305, %v3408
      %v3498 = vadd.f32 %v3306, %v3410
      %v3499 = vadd.f32 %v3307, %v3412
      %v3500 = vadd.f32 %v3308, %v3414
      %v3501 = vadd.f32 %v3309, %v3416
      %v3502 = vadd.f32 %v3310, %v3418
      %v3503 = vadd.f32 %v3311, %v3420
      %v3504 = vadd.f32 %v3312, %v3422
      %v3505 = vadd.f32 %v3313, %v3424
      %v3506 = vadd.f32 %v3314, %v3426
      %v3507 = vadd.f32 %v3315, %v3428
      %v3508 = vadd.f32 %v3316, %v3430
      %v3509 = vadd.f32 %v3317, %v3432
      %v3510 = vadd.f32 %v3318, %v3434
      %v3511 = vadd.f32 %v3319, %v3436
      %v3512 = vadd.f32 %v3320, %v3438
      %v3513 = vadd.f32 %v3321, %v3440
      %v3514 = vadd.f32 %v3322, %v3442
      %v3515 = vadd.f32 %v3323, %v3444
      %v3516 = vadd.f32 %v3324, %v3446
      %v3517 = vadd.f32 %v3325, %v3448
      %v3518 = vadd.f32 %v3326, %v3450
      %v3519 = vadd.f32 %v3327, %v3452
      %v3520 = vadd.f32 %v3328, %v3454
      %v3521 = vadd.f32 %v3329, %v3456
      %v3522 = vadd.f32 %v3330, %v3458
      %3555 = vrot.lane.b32.xlu0 %v3171, 96
      %v3556 = vpop.permute.xlu0 %3555
      %3557 = vrot.lane.b32.xlu0 %v3172, 96
      %v3558 = vpop.permute.xlu0 %3557
      %3559 = vrot.lane.b32.xlu0 %v3173, 96
      %v3560 = vpop.permute.xlu0 %3559
      %3561 = vrot.lane.b32.xlu0 %v3174, 96
      %v3562 = vpop.permute.xlu0 %3561
      %3563 = vrot.lane.b32.xlu0 %v3175, 96
      %v3564 = vpop.permute.xlu0 %3563
      %3565 = vrot.lane.b32.xlu0 %v3176, 96
      %v3566 = vpop.permute.xlu0 %3565
      %3567 = vrot.lane.b32.xlu0 %v3177, 96
      %v3568 = vpop.permute.xlu0 %3567
      %3569 = vrot.lane.b32.xlu0 %v3178, 96
      %v3570 = vpop.permute.xlu0 %3569
      %3571 = vrot.lane.b32.xlu0 %v3179, 96
      %v3572 = vpop.permute.xlu0 %3571
      %3573 = vrot.lane.b32.xlu0 %v3180, 96
      %v3574 = vpop.permute.xlu0 %3573
      %3575 = vrot.lane.b32.xlu0 %v3181, 96
      %v3576 = vpop.permute.xlu0 %3575
      %3577 = vrot.lane.b32.xlu0 %v3182, 96
      %v3578 = vpop.permute.xlu0 %3577
      %3579 = vrot.lane.b32.xlu0 %v3183, 96
      %v3580 = vpop.permute.xlu0 %3579
      %3581 = vrot.lane.b32.xlu0 %v3184, 96
      %v3582 = vpop.permute.xlu0 %3581
      %3583 = vrot.lane.b32.xlu0 %v3185, 96
      %v3584 = vpop.permute.xlu0 %3583
      %3585 = vrot.lane.b32.xlu0 %v3186, 96
      %v3586 = vpop.permute.xlu0 %3585
      %3587 = vrot.lane.b32.xlu0 %v3187, 96
      %v3588 = vpop.permute.xlu0 %3587
      %3589 = vrot.lane.b32.xlu0 %v3188, 96
      %v3590 = vpop.permute.xlu0 %3589
      %3591 = vrot.lane.b32.xlu0 %v3189, 96
      %v3592 = vpop.permute.xlu0 %3591
      %3593 = vrot.lane.b32.xlu0 %v3190, 96
      %v3594 = vpop.permute.xlu0 %3593
      %3595 = vrot.lane.b32.xlu0 %v3191, 96
      %v3596 = vpop.permute.xlu0 %3595
      %3597 = vrot.lane.b32.xlu0 %v3192, 96
      %v3598 = vpop.permute.xlu0 %3597
      %3599 = vrot.lane.b32.xlu0 %v3193, 96
      %v3600 = vpop.permute.xlu0 %3599
      %3601 = vrot.lane.b32.xlu0 %v3194, 96
      %v3602 = vpop.permute.xlu0 %3601
      %3603 = vrot.lane.b32.xlu0 %v3195, 96
      %v3604 = vpop.permute.xlu0 %3603
      %3605 = vrot.lane.b32.xlu0 %v3196, 96
      %v3606 = vpop.permute.xlu0 %3605
      %3607 = vrot.lane.b32.xlu0 %v3197, 96
      %v3608 = vpop.permute.xlu0 %3607
      %3609 = vrot.lane.b32.xlu0 %v3198, 96
      %v3610 = vpop.permute.xlu0 %3609
      %3611 = vrot.lane.b32.xlu0 %v3199, 96
      %v3612 = vpop.permute.xlu0 %3611
      %3613 = vrot.lane.b32.xlu0 %v3200, 96
      %v3614 = vpop.permute.xlu0 %3613
      %3615 = vrot.lane.b32.xlu0 %v3201, 96
      %v3616 = vpop.permute.xlu0 %3615
      %3617 = vrot.lane.b32.xlu0 %v3202, 96
      %v3618 = vpop.permute.xlu0 %3617
      %3683 = vrot.lane.b32.xlu0 %v3491, 32
      %v3684 = vpop.permute.xlu0 %3683
      %3685 = vrot.lane.b32.xlu0 %v3492, 32
      %v3686 = vpop.permute.xlu0 %3685
      %3687 = vrot.lane.b32.xlu0 %v3493, 32
      %v3688 = vpop.permute.xlu0 %3687
      %3689 = vrot.lane.b32.xlu0 %v3494, 32
      %v3690 = vpop.permute.xlu0 %3689
      %3691 = vrot.lane.b32.xlu0 %v3495, 32
      %v3692 = vpop.permute.xlu0 %3691
      %3693 = vrot.lane.b32.xlu0 %v3496, 32
      %v3694 = vpop.permute.xlu0 %3693
      %3695 = vrot.lane.b32.xlu0 %v3497, 32
      %v3696 = vpop.permute.xlu0 %3695
      %3697 = vrot.lane.b32.xlu0 %v3498, 32
      %v3698 = vpop.permute.xlu0 %3697
      %3699 = vrot.lane.b32.xlu0 %v3499, 32
      %v3700 = vpop.permute.xlu0 %3699
      %3701 = vrot.lane.b32.xlu0 %v3500, 32
      %v3702 = vpop.permute.xlu0 %3701
      %3703 = vrot.lane.b32.xlu0 %v3501, 32
      %v3704 = vpop.permute.xlu0 %3703
      %3705 = vrot.lane.b32.xlu0 %v3502, 32
      %v3706 = vpop.permute.xlu0 %3705
      %3707 = vrot.lane.b32.xlu0 %v3503, 32
      %v3708 = vpop.permute.xlu0 %3707
      %3709 = vrot.lane.b32.xlu0 %v3504, 32
      %v3710 = vpop.permute.xlu0 %3709
      %3711 = vrot.lane.b32.xlu0 %v3505, 32
      %v3712 = vpop.permute.xlu0 %3711
      %3713 = vrot.lane.b32.xlu0 %v3506, 32
      %v3714 = vpop.permute.xlu0 %3713
      %3715 = vrot.lane.b32.xlu0 %v3507, 32
      %v3716 = vpop.permute.xlu0 %3715
      %3717 = vrot.lane.b32.xlu0 %v3508, 32
      %v3718 = vpop.permute.xlu0 %3717
      %3719 = vrot.lane.b32.xlu0 %v3509, 32
      %v3720 = vpop.permute.xlu0 %3719
      %3721 = vrot.lane.b32.xlu0 %v3510, 32
      %v3722 = vpop.permute.xlu0 %3721
      %3723 = vrot.lane.b32.xlu0 %v3511, 32
      %v3724 = vpop.permute.xlu0 %3723
      %3725 = vrot.lane.b32.xlu0 %v3512, 32
      %v3726 = vpop.permute.xlu0 %3725
      %3727 = vrot.lane.b32.xlu0 %v3513, 32
      %v3728 = vpop.permute.xlu0 %3727
      %3729 = vrot.lane.b32.xlu0 %v3514, 32
      %v3730 = vpop.permute.xlu0 %3729
      %3731 = vrot.lane.b32.xlu0 %v3515, 32
      %v3732 = vpop.permute.xlu0 %3731
      %3733 = vrot.lane.b32.xlu0 %v3516, 32
      %v3734 = vpop.permute.xlu0 %3733
      %3735 = vrot.lane.b32.xlu0 %v3517, 32
      %v3736 = vpop.permute.xlu0 %3735
      %3737 = vrot.lane.b32.xlu0 %v3518, 32
      %v3738 = vpop.permute.xlu0 %3737
      %3739 = vrot.lane.b32.xlu0 %v3519, 32
      %v3740 = vpop.permute.xlu0 %3739
      %3741 = vrot.lane.b32.xlu0 %v3520, 32
      %v3742 = vpop.permute.xlu0 %3741
      %3743 = vrot.lane.b32.xlu0 %v3521, 32
      %v3744 = vpop.permute.xlu0 %3743
      %3745 = vrot.lane.b32.xlu0 %v3522, 32
      %v3746 = vpop.permute.xlu0 %3745
      %vm3779 = vcmask 261120
      %v3780 = vsel %vm3779, %v3556, %v3684
      %v3781 = vsel %vm3779, %v3558, %v3686
      %v3782 = vsel %vm3779, %v3560, %v3688
      %v3783 = vsel %vm3779, %v3562, %v3690
      %v3784 = vsel %vm3779, %v3564, %v3692
      %v3785 = vsel %vm3779, %v3566, %v3694
      %v3786 = vsel %vm3779, %v3568, %v3696
      %v3787 = vsel %vm3779, %v3570, %v3698
      %v3788 = vsel %vm3779, %v3572, %v3700
      %v3789 = vsel %vm3779, %v3574, %v3702
      %v3790 = vsel %vm3779, %v3576, %v3704
      %v3791 = vsel %vm3779, %v3578, %v3706
      %v3792 = vsel %vm3779, %v3580, %v3708
      %v3793 = vsel %vm3779, %v3582, %v3710
      %v3794 = vsel %vm3779, %v3584, %v3712
      %v3795 = vsel %vm3779, %v3586, %v3714
      %v3796 = vsel %vm3779, %v3588, %v3716
      %v3797 = vsel %vm3779, %v3590, %v3718
      %v3798 = vsel %vm3779, %v3592, %v3720
      %v3799 = vsel %vm3779, %v3594, %v3722
      %v3800 = vsel %vm3779, %v3596, %v3724
      %v3801 = vsel %vm3779, %v3598, %v3726
      %v3802 = vsel %vm3779, %v3600, %v3728
      %v3803 = vsel %vm3779, %v3602, %v3730
      %v3804 = vsel %vm3779, %v3604, %v3732
      %v3805 = vsel %vm3779, %v3606, %v3734
      %v3806 = vsel %vm3779, %v3608, %v3736
      %v3807 = vsel %vm3779, %v3610, %v3738
      %v3808 = vsel %vm3779, %v3612, %v3740
      %v3809 = vsel %vm3779, %v3614, %v3742
      %v3810 = vsel %vm3779, %v3616, %v3744
      %v3811 = vsel %vm3779, %v3618, %v3746
      %v3812 = vtanh.pop %v3780
      %v3813 = vtanh.pop %v3781
      %v3814 = vtanh.pop %v3782
      %v3815 = vtanh.pop %v3783
      %v3816 = vtanh.pop %v3784
      %v3817 = vtanh.pop %v3785
      %v3818 = vtanh.pop %v3786
      %v3819 = vtanh.pop %v3787
      %v3820 = vtanh.pop %v3788
      %v3821 = vtanh.pop %v3789
      %v3822 = vtanh.pop %v3790
      %v3823 = vtanh.pop %v3791
      %v3824 = vtanh.pop %v3792
      %v3825 = vtanh.pop %v3793
      %v3826 = vtanh.pop %v3794
      %v3827 = vtanh.pop %v3795
      %v3828 = vtanh.pop %v3796
      %v3829 = vtanh.pop %v3797
      %v3830 = vtanh.pop %v3798
      %v3831 = vtanh.pop %v3799
      %v3832 = vtanh.pop %v3800
      %v3833 = vtanh.pop %v3801
      %v3834 = vtanh.pop %v3802
      %v3835 = vtanh.pop %v3803
      %v3836 = vtanh.pop %v3804
      %v3837 = vtanh.pop %v3805
      %v3838 = vtanh.pop %v3806
      %v3839 = vtanh.pop %v3807
      %v3840 = vtanh.pop %v3808
      %v3841 = vtanh.pop %v3809
      %v3842 = vtanh.pop %v3810
      %v3843 = vtanh.pop %v3811
      %3876 = vrot.lane.b32.xlu0 %v3812, 64
      %v3877 = vpop.permute.xlu0 %3876
      %3878 = vrot.lane.b32.xlu0 %v3813, 64
      %v3879 = vpop.permute.xlu0 %3878
      %3880 = vrot.lane.b32.xlu0 %v3814, 64
      %v3881 = vpop.permute.xlu0 %3880
      %3882 = vrot.lane.b32.xlu0 %v3815, 64
      %v3883 = vpop.permute.xlu0 %3882
      %3884 = vrot.lane.b32.xlu0 %v3816, 64
      %v3885 = vpop.permute.xlu0 %3884
      %3886 = vrot.lane.b32.xlu0 %v3817, 64
      %v3887 = vpop.permute.xlu0 %3886
      %3888 = vrot.lane.b32.xlu0 %v3818, 64
      %v3889 = vpop.permute.xlu0 %3888
      %3890 = vrot.lane.b32.xlu0 %v3819, 64
      %v3891 = vpop.permute.xlu0 %3890
      %3892 = vrot.lane.b32.xlu0 %v3820, 64
      %v3893 = vpop.permute.xlu0 %3892
      %3894 = vrot.lane.b32.xlu0 %v3821, 64
      %v3895 = vpop.permute.xlu0 %3894
      %3896 = vrot.lane.b32.xlu0 %v3822, 64
      %v3897 = vpop.permute.xlu0 %3896
      %3898 = vrot.lane.b32.xlu0 %v3823, 64
      %v3899 = vpop.permute.xlu0 %3898
      %3900 = vrot.lane.b32.xlu0 %v3824, 64
      %v3901 = vpop.permute.xlu0 %3900
      %3902 = vrot.lane.b32.xlu0 %v3825, 64
      %v3903 = vpop.permute.xlu0 %3902
      %3904 = vrot.lane.b32.xlu0 %v3826, 64
      %v3905 = vpop.permute.xlu0 %3904
      %3906 = vrot.lane.b32.xlu0 %v3827, 64
      %v3907 = vpop.permute.xlu0 %3906
      %3908 = vrot.lane.b32.xlu0 %v3828, 64
      %v3909 = vpop.permute.xlu0 %3908
      %3910 = vrot.lane.b32.xlu0 %v3829, 64
      %v3911 = vpop.permute.xlu0 %3910
      %3912 = vrot.lane.b32.xlu0 %v3830, 64
      %v3913 = vpop.permute.xlu0 %3912
      %3914 = vrot.lane.b32.xlu0 %v3831, 64
      %v3915 = vpop.permute.xlu0 %3914
      %3916 = vrot.lane.b32.xlu0 %v3832, 64
      %v3917 = vpop.permute.xlu0 %3916
      %3918 = vrot.lane.b32.xlu0 %v3833, 64
      %v3919 = vpop.permute.xlu0 %3918
      %3920 = vrot.lane.b32.xlu0 %v3834, 64
      %v3921 = vpop.permute.xlu0 %3920
      %3922 = vrot.lane.b32.xlu0 %v3835, 64
      %v3923 = vpop.permute.xlu0 %3922
      %3924 = vrot.lane.b32.xlu0 %v3836, 64
      %v3925 = vpop.permute.xlu0 %3924
      %3926 = vrot.lane.b32.xlu0 %v3837, 64
      %v3927 = vpop.permute.xlu0 %3926
      %3928 = vrot.lane.b32.xlu0 %v3838, 64
      %v3929 = vpop.permute.xlu0 %3928
      %3930 = vrot.lane.b32.xlu0 %v3839, 64
      %v3931 = vpop.permute.xlu0 %3930
      %3932 = vrot.lane.b32.xlu0 %v3840, 64
      %v3933 = vpop.permute.xlu0 %3932
      %3934 = vrot.lane.b32.xlu0 %v3841, 64
      %v3935 = vpop.permute.xlu0 %3934
      %3936 = vrot.lane.b32.xlu0 %v3842, 64
      %v3937 = vpop.permute.xlu0 %3936
      %3938 = vrot.lane.b32.xlu0 %v3843, 64
      %v3939 = vpop.permute.xlu0 %3938
      %v3972 = vmul.f32 %v1713, %v3877
      %v3973 = vmul.f32 %v1743, %v3879
      %v3974 = vmul.f32 %v1773, %v3881
      %v3975 = vmul.f32 %v1803, %v3883
      %v3976 = vmul.f32 %v1833, %v3885
      %v3977 = vmul.f32 %v1863, %v3887
      %v3978 = vmul.f32 %v1893, %v3889
      %v3979 = vmul.f32 %v1923, %v3891
      %v3980 = vmul.f32 %v1953, %v3893
      %v3981 = vmul.f32 %v1983, %v3895
      %v3982 = vmul.f32 %v2013, %v3897
      %v3983 = vmul.f32 %v2043, %v3899
      %v3984 = vmul.f32 %v2073, %v3901
      %v3985 = vmul.f32 %v2103, %v3903
      %v3986 = vmul.f32 %v2133, %v3905
      %v3987 = vmul.f32 %v2163, %v3907
      %v3988 = vmul.f32 %v2193, %v3909
      %v3989 = vmul.f32 %v2223, %v3911
      %v3990 = vmul.f32 %v2253, %v3913
      %v3991 = vmul.f32 %v2283, %v3915
      %v3992 = vmul.f32 %v2313, %v3917
      %v3993 = vmul.f32 %v2343, %v3919
      %v3994 = vmul.f32 %v2373, %v3921
      %v3995 = vmul.f32 %v2403, %v3923
      %v3996 = vmul.f32 %v2433, %v3925
      %v3997 = vmul.f32 %v2463, %v3927
      %v3998 = vmul.f32 %v2493, %v3929
      %v3999 = vmul.f32 %v2523, %v3931
      %v4000 = vmul.f32 %v2553, %v3933
      %v4001 = vmul.f32 %v2583, %v3935
      %v4002 = vmul.f32 %v2613, %v3937
      %v4003 = vmul.f32 %v2643, %v3939
      %v4004 = vmul.f32 %v1728, %v3812
      %v4005 = vmul.f32 %v1758, %v3813
      %v4006 = vmul.f32 %v1788, %v3814
      %v4007 = vmul.f32 %v1818, %v3815
      %v4008 = vmul.f32 %v1848, %v3816
      %v4009 = vmul.f32 %v1878, %v3817
      %v4010 = vmul.f32 %v1908, %v3818
      %v4011 = vmul.f32 %v1938, %v3819
      %v4012 = vmul.f32 %v1968, %v3820
      %v4013 = vmul.f32 %v1998, %v3821
      %v4014 = vmul.f32 %v2028, %v3822
      %v4015 = vmul.f32 %v2058, %v3823
      %v4016 = vmul.f32 %v2088, %v3824
      %v4017 = vmul.f32 %v2118, %v3825
      %v4018 = vmul.f32 %v2148, %v3826
      %v4019 = vmul.f32 %v2178, %v3827
      %v4020 = vmul.f32 %v2208, %v3828
      %v4021 = vmul.f32 %v2238, %v3829
      %v4022 = vmul.f32 %v2268, %v3830
      %v4023 = vmul.f32 %v2298, %v3831
      %v4024 = vmul.f32 %v2328, %v3832
      %v4025 = vmul.f32 %v2358, %v3833
      %v4026 = vmul.f32 %v2388, %v3834
      %v4027 = vmul.f32 %v2418, %v3835
      %v4028 = vmul.f32 %v2448, %v3836
      %v4029 = vmul.f32 %v2478, %v3837
      %v4030 = vmul.f32 %v2508, %v3838
      %v4031 = vmul.f32 %v2538, %v3839
      %v4032 = vmul.f32 %v2568, %v3840
      %v4033 = vmul.f32 %v2598, %v3841
      %v4034 = vmul.f32 %v2628, %v3842
      %v4035 = vmul.f32 %v2658, %v3843
      %4068 = vrot.lane.b32.xlu0 %v4004, 32
      %v4069 = vpop.permute.xlu0 %4068
      %4070 = vrot.lane.b32.xlu0 %v4005, 32
      %v4071 = vpop.permute.xlu0 %4070
      %4072 = vrot.lane.b32.xlu0 %v4006, 32
      %v4073 = vpop.permute.xlu0 %4072
      %4074 = vrot.lane.b32.xlu0 %v4007, 32
      %v4075 = vpop.permute.xlu0 %4074
      %4076 = vrot.lane.b32.xlu0 %v4008, 32
      %v4077 = vpop.permute.xlu0 %4076
      %4078 = vrot.lane.b32.xlu0 %v4009, 32
      %v4079 = vpop.permute.xlu0 %4078
      %4080 = vrot.lane.b32.xlu0 %v4010, 32
      %v4081 = vpop.permute.xlu0 %4080
      %4082 = vrot.lane.b32.xlu0 %v4011, 32
      %v4083 = vpop.permute.xlu0 %4082
      %4084 = vrot.lane.b32.xlu0 %v4012, 32
      %v4085 = vpop.permute.xlu0 %4084
      %4086 = vrot.lane.b32.xlu0 %v4013, 32
      %v4087 = vpop.permute.xlu0 %4086
      %4088 = vrot.lane.b32.xlu0 %v4014, 32
      %v4089 = vpop.permute.xlu0 %4088
      %4090 = vrot.lane.b32.xlu0 %v4015, 32
      %v4091 = vpop.permute.xlu0 %4090
      %4092 = vrot.lane.b32.xlu0 %v4016, 32
      %v4093 = vpop.permute.xlu0 %4092
      %4094 = vrot.lane.b32.xlu0 %v4017, 32
      %v4095 = vpop.permute.xlu0 %4094
      %4096 = vrot.lane.b32.xlu0 %v4018, 32
      %v4097 = vpop.permute.xlu0 %4096
      %4098 = vrot.lane.b32.xlu0 %v4019, 32
      %v4099 = vpop.permute.xlu0 %4098
      %4100 = vrot.lane.b32.xlu0 %v4020, 32
      %v4101 = vpop.permute.xlu0 %4100
      %4102 = vrot.lane.b32.xlu0 %v4021, 32
      %v4103 = vpop.permute.xlu0 %4102
      %4104 = vrot.lane.b32.xlu0 %v4022, 32
      %v4105 = vpop.permute.xlu0 %4104
      %4106 = vrot.lane.b32.xlu0 %v4023, 32
      %v4107 = vpop.permute.xlu0 %4106
      %4108 = vrot.lane.b32.xlu0 %v4024, 32
      %v4109 = vpop.permute.xlu0 %4108
      %4110 = vrot.lane.b32.xlu0 %v4025, 32
      %v4111 = vpop.permute.xlu0 %4110
      %4112 = vrot.lane.b32.xlu0 %v4026, 32
      %v4113 = vpop.permute.xlu0 %4112
      %4114 = vrot.lane.b32.xlu0 %v4027, 32
      %v4115 = vpop.permute.xlu0 %4114
      %4116 = vrot.lane.b32.xlu0 %v4028, 32
      %v4117 = vpop.permute.xlu0 %4116
      %4118 = vrot.lane.b32.xlu0 %v4029, 32
      %v4119 = vpop.permute.xlu0 %4118
      %4120 = vrot.lane.b32.xlu0 %v4030, 32
      %v4121 = vpop.permute.xlu0 %4120
      %4122 = vrot.lane.b32.xlu0 %v4031, 32
      %v4123 = vpop.permute.xlu0 %4122
      %4124 = vrot.lane.b32.xlu0 %v4032, 32
      %v4125 = vpop.permute.xlu0 %4124
      %4126 = vrot.lane.b32.xlu0 %v4033, 32
      %v4127 = vpop.permute.xlu0 %4126
      %4128 = vrot.lane.b32.xlu0 %v4034, 32
      %v4129 = vpop.permute.xlu0 %4128
      %4130 = vrot.lane.b32.xlu0 %v4035, 32
      %v4131 = vpop.permute.xlu0 %4130
      %v4164 = vadd.f32 %v3972, %v4069
      %v4165 = vadd.f32 %v3973, %v4071
      %v4166 = vadd.f32 %v3974, %v4073
      %v4167 = vadd.f32 %v3975, %v4075
      %v4168 = vadd.f32 %v3976, %v4077
      %v4169 = vadd.f32 %v3977, %v4079
      %v4170 = vadd.f32 %v3978, %v4081
      %v4171 = vadd.f32 %v3979, %v4083
      %v4172 = vadd.f32 %v3980, %v4085
      %v4173 = vadd.f32 %v3981, %v4087
      %v4174 = vadd.f32 %v3982, %v4089
      %v4175 = vadd.f32 %v3983, %v4091
      %v4176 = vadd.f32 %v3984, %v4093
      %v4177 = vadd.f32 %v3985, %v4095
      %v4178 = vadd.f32 %v3986, %v4097
      %v4179 = vadd.f32 %v3987, %v4099
      %v4180 = vadd.f32 %v3988, %v4101
      %v4181 = vadd.f32 %v3989, %v4103
      %v4182 = vadd.f32 %v3990, %v4105
      %v4183 = vadd.f32 %v3991, %v4107
      %v4184 = vadd.f32 %v3992, %v4109
      %v4185 = vadd.f32 %v3993, %v4111
      %v4186 = vadd.f32 %v3994, %v4113
      %v4187 = vadd.f32 %v3995, %v4115
      %v4188 = vadd.f32 %v3996, %v4117
      %v4189 = vadd.f32 %v3997, %v4119
      %v4190 = vadd.f32 %v3998, %v4121
      %v4191 = vadd.f32 %v3999, %v4123
      %v4192 = vadd.f32 %v4000, %v4125
      %v4193 = vadd.f32 %v4001, %v4127
      %v4194 = vadd.f32 %v4002, %v4129
      %v4195 = vadd.f32 %v4003, %v4131
      %v4196 = vpack.c.bf16 %v3781, %v3780
      %v4197 = vpack.c.bf16 %v3783, %v3782
      %v4198 = vpack.c.bf16 %v3785, %v3784
      %v4199 = vpack.c.bf16 %v3787, %v3786
      %v4200 = vpack.c.bf16 %v3789, %v3788
      %v4201 = vpack.c.bf16 %v3791, %v3790
      %v4202 = vpack.c.bf16 %v3793, %v3792
      %v4203 = vpack.c.bf16 %v3795, %v3794
      %v4204 = vpack.c.bf16 %v3797, %v3796
      %v4205 = vpack.c.bf16 %v3799, %v3798
      %v4206 = vpack.c.bf16 %v3801, %v3800
      %v4207 = vpack.c.bf16 %v3803, %v3802
      %v4208 = vpack.c.bf16 %v3805, %v3804
      %v4209 = vpack.c.bf16 %v3807, %v3806
      %v4210 = vpack.c.bf16 %v3809, %v3808
      %v4211 = vpack.c.bf16 %v3811, %v3810
      %v4212 = vld [vmem:[%s4] sm:$0xf]
      %v4213 = vld [vmem:[%s4 + $0x4] sm:$0xf]
      %v4214 = vld [vmem:[%s4 + $0x8] sm:$0xf]
      %v4215 = vld [vmem:[%s4 + $0xc] sm:$0xf]
      %v4216 = vld [vmem:[%s4 + $0x10] sm:$0xf]
      %v4217 = vld [vmem:[%s4 + $0x14] sm:$0xf]
      %v4218 = vld [vmem:[%s4 + $0x18] sm:$0xf]
      %v4219 = vld [vmem:[%s4 + $0x1c] sm:$0xf]
      %v4220 = vld [vmem:[%s5] sm:$0x1]
      %v4222 = vperm.slane %v4220, 0
      %v4232 = vunpack.c.l.b16 %v4212
      %v4233 = vunpack.c.l.b16 %v4213
      %v4234 = vunpack.c.l.b16 %v4214
      %v4235 = vunpack.c.l.b16 %v4215
      %v4236 = vunpack.c.l.b16 %v4216
      %v4237 = vunpack.c.l.b16 %v4217
      %v4238 = vunpack.c.l.b16 %v4218
      %v4239 = vunpack.c.l.b16 %v4219
      %v4240 = vpack.c.b16 %v4233, %v4232
      %v4241 = vpack.c.b16 %v4235, %v4234
      %v4242 = vpack.c.b16 %v4237, %v4236
      %v4243 = vpack.c.b16 %v4239, %v4238
      %vm4248 = vcmask 523264
      %v4250 = vsel %vm4248, %v4196, 0
      %v4253 = vsel %vm4248, %v4197, 0
      %v4256 = vsel %vm4248, %v4198, 0
      %v4259 = vsel %vm4248, %v4199, 0
      %v4262 = vsel %vm4248, %v4200, 0
      %v4265 = vsel %vm4248, %v4201, 0
      %v4268 = vsel %vm4248, %v4202, 0
      %v4271 = vsel %vm4248, %v4203, 0
      %v4274 = vsel %vm4248, %v4204, 0
      %v4277 = vsel %vm4248, %v4205, 0
      %v4280 = vsel %vm4248, %v4206, 0
      %v4283 = vsel %vm4248, %v4207, 0
      %v4286 = vsel %vm4248, %v4208, 0
      %v4289 = vsel %vm4248, %v4209, 0
      %v4292 = vsel %vm4248, %v4210, 0
      %v4295 = vsel %vm4248, %v4211, 0
      %4297 = vmatpush.bf16.msra.mxu0 0
      %4298 = vmatpush.bf16.msra.mxu0 0
      %4299 = vmatpush.bf16.msra.mxu0 0
      %4300 = vmatpush.bf16.msra.mxu0 0
      %4301 = vmatpush.bf16.msra.mxu0 %v4243
      %4302 = vmatpush.bf16.msra.mxu0 %v4242
      %4303 = vmatpush.bf16.msra.mxu0 %v4241
      %4304 = vmatpush.bf16.msra.mxu0 %v4240
      %4305 = vmatmul.bf16.gmra.mxu0 %v4250
      %v4306 = vpop.f32.mrf.mxu0
      %v4307 = vadd.f32 %v4222, %v4306
      %v4308 = vpop.f32.mrf.mxu0
      %v4309 = vadd.f32 %v4222, %v4308
      %4310 = vmatmul.bf16.gmra.mxu0 %v4253
      %v4311 = vpop.f32.mrf.mxu0
      %v4312 = vadd.f32 %v4222, %v4311
      %v4313 = vpop.f32.mrf.mxu0
      %v4314 = vadd.f32 %v4222, %v4313
      %4315 = vmatmul.bf16.gmra.mxu0 %v4256
      %v4316 = vpop.f32.mrf.mxu0
      %v4317 = vadd.f32 %v4222, %v4316
      %v4318 = vpop.f32.mrf.mxu0
      %v4319 = vadd.f32 %v4222, %v4318
      %4320 = vmatmul.bf16.gmra.mxu0 %v4259
      %v4321 = vpop.f32.mrf.mxu0
      %v4322 = vadd.f32 %v4222, %v4321
      %v4323 = vpop.f32.mrf.mxu0
      %v4324 = vadd.f32 %v4222, %v4323
      %4325 = vmatmul.bf16.gmra.mxu0 %v4262
      %v4326 = vpop.f32.mrf.mxu0
      %v4327 = vadd.f32 %v4222, %v4326
      %v4328 = vpop.f32.mrf.mxu0
      %v4329 = vadd.f32 %v4222, %v4328
      %4330 = vmatmul.bf16.gmra.mxu0 %v4265
      %v4331 = vpop.f32.mrf.mxu0
      %v4332 = vadd.f32 %v4222, %v4331
      %v4333 = vpop.f32.mrf.mxu0
      %v4334 = vadd.f32 %v4222, %v4333
      %4335 = vmatmul.bf16.gmra.mxu0 %v4268
      %v4336 = vpop.f32.mrf.mxu0
      %v4337 = vadd.f32 %v4222, %v4336
      %v4338 = vpop.f32.mrf.mxu0
      %v4339 = vadd.f32 %v4222, %v4338
      %4340 = vmatmul.bf16.gmra.mxu0 %v4271
      %v4341 = vpop.f32.mrf.mxu0
      %v4342 = vadd.f32 %v4222, %v4341
      %v4343 = vpop.f32.mrf.mxu0
      %v4344 = vadd.f32 %v4222, %v4343
      %4345 = vmatmul.bf16.gmra.mxu0 %v4274
      %v4346 = vpop.f32.mrf.mxu0
      %v4347 = vadd.f32 %v4222, %v4346
      %v4348 = vpop.f32.mrf.mxu0
      %v4349 = vadd.f32 %v4222, %v4348
      %4350 = vmatmul.bf16.gmra.mxu0 %v4277
      %v4351 = vpop.f32.mrf.mxu0
      %v4352 = vadd.f32 %v4222, %v4351
      %v4353 = vpop.f32.mrf.mxu0
      %v4354 = vadd.f32 %v4222, %v4353
      %4355 = vmatmul.bf16.gmra.mxu0 %v4280
      %v4356 = vpop.f32.mrf.mxu0
      %v4357 = vadd.f32 %v4222, %v4356
      %v4358 = vpop.f32.mrf.mxu0
      %v4359 = vadd.f32 %v4222, %v4358
      %4360 = vmatmul.bf16.gmra.mxu0 %v4283
      %v4361 = vpop.f32.mrf.mxu0
      %v4362 = vadd.f32 %v4222, %v4361
      %v4363 = vpop.f32.mrf.mxu0
      %v4364 = vadd.f32 %v4222, %v4363
      %4365 = vmatmul.bf16.gmra.mxu0 %v4286
      %v4366 = vpop.f32.mrf.mxu0
      %v4367 = vadd.f32 %v4222, %v4366
      %v4368 = vpop.f32.mrf.mxu0
      %v4369 = vadd.f32 %v4222, %v4368
      %4370 = vmatmul.bf16.gmra.mxu0 %v4289
      %v4371 = vpop.f32.mrf.mxu0
      %v4372 = vadd.f32 %v4222, %v4371
      %v4373 = vpop.f32.mrf.mxu0
      %v4374 = vadd.f32 %v4222, %v4373
      %4375 = vmatmul.bf16.gmra.mxu0 %v4292
      %v4376 = vpop.f32.mrf.mxu0
      %v4377 = vadd.f32 %v4222, %v4376
      %v4378 = vpop.f32.mrf.mxu0
      %v4379 = vadd.f32 %v4222, %v4378
      %4380 = vmatmul.bf16.gmra.mxu0 %v4295
      %v4381 = vpop.f32.mrf.mxu0
      %v4382 = vadd.f32 %v4222, %v4381
      %v4383 = vpop.f32.mrf.mxu0
      %v4384 = vadd.f32 %v4222, %v4383
      %4385 = vdwg.mxu0
      %4418 = vrot.lane.b32.xlu0 %v4164, 64
      %v4419 = vpop.permute.xlu0 %4418
      %4420 = vrot.lane.b32.xlu0 %v4165, 64
      %v4421 = vpop.permute.xlu0 %4420
      %4422 = vrot.lane.b32.xlu0 %v4166, 64
      %v4423 = vpop.permute.xlu0 %4422
      %4424 = vrot.lane.b32.xlu0 %v4167, 64
      %v4425 = vpop.permute.xlu0 %4424
      %4426 = vrot.lane.b32.xlu0 %v4168, 64
      %v4427 = vpop.permute.xlu0 %4426
      %4428 = vrot.lane.b32.xlu0 %v4169, 64
      %v4429 = vpop.permute.xlu0 %4428
      %4430 = vrot.lane.b32.xlu0 %v4170, 64
      %v4431 = vpop.permute.xlu0 %4430
      %4432 = vrot.lane.b32.xlu0 %v4171, 64
      %v4433 = vpop.permute.xlu0 %4432
      %4434 = vrot.lane.b32.xlu0 %v4172, 64
      %v4435 = vpop.permute.xlu0 %4434
      %4436 = vrot.lane.b32.xlu0 %v4173, 64
      %v4437 = vpop.permute.xlu0 %4436
      %4438 = vrot.lane.b32.xlu0 %v4174, 64
      %v4439 = vpop.permute.xlu0 %4438
      %4440 = vrot.lane.b32.xlu0 %v4175, 64
      %v4441 = vpop.permute.xlu0 %4440
      %4442 = vrot.lane.b32.xlu0 %v4176, 64
      %v4443 = vpop.permute.xlu0 %4442
      %4444 = vrot.lane.b32.xlu0 %v4177, 64
      %v4445 = vpop.permute.xlu0 %4444
      %4446 = vrot.lane.b32.xlu0 %v4178, 64
      %v4447 = vpop.permute.xlu0 %4446
      %4448 = vrot.lane.b32.xlu0 %v4179, 64
      %v4449 = vpop.permute.xlu0 %4448
      %4450 = vrot.lane.b32.xlu0 %v4180, 64
      %v4451 = vpop.permute.xlu0 %4450
      %4452 = vrot.lane.b32.xlu0 %v4181, 64
      %v4453 = vpop.permute.xlu0 %4452
      %4454 = vrot.lane.b32.xlu0 %v4182, 64
      %v4455 = vpop.permute.xlu0 %4454
      %4456 = vrot.lane.b32.xlu0 %v4183, 64
      %v4457 = vpop.permute.xlu0 %4456
      %4458 = vrot.lane.b32.xlu0 %v4184, 64
      %v4459 = vpop.permute.xlu0 %4458
      %4460 = vrot.lane.b32.xlu0 %v4185, 64
      %v4461 = vpop.permute.xlu0 %4460
      %4462 = vrot.lane.b32.xlu0 %v4186, 64
      %v4463 = vpop.permute.xlu0 %4462
      %4464 = vrot.lane.b32.xlu0 %v4187, 64
      %v4465 = vpop.permute.xlu0 %4464
      %4466 = vrot.lane.b32.xlu0 %v4188, 64
      %v4467 = vpop.permute.xlu0 %4466
      %4468 = vrot.lane.b32.xlu0 %v4189, 64
      %v4469 = vpop.permute.xlu0 %4468
      %4470 = vrot.lane.b32.xlu0 %v4190, 64
      %v4471 = vpop.permute.xlu0 %4470
      %4472 = vrot.lane.b32.xlu0 %v4191, 64
      %v4473 = vpop.permute.xlu0 %4472
      %4474 = vrot.lane.b32.xlu0 %v4192, 64
      %v4475 = vpop.permute.xlu0 %4474
      %4476 = vrot.lane.b32.xlu0 %v4193, 64
      %v4477 = vpop.permute.xlu0 %4476
      %4478 = vrot.lane.b32.xlu0 %v4194, 64
      %v4479 = vpop.permute.xlu0 %4478
      %4480 = vrot.lane.b32.xlu0 %v4195, 64
      %v4481 = vpop.permute.xlu0 %4480
      %4546 = vrot.lane.b32.xlu0 %v4307, 32
      %v4547 = vpop.permute.xlu0 %4546
      %4548 = vrot.lane.b32.xlu0 %v4309, 32
      %v4549 = vpop.permute.xlu0 %4548
      %4550 = vrot.lane.b32.xlu0 %v4312, 32
      %v4551 = vpop.permute.xlu0 %4550
      %4552 = vrot.lane.b32.xlu0 %v4314, 32
      %v4553 = vpop.permute.xlu0 %4552
      %4554 = vrot.lane.b32.xlu0 %v4317, 32
      %v4555 = vpop.permute.xlu0 %4554
      %4556 = vrot.lane.b32.xlu0 %v4319, 32
      %v4557 = vpop.permute.xlu0 %4556
      %4558 = vrot.lane.b32.xlu0 %v4322, 32
      %v4559 = vpop.permute.xlu0 %4558
      %4560 = vrot.lane.b32.xlu0 %v4324, 32
      %v4561 = vpop.permute.xlu0 %4560
      %4562 = vrot.lane.b32.xlu0 %v4327, 32
      %v4563 = vpop.permute.xlu0 %4562
      %4564 = vrot.lane.b32.xlu0 %v4329, 32
      %v4565 = vpop.permute.xlu0 %4564
      %4566 = vrot.lane.b32.xlu0 %v4332, 32
      %v4567 = vpop.permute.xlu0 %4566
      %4568 = vrot.lane.b32.xlu0 %v4334, 32
      %v4569 = vpop.permute.xlu0 %4568
      %4570 = vrot.lane.b32.xlu0 %v4337, 32
      %v4571 = vpop.permute.xlu0 %4570
      %4572 = vrot.lane.b32.xlu0 %v4339, 32
      %v4573 = vpop.permute.xlu0 %4572
      %4574 = vrot.lane.b32.xlu0 %v4342, 32
      %v4575 = vpop.permute.xlu0 %4574
      %4576 = vrot.lane.b32.xlu0 %v4344, 32
      %v4577 = vpop.permute.xlu0 %4576
      %4578 = vrot.lane.b32.xlu0 %v4347, 32
      %v4579 = vpop.permute.xlu0 %4578
      %4580 = vrot.lane.b32.xlu0 %v4349, 32
      %v4581 = vpop.permute.xlu0 %4580
      %4582 = vrot.lane.b32.xlu0 %v4352, 32
      %v4583 = vpop.permute.xlu0 %4582
      %4584 = vrot.lane.b32.xlu0 %v4354, 32
      %v4585 = vpop.permute.xlu0 %4584
      %4586 = vrot.lane.b32.xlu0 %v4357, 32
      %v4587 = vpop.permute.xlu0 %4586
      %4588 = vrot.lane.b32.xlu0 %v4359, 32
      %v4589 = vpop.permute.xlu0 %4588
      %4590 = vrot.lane.b32.xlu0 %v4362, 32
      %v4591 = vpop.permute.xlu0 %4590
      %4592 = vrot.lane.b32.xlu0 %v4364, 32
      %v4593 = vpop.permute.xlu0 %4592
      %4594 = vrot.lane.b32.xlu0 %v4367, 32
      %v4595 = vpop.permute.xlu0 %4594
      %4596 = vrot.lane.b32.xlu0 %v4369, 32
      %v4597 = vpop.permute.xlu0 %4596
      %4598 = vrot.lane.b32.xlu0 %v4372, 32
      %v4599 = vpop.permute.xlu0 %4598
      %4600 = vrot.lane.b32.xlu0 %v4374, 32
      %v4601 = vpop.permute.xlu0 %4600
      %4602 = vrot.lane.b32.xlu0 %v4377, 32
      %v4603 = vpop.permute.xlu0 %4602
      %4604 = vrot.lane.b32.xlu0 %v4379, 32
      %v4605 = vpop.permute.xlu0 %4604
      %4606 = vrot.lane.b32.xlu0 %v4382, 32
      %v4607 = vpop.permute.xlu0 %4606
      %4608 = vrot.lane.b32.xlu0 %v4384, 32
      %v4609 = vpop.permute.xlu0 %4608
      %v4642 = vsel %vm3779, %v4419, %v4547
      %v4643 = vsel %vm3779, %v4421, %v4549
      %v4644 = vsel %vm3779, %v4423, %v4551
      %v4645 = vsel %vm3779, %v4425, %v4553
      %v4646 = vsel %vm3779, %v4427, %v4555
      %v4647 = vsel %vm3779, %v4429, %v4557
      %v4648 = vsel %vm3779, %v4431, %v4559
      %v4649 = vsel %vm3779, %v4433, %v4561
      %v4650 = vsel %vm3779, %v4435, %v4563
      %v4651 = vsel %vm3779, %v4437, %v4565
      %v4652 = vsel %vm3779, %v4439, %v4567
      %v4653 = vsel %vm3779, %v4441, %v4569
      %v4654 = vsel %vm3779, %v4443, %v4571
      %v4655 = vsel %vm3779, %v4445, %v4573
      %v4656 = vsel %vm3779, %v4447, %v4575
      %v4657 = vsel %vm3779, %v4449, %v4577
      %v4658 = vsel %vm3779, %v4451, %v4579
      %v4659 = vsel %vm3779, %v4453, %v4581
      %v4660 = vsel %vm3779, %v4455, %v4583
      %v4661 = vsel %vm3779, %v4457, %v4585
      %v4662 = vsel %vm3779, %v4459, %v4587
      %v4663 = vsel %vm3779, %v4461, %v4589
      %v4664 = vsel %vm3779, %v4463, %v4591
      %v4665 = vsel %vm3779, %v4465, %v4593
      %v4666 = vsel %vm3779, %v4467, %v4595
      %v4667 = vsel %vm3779, %v4469, %v4597
      %v4668 = vsel %vm3779, %v4471, %v4599
      %v4669 = vsel %vm3779, %v4473, %v4601
      %v4670 = vsel %vm3779, %v4475, %v4603
      %v4671 = vsel %vm3779, %v4477, %v4605
      %v4672 = vsel %vm3779, %v4479, %v4607
      %v4673 = vsel %vm3779, %v4481, %v4609
      %vm4674 = vcmask 785408
      %4675 = vst.msk [vmem:[%s271] sm:$0xff] %vm4674, %v4642
      %4676 = vst.msk [vmem:[%s271 + $0x8] sm:$0xff] %vm4674, %v4643
      %4677 = vst.msk [vmem:[%s271 + $0x10] sm:$0xff] %vm4674, %v4644
      %4678 = vst.msk [vmem:[%s271 + $0x18] sm:$0xff] %vm4674, %v4645
      %4679 = vst.msk [vmem:[%s271 + $0x20] sm:$0xff] %vm4674, %v4646
      %4680 = vst.msk [vmem:[%s271 + $0x28] sm:$0xff] %vm4674, %v4647
      %4681 = vst.msk [vmem:[%s271 + $0x30] sm:$0xff] %vm4674, %v4648
      %4682 = vst.msk [vmem:[%s271 + $0x38] sm:$0xff] %vm4674, %v4649
      %4683 = vst.msk [vmem:[%s271 + $0x40] sm:$0xff] %vm4674, %v4650
      %4684 = vst.msk [vmem:[%s271 + $0x48] sm:$0xff] %vm4674, %v4651
      %4685 = vst.msk [vmem:[%s271 + $0x50] sm:$0xff] %vm4674, %v4652
      %4686 = vst.msk [vmem:[%s271 + $0x58] sm:$0xff] %vm4674, %v4653
      %4687 = vst.msk [vmem:[%s271 + $0x60] sm:$0xff] %vm4674, %v4654
      %4688 = vst.msk [vmem:[%s271 + $0x68] sm:$0xff] %vm4674, %v4655
      %4689 = vst.msk [vmem:[%s271 + $0x70] sm:$0xff] %vm4674, %v4656
      %4690 = vst.msk [vmem:[%s271 + $0x78] sm:$0xff] %vm4674, %v4657
      %4691 = vst.msk [vmem:[%s271 + $0x80] sm:$0xff] %vm4674, %v4658
      %4692 = vst.msk [vmem:[%s271 + $0x88] sm:$0xff] %vm4674, %v4659
      %4693 = vst.msk [vmem:[%s271 + $0x90] sm:$0xff] %vm4674, %v4660
      %4694 = vst.msk [vmem:[%s271 + $0x98] sm:$0xff] %vm4674, %v4661
      %4695 = vst.msk [vmem:[%s271 + $0xa0] sm:$0xff] %vm4674, %v4662
      %4696 = vst.msk [vmem:[%s271 + $0xa8] sm:$0xff] %vm4674, %v4663
      %4697 = vst.msk [vmem:[%s271 + $0xb0] sm:$0xff] %vm4674, %v4664
      %4698 = vst.msk [vmem:[%s271 + $0xb8] sm:$0xff] %vm4674, %v4665
      %4699 = vst.msk [vmem:[%s271 + $0xc0] sm:$0xff] %vm4674, %v4666
      %4700 = vst.msk [vmem:[%s271 + $0xc8] sm:$0xff] %vm4674, %v4667
      %4701 = vst.msk [vmem:[%s271 + $0xd0] sm:$0xff] %vm4674, %v4668
      %4702 = vst.msk [vmem:[%s271 + $0xd8] sm:$0xff] %vm4674, %v4669
      %4703 = vst.msk [vmem:[%s271 + $0xe0] sm:$0xff] %vm4674, %v4670
      %4704 = vst.msk [vmem:[%s271 + $0xe8] sm:$0xff] %vm4674, %v4671
      %4705 = vst.msk [vmem:[%s271 + $0xf0] sm:$0xff] %vm4674, %v4672
      %4706 = vst.msk [vmem:[%s271 + $0xf8] sm:$0xff] %vm4674, %v4673
      %p4707 = scmp.lt.s32.totalorder %s17, 1
      %s4708 = scalar_select %p4707, %s17, 1
      %s4709 = smul.addr %s4708, 32
      %s4710 = smul.addr %s4709, 8
      %s4711 = scalar_lea.vmem %s6, %s4710
      // Predicated region
      $region45: #{spatiotemporal_lstm_cell.1} parent=43 // pred_check
        %p4712 = pneg %p171
      $region46: #{spatiotemporal_lstm_cell.1} parent=43 // pred_check_branch
        %4714 = sbr.rel (%p4712) target = $region48
      $region47: #{spatiotemporal_lstm_cell.1} parent=43 // pred_region
        _
      $region48: #{spatiotemporal_lstm_cell.1} parent=43 // pred_fallthru
        _
    $region44: #{spatiotemporal_lstm_cell.1} parent=5 // pred_fallthru
      _
    %p4715 = scmp.le.s32.totalorder 2, %s12
    // Predicated region
    $region49: #{spatiotemporal_lstm_cell.1} parent=5 // pred_check
      %p4716 = pneg %p4715
    $region50: #{spatiotemporal_lstm_cell.1} parent=5 // pred_check_branch
      %4718 = sbr.rel (%p4716) target = $region52
    $region51: #{spatiotemporal_lstm_cell.1} parent=5 // pred_region
      %s4719 = ssub.s32 %s12, 2
      // Predicated region
      $region53: #{spatiotemporal_lstm_cell.1} parent=51 // pred_check
        %p4720 = pneg %p177
      $region54: #{spatiotemporal_lstm_cell.1} parent=51 // pred_check_branch
        %4722 = sbr.rel (%p4720) target = $region56
      $region55: #{spatiotemporal_lstm_cell.1} parent=51 // pred_region
        %p4723 = scmp.lt.s32.totalorder %s18, 1
        %s4724 = scalar_select %p4723, %s18, 1
        %s4725 = smul.addr %s4724, 32
        %s4726 = smul.addr %s4725, 8
        %s4727 = scalar_lea.vmem %s6, %s4726
      $region56: #{spatiotemporal_lstm_cell.1} parent=51 // pred_fallthru
        _
    $region52: #{spatiotemporal_lstm_cell.1} parent=5 // pred_fallthru
      _
  $region6: #{spatiotemporal_lstm_cell.1} parent=0 // loop_footer
    %s16 = sadd.s32 1, %s12
  $region7: #{spatiotemporal_lstm_cell.1} parent=0 // loop_footer_branch
    %11 = sbr.rel target = $region3
  $region8: #{spatiotemporal_lstm_cell.1} parent=0 // loop_exit
    _

</llo_original>
